<compile_context>
chip_gen: v6e
topology: v6e:2x2x1
jax: 0.10.0
libtpu: 0.0.40
codegen_flags: <defaults>
</compile_context>

<pallas_src>
from functools import partial

import jax
import jax.numpy as jnp
from jax import lax
from jax.experimental import pallas as pl
from jax.experimental.pallas import tpu as pltpu


# ----------------------------------------------------------------------------
# Fused UpBlock kernel (one program per sample)
# ----------------------------------------------------------------------------
def _upblock_kernel(
    x1_ref, x2_ref, ut_ref, ml_ref, mr_ref,
    wsc_ref, bsc_ref, gsc_ref, besc_ref,
    g0_ref, be0_ref,
    w1_ref, b1_ref, g1_ref, be1_ref,
    w2_ref, b2_ref, g2_ref, be2_ref,
    sel_ref,
    o_ref,
    s_pad,
    *, Cin, skip_ch, out_ch, num_groups, Ho, Wo, base, eps,
):
    f32 = jnp.float32
    bf16 = jnp.bfloat16
    C0 = Cin + skip_ch
    M = Ho * Wo
    Cpad, R = s_pad.shape

    # ---- tiny helpers -------------------------------------------------------
    def sum_all(a):
        # full reduce -> (1, 1): lane reduce (XLU) then sublane reduce of a (C, 1).
        return jnp.sum(jnp.sum(a, axis=1, keepdims=True), axis=0, keepdims=True)

    def gn_lrelu(y, g_ref, b_ref, *, count, slope, groups=1):
        # Single-pass GroupNorm stats (E[x^2] - mean^2) + per-channel affine + LReLU.
        inv = 1.0 / float(count)
        if groups == 1:
            mean_c = sum_all(y) * inv
            var = sum_all(y * y) * inv - mean_c * mean_c
            rstd_c = lax.rsqrt(var + eps)
        else:
            s_c = jnp.sum(y, axis=1, keepdims=True)        # (C, 1)
            q_c = jnp.sum(y * y, axis=1, keepdims=True)    # (C, 1)
            mean_c = jnp.zeros_like(s_c)
            rstd_c = jnp.zeros_like(s_c)
            for g in range(groups):                        # static, tiny (C,1) math
                sel = sel_ref[g]                           # (C, 1) 0/1 group indicator
                mg = sum_all(sel * s_c) * inv
                vg = sum_all(sel * q_c) * inv - mg * mg
                mean_c = mean_c + sel * mg
                rstd_c = rstd_c + sel * lax.rsqrt(vg + eps)
        out = (y - mean_c) * rstd_c * g_ref[...] + b_ref[...]
        if slope is not None:                              # trace-time: no dead select
            out = jnp.where(out >= 0, out, slope * out)
        return out

    def conv3x3(cin, w9_ref, b_ref):
        # 9-tap accumulate 3x3 conv (stride 1, pad 1).  The activation is staged in
        # s_pad rows [0:cin], interior lanes [base, base+M); top/bottom image edges
        # fall into the zero halo, left/right row wrap-around is masked by ml/mr.
        # TODO(synk): replace the unaligned halo-slice reads by pltpu.roll (XLU) once
        # its rotate direction is pinned by a micro-test.
        acc = None
        for t in range(9):
            ky, kx = t // 3, t % 3
            st = base + (ky - 1) * Wo + (kx - 1)
            patch = s_pad[0:cin, st:st + M]
            if kx == 0:
                patch = patch * ml_ref[...]
            elif kx == 2:
                patch = patch * mr_ref[...]
            contrib = jnp.dot(w9_ref[t], patch.astype(bf16),
                              preferred_element_type=f32)
            acc = contrib if acc is None else acc + contrib
        return acc + b_ref[...]

    # ---- zero ONLY the halo columns; the interior is fully rewritten below ----
    s_pad[:, 0:base] = jnp.zeros((Cpad, base), f32)
    s_pad[:, base + M:R] = jnp.zeros((Cpad, R - base - M), f32)

    # ---- bilinear 2x upsample (align_corners=True) + central crop: one matmul ----
    xu = jnp.dot(x1_ref[0], ut_ref[...], preferred_element_type=f32)        # (Cin, M)

    # ---- skip branch: 1x1 conv -> GroupNorm(1 group) -> LeakyReLU(0.2) ----
    ysc = (jnp.dot(wsc_ref[...], x2_ref[0], preferred_element_type=f32)
           + bsc_ref[...])                                                   # (skip, M)
    ysc = gn_lrelu(ysc, gsc_ref, besc_ref, count=skip_ch * M, slope=0.2)

    # ---- concat + GN(1 group): joint stats fused with the staging writes ----
    inv0 = 1.0 / float(C0 * M)
    mean0 = (sum_all(xu) + sum_all(ysc)) * inv0
    var0 = (sum_all(xu * xu) + sum_all(ysc * ysc)) * inv0 - mean0 * mean0
    rstd0 = lax.rsqrt(var0 + eps)
    s_pad[0:Cin, base:base + M] = ((xu - mean0) * rstd0 * g0_ref[0:Cin, :]
                                   + be0_ref[0:Cin, :])
    s_pad[Cin:C0, base:base + M] = ((ysc - mean0) * rstd0 * g0_ref[Cin:C0, :]
                                    + be0_ref[Cin:C0, :])

    # ---- Conv3x3(C0 -> out_ch) -> GN(num_groups) -> LeakyReLU(0.2) ----
    y1 = conv3x3(C0, w1_ref, b1_ref)
    y1 = gn_lrelu(y1, g1_ref, be1_ref, count=(out_ch // num_groups) * M,
                  slope=0.2, groups=num_groups)

    # ---- Conv3x3(out_ch -> out_ch) -> GN(num_groups) -> LeakyReLU(0.2) ----
    s_pad[0:out_ch, base:base + M] = y1
    y2 = conv3x3(out_ch, w2_ref, b2_ref)
    y2 = gn_lrelu(y2, g2_ref, be2_ref, count=(out_ch // num_groups) * M,
                  slope=0.2, groups=num_groups)

    # Lane-dense store; reshape back to NCHW is free outside.
    o_ref[0] = y2


# ----------------------------------------------------------------------------
# Host-side helpers
# ----------------------------------------------------------------------------
def _upsample_matrix(in_len, out_len):
    # Bilinear, align_corners=True: src = dst * (in-1)/(out-1)
    if in_len == 1:
        return jnp.ones((out_len, 1), jnp.float32)
    src = jnp.arange(out_len, dtype=jnp.float32) * (in_len - 1) / (out_len - 1)
    i0 = jnp.clip(jnp.floor(src).astype(jnp.int32), 0, in_len - 2)
    frac = src - i0.astype(jnp.float32)
    U = jnp.zeros((out_len, in_len), jnp.float32)
    rows = jnp.arange(out_len)
    U = U.at[rows, i0].add(1.0 - frac)
    U = U.at[rows, i0 + 1].add(frac)
    return U


def up_block_forward(params, x1, x2, *, num_groups=2, eps=1e-5):
    # x1: (N, in_ch, H1, W1) block input ; x2: (N, out_ch, H2, W2) skip input (NCHW).
    N, Cin, H1, W1 = x1.shape
    _, C2, H2, W2 = x2.shape
    out_ch = params["w1"].shape[0]
    skip_ch = params["w_sc"].shape[0]
    C0 = Cin + skip_ch
    Cmax = max(C0, out_ch)
    Hup, Wup = 2 * H1, 2 * W1
    Ho, Wo = min(Hup, H2), min(Wup, W2)
    M = Ho * Wo
    Min = H1 * W1
    base = ((Wo + 1 + 127) // 128) * 128     # lane-aligned halo width >= Wo + 1
    R = M + 2 * base

    f32, bf16 = jnp.float32, jnp.bfloat16

    # Fused (upsample + central crop) operator: one (Min, M) matrix, bf16 MXU operand.
    Uh = _upsample_matrix(H1, Hup)
    Uw = _upsample_matrix(W1, Wup)
    dh, dw = (Hup - Ho) // 2, (Wup - Wo) // 2
    Ut = jnp.kron(Uh[dh:dh + Ho], Uw[dw:dw + Wo]).T.astype(bf16)           # (Min, M)
    # TODO(synk): for large feature maps replace the dense kron operator with two
    # separable (row/col) upsample matmuls and add a spatial-tile grid axis (with a
    # 1-row halo) so the working set fits v7x's 64 MiB VMEM and both v7x TensorCores
    # stay busy at N=1.

    # Central-crop the skip input (Concat semantics) and flatten spatial (free views).
    d2h, d2w = (H2 - Ho) // 2, (W2 - Wo) // 2
    x1f = x1.reshape(N, Cin, Min).astype(bf16)
    x2f = x2[:, :, d2h:d2h + Ho, d2w:d2w + Wo].reshape(N, C2, M).astype(bf16)

    # Left/right image-edge masks for the raster-shifted 3x3 conv taps.
    wi = jnp.arange(M) % Wo
    mask_l = (wi != 0).astype(f32).reshape(1, M)
    mask_r = (wi != Wo - 1).astype(f32).reshape(1, M)

    # Per-group 0/1 indicator columns for the grouped GroupNorms (VPU mixing, no MXU).
    Cg = out_ch // num_groups
    sel = (jnp.arange(out_ch)[None, :] // Cg
           == jnp.arange(num_groups)[:, None]).astype(f32)
    sel = sel.reshape(num_groups, out_ch, 1)

    col = lambda v: v.reshape(-1, 1).astype(f32)
    w_sc = params["w_sc"].reshape(skip_ch, C2).astype(bf16)                 # (S, C2)
    # Tap-major conv weights: (9, out_ch, cin) so each tap is a clean leading-dim load.
    w1c = params["w1"].transpose(2, 3, 0, 1).reshape(9, out_ch, C0).astype(bf16)
    w2c = params["w2"].transpose(2, 3, 0, 1).reshape(9, out_ch, out_ch).astype(bf16)

    inputs = [
        x1f, x2f, Ut, mask_l, mask_r,
        w_sc, col(params["b_sc"]), col(params["g_sc"]), col(params["be_sc"]),
        col(params["g0"]), col(params["be0"]),
        w1c, col(params["b1"]), col(params["g1"]), col(params["be1"]),
        w2c, col(params["b2"]), col(params["g2"]), col(params["be2"]),
        sel,
    ]

    def shared_spec(a):
        nd = a.ndim
        return pl.BlockSpec(a.shape, lambda n, _nd=nd: (0,) * _nd)

    in_specs = [
        pl.BlockSpec((1, Cin, Min), lambda n: (n, 0, 0)),
        pl.BlockSpec((1, C2, M), lambda n: (n, 0, 0)),
    ] + [shared_spec(a) for a in inputs[2:]]
    # TODO(synk): grid-invariant operands still get the default double buffer; switch
    # to pipeline_mode=pl.Buffered(1) (or resident buffers) if VMEM ever gets tight.
    # TODO(synk): pack several samples per grid step (lane-stacked (C, Bn*M)) to
    # amortize the per-step overhead and fatten matmuls on single-TC v5e/v6e.

    kernel = partial(
        _upblock_kernel,
        Cin=Cin, skip_ch=skip_ch, out_ch=out_ch, num_groups=num_groups,
        Ho=Ho, Wo=Wo, base=base, eps=eps,
    )

    flops = 2 * N * M * (Cin * Min + skip_ch * C2
                         + out_ch * 9 * C0 + out_ch * 9 * out_ch)
    bytes_accessed = (2 * (x1f.size + x2f.size + Ut.size + w1c.size + w2c.size)
                      + 4 * N * out_ch * M)

    out = pl.pallas_call(
        kernel,
        out_shape=jax.ShapeDtypeStruct((N, out_ch, M), f32),
        grid=(N,),
        in_specs=in_specs,
        out_specs=pl.BlockSpec((1, out_ch, M), lambda n: (n, 0, 0)),
        scratch_shapes=[pltpu.VMEM((Cmax, R), f32)],   # zero-halo activation buffer
        compiler_params=pltpu.CompilerParams(
            dimension_semantics=("parallel",),
        ),
        cost_estimate=pl.CostEstimate(
            flops=int(flops), transcendentals=0, bytes_accessed=int(bytes_accessed)),
    )(*inputs)
    return out.reshape(N, out_ch, Ho, Wo)


# ----------------------------------------------------------------------------
# Pure-JAX f32 reference (independent implementation; validates the fused kernel)
# ----------------------------------------------------------------------------
def concat_crop(*inputs):
    H = min(t.shape[2] for t in inputs)
    W = min(t.shape[3] for t in inputs)

    def crop(t):
        d2 = (t.shape[2] - H) // 2
        d3 = (t.shape[3] - W) // 2
        return t[:, :, d2:d2 + H, d3:d3 + W]

    return jnp.concatenate([crop(t) for t in inputs], axis=1)


def _ref_gn_lrelu(x, gamma, beta, G, slope, eps=1e-5):
    N, C, H, W = x.shape
    xg = x.reshape(N, G, C // G, H, W)
    mean = xg.mean(axis=(2, 3, 4), keepdims=True)
    var = ((xg - mean) ** 2).mean(axis=(2, 3, 4), keepdims=True)
    y = ((xg - mean) * lax.rsqrt(var + eps)).reshape(N, C, H, W)
    y = y * gamma.reshape(1, C, 1, 1) + beta.reshape(1, C, 1, 1)
    return jnp.where(y >= 0, y, slope * y)


def _ref_conv(x, w, b, pad):
    y = lax.conv_general_dilated(
        x, w, window_strides=(1, 1), padding=[(pad, pad), (pad, pad)],
        dimension_numbers=("NCHW", "OIHW", "NCHW"))
    return y + b.reshape(1, -1, 1, 1)


def _ref_up2(x):
    N, C, H, W = x.shape
    Uh = _upsample_matrix(H, 2 * H)
    Uw = _upsample_matrix(W, 2 * W)
    return jnp.einsum("oh,pw,nchw->ncop", Uh, Uw, x)


def ref_forward(params, x1, x2, *, num_groups=2):
    x1u = _ref_up2(x1)
    x2s = _ref_conv(x2, params["w_sc"], params["b_sc"], 0)
    x2s = _ref_gn_lrelu(x2s, params["g_sc"], params["be_sc"], 1, 0.2)
    x = concat_crop(x1u, x2s)
    x = _ref_gn_lrelu(x, params["g0"], params["be0"], 1, 1.0)
    x = _ref_conv(x, params["w1"], params["b1"], 1)
    x = _ref_gn_lrelu(x, params["g1"], params["be1"], num_groups, 0.2)
    x = _ref_conv(x, params["w2"], params["b2"], 1)
    x = _ref_gn_lrelu(x, params["g2"], params["be2"], num_groups, 0.2)
    return x


# ----------------------------------------------------------------------------
# Deterministic parameter init + main
# ----------------------------------------------------------------------------
def init_params(key, in_ch, out_ch, skip_ch):
    ks = jax.random.split(key, 12)
    n = lambda k, s: (0.1 * jax.random.normal(k, s)).astype(jnp.float32)
    cin = in_ch + skip_ch
    return {
        # skip_conv
        "w_sc": n(ks[0], (skip_ch, out_ch, 1, 1)),
        "b_sc": n(ks[1], (skip_ch,)),
        "g_sc": 1.0 + n(ks[2], (skip_ch,)),
        "be_sc": n(ks[3], (skip_ch,)),
        # conv block
        "g0": 1.0 + n(ks[4], (cin,)),
        "be0": n(ks[5], (cin,)),
        "w1": n(ks[6], (out_ch, cin, 3, 3)),
        "b1": n(ks[7], (out_ch,)),
        "g1": 1.0 + n(ks[8], (out_ch,)),
        "be1": n(ks[9], (out_ch,)),
        "w2": n(ks[10], (out_ch, out_ch, 3, 3)),
        "b2": n(ks[11], (out_ch,)),
        "g2": jnp.ones((out_ch,), jnp.float32) * 1.05,
        "be2": jnp.full((out_ch,), 0.02, jnp.float32),
    }


if __name__ == "__main__":
    # TODO(synk): the skip_ch == 0 (zero skip tensor) and use_norm=False variants of
    # UpBlock are not exercised here; the demo uses the default use_norm=True path.
    in_ch, out_ch, skip_ch, num_groups = 4, 4, 4, 2
    key = jax.random.PRNGKey(0)
    kp, k1, k2 = jax.random.split(key, 3)
    params = init_params(kp, in_ch, out_ch, skip_ch)

    # x1: block input (N, in_ch, 8, 8) -> upsampled to 16x16
    # x2: skip input  (N, out_ch, 16, 16) (skip_conv expects out_ch input channels)
    x1 = jax.random.normal(k1, (2, in_ch, 8, 8), jnp.float32)
    x2 = jax.random.normal(k2, (2, out_ch, 16, 16), jnp.float32)

    out = jax.block_until_ready(up_block_forward(params, x1, x2, num_groups=num_groups))
    ref = jax.block_until_ready(ref_forward(params, x1, x2, num_groups=num_groups))

    assert out.shape == (2, out_ch, 16, 16), out.shape
    assert bool(jnp.all(jnp.isfinite(out)))
    # Tolerances reflect bf16 MXU operands vs. the pure-f32 reference (still tight
    # enough to catch any structural error, which would be O(1) after the GNs).
    rel = float(jnp.linalg.norm(out - ref) / jnp.linalg.norm(ref))
    mx = float(jnp.max(jnp.abs(out - ref)))
    assert rel < 5e-2 and mx < 2.5e-1, (rel, mx)

    print("KERNEL_OK")
</pallas_src>

<mosaic_0001>
module attributes {stable_mosaic.version = 11 : i64} {
  func.func @_upblock_kernel(%arg0: i32, %arg1: memref<1x4x64xbf16, #tpu.memory_space<vmem>>, %arg2: memref<1x4x256xbf16, #tpu.memory_space<vmem>>, %arg3: memref<64x256xbf16, #tpu.memory_space<vmem>>, %arg4: memref<1x256xf32, #tpu.memory_space<vmem>>, %arg5: memref<1x256xf32, #tpu.memory_space<vmem>>, %arg6: memref<4x4xbf16, #tpu.memory_space<vmem>>, %arg7: memref<4x1xf32, #tpu.memory_space<vmem>>, %arg8: memref<4x1xf32, #tpu.memory_space<vmem>>, %arg9: memref<4x1xf32, #tpu.memory_space<vmem>>, %arg10: memref<8x1xf32, #tpu.memory_space<vmem>>, %arg11: memref<8x1xf32, #tpu.memory_space<vmem>>, %arg12: memref<9x4x8xbf16, #tpu.memory_space<vmem>>, %arg13: memref<4x1xf32, #tpu.memory_space<vmem>>, %arg14: memref<4x1xf32, #tpu.memory_space<vmem>>, %arg15: memref<4x1xf32, #tpu.memory_space<vmem>>, %arg16: memref<9x4x4xbf16, #tpu.memory_space<vmem>>, %arg17: memref<4x1xf32, #tpu.memory_space<vmem>>, %arg18: memref<4x1xf32, #tpu.memory_space<vmem>>, %arg19: memref<4x1xf32, #tpu.memory_space<vmem>>, %arg20: memref<2x4x1xf32, #tpu.memory_space<vmem>>, %arg21: memref<1x4x256xf32, #tpu.memory_space<vmem>>, %arg22: memref<8x512xf32, #tpu.memory_space<vmem>>) attributes {dimension_semantics = [#tpu.dimension_semantics<parallel>], iteration_bounds = array<i64: 2>, scalar_prefetch = 0 : i64, scratch_operands = 1 : i64, tpu.core_type = #tpu.core_type<tc>, window_params = [{transform_indices = @transform_0, window_bounds = array<i64: 1, 4, 64>}, {transform_indices = @transform_1, window_bounds = array<i64: 1, 4, 256>}, {pipeline_mode = #tpu.pipeline_mode<synchronous>, transform_indices = @transform_2, window_bounds = array<i64: 64, 256>}, {pipeline_mode = #tpu.pipeline_mode<synchronous>, transform_indices = @transform_3, window_bounds = array<i64: 1, 256>}, {pipeline_mode = #tpu.pipeline_mode<synchronous>, transform_indices = @transform_4, window_bounds = array<i64: 1, 256>}, {pipeline_mode = #tpu.pipeline_mode<synchronous>, transform_indices = @transform_5, window_bounds = array<i64: 4, 4>}, {pipeline_mode = #tpu.pipeline_mode<synchronous>, transform_indices = @transform_6, window_bounds = array<i64: 4, 1>}, {pipeline_mode = #tpu.pipeline_mode<synchronous>, transform_indices = @transform_7, window_bounds = array<i64: 4, 1>}, {pipeline_mode = #tpu.pipeline_mode<synchronous>, transform_indices = @transform_8, window_bounds = array<i64: 4, 1>}, {pipeline_mode = #tpu.pipeline_mode<synchronous>, transform_indices = @transform_9, window_bounds = array<i64: 8, 1>}, {pipeline_mode = #tpu.pipeline_mode<synchronous>, transform_indices = @transform_10, window_bounds = array<i64: 8, 1>}, {pipeline_mode = #tpu.pipeline_mode<synchronous>, transform_indices = @transform_11, window_bounds = array<i64: 9, 4, 8>}, {pipeline_mode = #tpu.pipeline_mode<synchronous>, transform_indices = @transform_12, window_bounds = array<i64: 4, 1>}, {pipeline_mode = #tpu.pipeline_mode<synchronous>, transform_indices = @transform_13, window_bounds = array<i64: 4, 1>}, {pipeline_mode = #tpu.pipeline_mode<synchronous>, transform_indices = @transform_14, window_bounds = array<i64: 4, 1>}, {pipeline_mode = #tpu.pipeline_mode<synchronous>, transform_indices = @transform_15, window_bounds = array<i64: 9, 4, 4>}, {pipeline_mode = #tpu.pipeline_mode<synchronous>, transform_indices = @transform_16, window_bounds = array<i64: 4, 1>}, {pipeline_mode = #tpu.pipeline_mode<synchronous>, transform_indices = @transform_17, window_bounds = array<i64: 4, 1>}, {pipeline_mode = #tpu.pipeline_mode<synchronous>, transform_indices = @transform_18, window_bounds = array<i64: 4, 1>}, {pipeline_mode = #tpu.pipeline_mode<synchronous>, transform_indices = @transform_19, window_bounds = array<i64: 2, 4, 1>}, {transform_indices = @transform_20, window_bounds = array<i64: 1, 4, 256>}]} {
    %cst = arith.constant 0.000000e+00 : f32
    %0 = vector.broadcast %cst : f32 to vector<8x128xf32>
    %c0 = arith.constant 0 : index
    %c0_0 = arith.constant 0 : index
    %1 = vector.load %arg22[%c0, %c0_0] : memref<8x512xf32, #tpu.memory_space<vmem>>, vector<8x128xf32>
    tpu.vector_store %arg22[%c0, %c0_0], %0 {strides = array<i32>} : memref<8x512xf32, #tpu.memory_space<vmem>>, vector<8x128xf32>,
    %cst_1 = arith.constant 0.000000e+00 : f32
    %2 = vector.broadcast %cst_1 : f32 to vector<8x128xf32>
    %c0_2 = arith.constant 0 : index
    %c384 = arith.constant 384 : index
    %3 = vector.load %arg22[%c0_2, %c384] : memref<8x512xf32, #tpu.memory_space<vmem>>, vector<8x128xf32>
    tpu.vector_store %arg22[%c0_2, %c384], %2 {strides = array<i32>} : memref<8x512xf32, #tpu.memory_space<vmem>>, vector<8x128xf32>,
    %c0_3 = arith.constant 0 : index
    %c0_4 = arith.constant 0 : index
    %c0_5 = arith.constant 0 : index
    %4 = vector.load %arg1[%c0_3, %c0_4, %c0_5] : memref<1x4x64xbf16, #tpu.memory_space<vmem>>, vector<1x4x64xbf16>
    %5 = vector.shape_cast %4 : vector<1x4x64xbf16> to vector<4x64xbf16>
    %c0_6 = arith.constant 0 : index
    %c0_7 = arith.constant 0 : index
    %6 = vector.load %arg3[%c0_6, %c0_7] : memref<64x256xbf16, #tpu.memory_space<vmem>>, vector<64x256xbf16>
    %cst_8 = arith.constant dense<0.000000e+00> : vector<4x256xf32>
    %7 = tpu.matmul %5, %6, %cst_8 {dimension_numbers = #tpu.dot_dimension_numbers<[1], [0], [0], [1], [0, 0, 1, 1], [], []>} : vector<4x64xbf16>, vector<64x256xbf16>, vector<4x256xf32> -> vector<4x256xf32>
    %c0_9 = arith.constant 0 : index
    %c0_10 = arith.constant 0 : index
    %8 = vector.load %arg6[%c0_9, %c0_10] : memref<4x4xbf16, #tpu.memory_space<vmem>>, vector<4x4xbf16>
    %c0_11 = arith.constant 0 : index
    %c0_12 = arith.constant 0 : index
    %c0_13 = arith.constant 0 : index
    %9 = vector.load %arg2[%c0_11, %c0_12, %c0_13] : memref<1x4x256xbf16, #tpu.memory_space<vmem>>, vector<1x4x256xbf16>
    %10 = vector.shape_cast %9 : vector<1x4x256xbf16> to vector<4x256xbf16>
    %cst_14 = arith.constant dense<0.000000e+00> : vector<4x256xf32>
    %11 = tpu.matmul %8, %10, %cst_14 {dimension_numbers = #tpu.dot_dimension_numbers<[1], [0], [0], [1], [0, 0, 1, 1], [], []>} : vector<4x4xbf16>, vector<4x256xbf16>, vector<4x256xf32> -> vector<4x256xf32>
    %c0_15 = arith.constant 0 : index
    %c0_16 = arith.constant 0 : index
    %12 = vector.load %arg7[%c0_15, %c0_16] : memref<4x1xf32, #tpu.memory_space<vmem>>, vector<4x1xf32>
    %13 = vector.broadcast %12 : vector<4x1xf32> to vector<4x256xf32>
    %14 = arith.addf %11, %13 : vector<4x256xf32>
    %cst_17 = arith.constant dense<0.000000e+00> : vector<4xf32>
    %15 = vector.multi_reduction <add>, %14, %cst_17 [1] : vector<4x256xf32> to vector<4xf32>
    %16 = vector.shape_cast %15 : vector<4xf32> to vector<4x1xf32>
    %cst_18 = arith.constant dense<0.000000e+00> : vector<1xf32>
    %17 = vector.multi_reduction <add>, %16, %cst_18 [0] : vector<4x1xf32> to vector<1xf32>
    %18 = vector.shape_cast %17 : vector<1xf32> to vector<1x1xf32>
    %cst_19 = arith.constant 9.765625E-4 : f32
    %19 = vector.broadcast %cst_19 : f32 to vector<1x1xf32>
    %20 = arith.mulf %18, %19 : vector<1x1xf32>
    %21 = arith.mulf %14, %14 : vector<4x256xf32>
    %cst_20 = arith.constant dense<0.000000e+00> : vector<4xf32>
    %22 = vector.multi_reduction <add>, %21, %cst_20 [1] : vector<4x256xf32> to vector<4xf32>
    %23 = vector.shape_cast %22 : vector<4xf32> to vector<4x1xf32>
    %cst_21 = arith.constant dense<0.000000e+00> : vector<1xf32>
    %24 = vector.multi_reduction <add>, %23, %cst_21 [0] : vector<4x1xf32> to vector<1xf32>
    %25 = vector.shape_cast %24 : vector<1xf32> to vector<1x1xf32>
    %cst_22 = arith.constant 9.765625E-4 : f32
    %26 = vector.broadcast %cst_22 : f32 to vector<1x1xf32>
    %27 = arith.mulf %25, %26 : vector<1x1xf32>
    %28 = arith.mulf %20, %20 : vector<1x1xf32>
    %29 = arith.subf %27, %28 : vector<1x1xf32>
    %cst_23 = arith.constant 9.99999974E-6 : f32
    %30 = vector.broadcast %cst_23 : f32 to vector<1x1xf32>
    %31 = arith.addf %29, %30 : vector<1x1xf32>
    %32 = math.rsqrt %31 : vector<1x1xf32>
    %33 = vector.broadcast %20 : vector<1x1xf32> to vector<4x256xf32>
    %34 = arith.subf %14, %33 : vector<4x256xf32>
    %35 = vector.broadcast %32 : vector<1x1xf32> to vector<4x256xf32>
    %36 = arith.mulf %34, %35 : vector<4x256xf32>
    %c0_24 = arith.constant 0 : index
    %c0_25 = arith.constant 0 : index
    %37 = vector.load %arg8[%c0_24, %c0_25] : memref<4x1xf32, #tpu.memory_space<vmem>>, vector<4x1xf32>
    %38 = vector.broadcast %37 : vector<4x1xf32> to vector<4x256xf32>
    %39 = arith.mulf %36, %38 : vector<4x256xf32>
    %c0_26 = arith.constant 0 : index
    %c0_27 = arith.constant 0 : index
    %40 = vector.load %arg9[%c0_26, %c0_27] : memref<4x1xf32, #tpu.memory_space<vmem>>, vector<4x1xf32>
    %41 = vector.broadcast %40 : vector<4x1xf32> to vector<4x256xf32>
    %42 = arith.addf %39, %41 : vector<4x256xf32>
    %cst_28 = arith.constant 0.000000e+00 : f32
    %43 = vector.broadcast %cst_28 : f32 to vector<4x256xf32>
    %44 = arith.cmpf oge, %42, %43 : vector<4x256xf32>
    %cst_29 = arith.constant 2.000000e-01 : f32
    %45 = vector.broadcast %cst_29 : f32 to vector<4x256xf32>
    %46 = arith.mulf %45, %42 : vector<4x256xf32>
    %47 = arith.select %44, %42, %46 : vector<4x256xi1>, vector<4x256xf32>
    %cst_30 = arith.constant dense<0.000000e+00> : vector<4xf32>
    %48 = vector.multi_reduction <add>, %7, %cst_30 [1] : vector<4x256xf32> to vector<4xf32>
    %49 = vector.shape_cast %48 : vector<4xf32> to vector<4x1xf32>
    %cst_31 = arith.constant dense<0.000000e+00> : vector<1xf32>
    %50 = vector.multi_reduction <add>, %49, %cst_31 [0] : vector<4x1xf32> to vector<1xf32>
    %51 = vector.shape_cast %50 : vector<1xf32> to vector<1x1xf32>
    %cst_32 = arith.constant dense<0.000000e+00> : vector<4xf32>
    %52 = vector.multi_reduction <add>, %47, %cst_32 [1] : vector<4x256xf32> to vector<4xf32>
    %53 = vector.shape_cast %52 : vector<4xf32> to vector<4x1xf32>
    %cst_33 = arith.constant dense<0.000000e+00> : vector<1xf32>
    %54 = vector.multi_reduction <add>, %53, %cst_33 [0] : vector<4x1xf32> to vector<1xf32>
    %55 = vector.shape_cast %54 : vector<1xf32> to vector<1x1xf32>
    %56 = arith.addf %51, %55 : vector<1x1xf32>
    %cst_34 = arith.constant 4.8828125E-4 : f32
    %57 = vector.broadcast %cst_34 : f32 to vector<1x1xf32>
    %58 = arith.mulf %56, %57 : vector<1x1xf32>
    %59 = arith.mulf %7, %7 : vector<4x256xf32>
    %cst_35 = arith.constant dense<0.000000e+00> : vector<4xf32>
    %60 = vector.multi_reduction <add>, %59, %cst_35 [1] : vector<4x256xf32> to vector<4xf32>
    %61 = vector.shape_cast %60 : vector<4xf32> to vector<4x1xf32>
    %cst_36 = arith.constant dense<0.000000e+00> : vector<1xf32>
    %62 = vector.multi_reduction <add>, %61, %cst_36 [0] : vector<4x1xf32> to vector<1xf32>
    %63 = vector.shape_cast %62 : vector<1xf32> to vector<1x1xf32>
    %64 = arith.mulf %47, %47 : vector<4x256xf32>
    %cst_37 = arith.constant dense<0.000000e+00> : vector<4xf32>
    %65 = vector.multi_reduction <add>, %64, %cst_37 [1] : vector<4x256xf32> to vector<4xf32>
    %66 = vector.shape_cast %65 : vector<4xf32> to vector<4x1xf32>
    %cst_38 = arith.constant dense<0.000000e+00> : vector<1xf32>
    %67 = vector.multi_reduction <add>, %66, %cst_38 [0] : vector<4x1xf32> to vector<1xf32>
    %68 = vector.shape_cast %67 : vector<1xf32> to vector<1x1xf32>
    %69 = arith.addf %63, %68 : vector<1x1xf32>
    %cst_39 = arith.constant 4.8828125E-4 : f32
    %70 = vector.broadcast %cst_39 : f32 to vector<1x1xf32>
    %71 = arith.mulf %69, %70 : vector<1x1xf32>
    %72 = arith.mulf %58, %58 : vector<1x1xf32>
    %73 = arith.subf %71, %72 : vector<1x1xf32>
    %cst_40 = arith.constant 9.99999974E-6 : f32
    %74 = vector.broadcast %cst_40 : f32 to vector<1x1xf32>
    %75 = arith.addf %73, %74 : vector<1x1xf32>
    %76 = math.rsqrt %75 : vector<1x1xf32>
    %77 = vector.broadcast %58 : vector<1x1xf32> to vector<4x256xf32>
    %78 = arith.subf %7, %77 : vector<4x256xf32>
    %79 = vector.broadcast %76 : vector<1x1xf32> to vector<4x256xf32>
    %80 = arith.mulf %78, %79 : vector<4x256xf32>
    %c0_41 = arith.constant 0 : index
    %c0_42 = arith.constant 0 : index
    %81 = vector.load %arg10[%c0_41, %c0_42] : memref<8x1xf32, #tpu.memory_space<vmem>>, vector<4x1xf32>
    %82 = vector.broadcast %81 : vector<4x1xf32> to vector<4x256xf32>
    %83 = arith.mulf %80, %82 : vector<4x256xf32>
    %c0_43 = arith.constant 0 : index
    %c0_44 = arith.constant 0 : index
    %84 = vector.load %arg11[%c0_43, %c0_44] : memref<8x1xf32, #tpu.memory_space<vmem>>, vector<4x1xf32>
    %85 = vector.broadcast %84 : vector<4x1xf32> to vector<4x256xf32>
    %86 = arith.addf %83, %85 : vector<4x256xf32>
    %c0_45 = arith.constant 0 : index
    %c128 = arith.constant 128 : index
    %87 = vector.load %arg22[%c0_45, %c128] : memref<8x512xf32, #tpu.memory_space<vmem>>, vector<4x256xf32>
    tpu.vector_store %arg22[%c0_45, %c128], %86 {strides = array<i32>} : memref<8x512xf32, #tpu.memory_space<vmem>>, vector<4x256xf32>,
    %88 = vector.broadcast %58 : vector<1x1xf32> to vector<4x256xf32>
    %89 = arith.subf %47, %88 : vector<4x256xf32>
    %90 = vector.broadcast %76 : vector<1x1xf32> to vector<4x256xf32>
    %91 = arith.mulf %89, %90 : vector<4x256xf32>
    %c4 = arith.constant 4 : index
    %c0_46 = arith.constant 0 : index
    %92 = vector.load %arg10[%c4, %c0_46] : memref<8x1xf32, #tpu.memory_space<vmem>>, vector<4x1xf32>
    %93 = vector.broadcast %92 : vector<4x1xf32> to vector<4x256xf32>
    %94 = arith.mulf %91, %93 : vector<4x256xf32>
    %c4_47 = arith.constant 4 : index
    %c0_48 = arith.constant 0 : index
    %95 = vector.load %arg11[%c4_47, %c0_48] : memref<8x1xf32, #tpu.memory_space<vmem>>, vector<4x1xf32>
    %96 = vector.broadcast %95 : vector<4x1xf32> to vector<4x256xf32>
    %97 = arith.addf %94, %96 : vector<4x256xf32>
    %c4_49 = arith.constant 4 : index
    %c128_50 = arith.constant 128 : index
    %98 = vector.load %arg22[%c4_49, %c128_50] : memref<8x512xf32, #tpu.memory_space<vmem>>, vector<4x256xf32>
    tpu.vector_store %arg22[%c4_49, %c128_50], %97 {strides = array<i32>} : memref<8x512xf32, #tpu.memory_space<vmem>>, vector<4x256xf32>,
    %c0_51 = arith.constant 0 : index
    %c111 = arith.constant 111 : index
    %99 = vector.load %arg22[%c0_51, %c111] : memref<8x512xf32, #tpu.memory_space<vmem>>, vector<8x256xf32>
    %c0_52 = arith.constant 0 : index
    %c0_53 = arith.constant 0 : index
    %100 = vector.load %arg4[%c0_52, %c0_53] : memref<1x256xf32, #tpu.memory_space<vmem>>, vector<1x256xf32>
    %101 = vector.broadcast %100 : vector<1x256xf32> to vector<8x256xf32>
    %102 = arith.mulf %99, %101 : vector<8x256xf32>
    %c0_54 = arith.constant 0 : index
    %c0_55 = arith.constant 0 : index
    %c0_56 = arith.constant 0 : index
    %103 = vector.load %arg12[%c0_54, %c0_55, %c0_56] : memref<9x4x8xbf16, #tpu.memory_space<vmem>>, vector<1x4x8xbf16>
    %104 = vector.shape_cast %103 : vector<1x4x8xbf16> to vector<4x8xbf16>
    %105 = arith.truncf %102 : vector<8x256xf32> to vector<8x256xbf16>
    %cst_57 = arith.constant dense<0.000000e+00> : vector<4x256xf32>
    %106 = tpu.matmul %104, %105, %cst_57 {dimension_numbers = #tpu.dot_dimension_numbers<[1], [0], [0], [1], [0, 0, 1, 1], [], []>} : vector<4x8xbf16>, vector<8x256xbf16>, vector<4x256xf32> -> vector<4x256xf32>
    %c0_58 = arith.constant 0 : index
    %c112 = arith.constant 112 : index
    %107 = vector.load %arg22[%c0_58, %c112] : memref<8x512xf32, #tpu.memory_space<vmem>>, vector<8x256xf32>
    %c1 = arith.constant 1 : index
    %c0_59 = arith.constant 0 : index
    %c0_60 = arith.constant 0 : index
    %108 = vector.load %arg12[%c1, %c0_59, %c0_60] : memref<9x4x8xbf16, #tpu.memory_space<vmem>>, vector<1x4x8xbf16>
    %109 = vector.shape_cast %108 : vector<1x4x8xbf16> to vector<4x8xbf16>
    %110 = arith.truncf %107 : vector<8x256xf32> to vector<8x256xbf16>
    %cst_61 = arith.constant dense<0.000000e+00> : vector<4x256xf32>
    %111 = tpu.matmul %109, %110, %cst_61 {dimension_numbers = #tpu.dot_dimension_numbers<[1], [0], [0], [1], [0, 0, 1, 1], [], []>} : vector<4x8xbf16>, vector<8x256xbf16>, vector<4x256xf32> -> vector<4x256xf32>
    %112 = arith.addf %106, %111 : vector<4x256xf32>
    %c0_62 = arith.constant 0 : index
    %c113 = arith.constant 113 : index
    %113 = vector.load %arg22[%c0_62, %c113] : memref<8x512xf32, #tpu.memory_space<vmem>>, vector<8x256xf32>
    %c0_63 = arith.constant 0 : index
    %c0_64 = arith.constant 0 : index
    %114 = vector.load %arg5[%c0_63, %c0_64] : memref<1x256xf32, #tpu.memory_space<vmem>>, vector<1x256xf32>
    %115 = vector.broadcast %114 : vector<1x256xf32> to vector<8x256xf32>
    %116 = arith.mulf %113, %115 : vector<8x256xf32>
    %c2 = arith.constant 2 : index
    %c0_65 = arith.constant 0 : index
    %c0_66 = arith.constant 0 : index
    %117 = vector.load %arg12[%c2, %c0_65, %c0_66] : memref<9x4x8xbf16, #tpu.memory_space<vmem>>, vector<1x4x8xbf16>
    %118 = vector.shape_cast %117 : vector<1x4x8xbf16> to vector<4x8xbf16>
    %119 = arith.truncf %116 : vector<8x256xf32> to vector<8x256xbf16>
    %cst_67 = arith.constant dense<0.000000e+00> : vector<4x256xf32>
    %120 = tpu.matmul %118, %119, %cst_67 {dimension_numbers = #tpu.dot_dimension_numbers<[1], [0], [0], [1], [0, 0, 1, 1], [], []>} : vector<4x8xbf16>, vector<8x256xbf16>, vector<4x256xf32> -> vector<4x256xf32>
    %121 = arith.addf %112, %120 : vector<4x256xf32>
    %c0_68 = arith.constant 0 : index
    %c127 = arith.constant 127 : index
    %122 = vector.load %arg22[%c0_68, %c127] : memref<8x512xf32, #tpu.memory_space<vmem>>, vector<8x256xf32>
    %c0_69 = arith.constant 0 : index
    %c0_70 = arith.constant 0 : index
    %123 = vector.load %arg4[%c0_69, %c0_70] : memref<1x256xf32, #tpu.memory_space<vmem>>, vector<1x256xf32>
    %124 = vector.broadcast %123 : vector<1x256xf32> to vector<8x256xf32>
    %125 = arith.mulf %122, %124 : vector<8x256xf32>
    %c3 = arith.constant 3 : index
    %c0_71 = arith.constant 0 : index
    %c0_72 = arith.constant 0 : index
    %126 = vector.load %arg12[%c3, %c0_71, %c0_72] : memref<9x4x8xbf16, #tpu.memory_space<vmem>>, vector<1x4x8xbf16>
    %127 = vector.shape_cast %126 : vector<1x4x8xbf16> to vector<4x8xbf16>
    %128 = arith.truncf %125 : vector<8x256xf32> to vector<8x256xbf16>
    %cst_73 = arith.constant dense<0.000000e+00> : vector<4x256xf32>
    %129 = tpu.matmul %127, %128, %cst_73 {dimension_numbers = #tpu.dot_dimension_numbers<[1], [0], [0], [1], [0, 0, 1, 1], [], []>} : vector<4x8xbf16>, vector<8x256xbf16>, vector<4x256xf32> -> vector<4x256xf32>
    %130 = arith.addf %121, %129 : vector<4x256xf32>
    %c0_74 = arith.constant 0 : index
    %c128_75 = arith.constant 128 : index
    %131 = vector.load %arg22[%c0_74, %c128_75] : memref<8x512xf32, #tpu.memory_space<vmem>>, vector<8x256xf32>
    %c4_76 = arith.constant 4 : index
    %c0_77 = arith.constant 0 : index
    %c0_78 = arith.constant 0 : index
    %132 = vector.load %arg12[%c4_76, %c0_77, %c0_78] : memref<9x4x8xbf16, #tpu.memory_space<vmem>>, vector<1x4x8xbf16>
    %133 = vector.shape_cast %132 : vector<1x4x8xbf16> to vector<4x8xbf16>
    %134 = arith.truncf %131 : vector<8x256xf32> to vector<8x256xbf16>
    %cst_79 = arith.constant dense<0.000000e+00> : vector<4x256xf32>
    %135 = tpu.matmul %133, %134, %cst_79 {dimension_numbers = #tpu.dot_dimension_numbers<[1], [0], [0], [1], [0, 0, 1, 1], [], []>} : vector<4x8xbf16>, vector<8x256xbf16>, vector<4x256xf32> -> vector<4x256xf32>
    %136 = arith.addf %130, %135 : vector<4x256xf32>
    %c0_80 = arith.constant 0 : index
    %c129 = arith.constant 129 : index
    %137 = vector.load %arg22[%c0_80, %c129] : memref<8x512xf32, #tpu.memory_space<vmem>>, vector<8x256xf32>
    %c0_81 = arith.constant 0 : index
    %c0_82 = arith.constant 0 : index
    %138 = vector.load %arg5[%c0_81, %c0_82] : memref<1x256xf32, #tpu.memory_space<vmem>>, vector<1x256xf32>
    %139 = vector.broadcast %138 : vector<1x256xf32> to vector<8x256xf32>
    %140 = arith.mulf %137, %139 : vector<8x256xf32>
    %c5 = arith.constant 5 : index
    %c0_83 = arith.constant 0 : index
    %c0_84 = arith.constant 0 : index
    %141 = vector.load %arg12[%c5, %c0_83, %c0_84] : memref<9x4x8xbf16, #tpu.memory_space<vmem>>, vector<1x4x8xbf16>
    %142 = vector.shape_cast %141 : vector<1x4x8xbf16> to vector<4x8xbf16>
    %143 = arith.truncf %140 : vector<8x256xf32> to vector<8x256xbf16>
    %cst_85 = arith.constant dense<0.000000e+00> : vector<4x256xf32>
    %144 = tpu.matmul %142, %143, %cst_85 {dimension_numbers = #tpu.dot_dimension_numbers<[1], [0], [0], [1], [0, 0, 1, 1], [], []>} : vector<4x8xbf16>, vector<8x256xbf16>, vector<4x256xf32> -> vector<4x256xf32>
    %145 = arith.addf %136, %144 : vector<4x256xf32>
    %c0_86 = arith.constant 0 : index
    %c143 = arith.constant 143 : index
    %146 = vector.load %arg22[%c0_86, %c143] : memref<8x512xf32, #tpu.memory_space<vmem>>, vector<8x256xf32>
    %c0_87 = arith.constant 0 : index
    %c0_88 = arith.constant 0 : index
    %147 = vector.load %arg4[%c0_87, %c0_88] : memref<1x256xf32, #tpu.memory_space<vmem>>, vector<1x256xf32>
    %148 = vector.broadcast %147 : vector<1x256xf32> to vector<8x256xf32>
    %149 = arith.mulf %146, %148 : vector<8x256xf32>
    %c6 = arith.constant 6 : index
    %c0_89 = arith.constant 0 : index
    %c0_90 = arith.constant 0 : index
    %150 = vector.load %arg12[%c6, %c0_89, %c0_90] : memref<9x4x8xbf16, #tpu.memory_space<vmem>>, vector<1x4x8xbf16>
    %151 = vector.shape_cast %150 : vector<1x4x8xbf16> to vector<4x8xbf16>
    %152 = arith.truncf %149 : vector<8x256xf32> to vector<8x256xbf16>
    %cst_91 = arith.constant dense<0.000000e+00> : vector<4x256xf32>
    %153 = tpu.matmul %151, %152, %cst_91 {dimension_numbers = #tpu.dot_dimension_numbers<[1], [0], [0], [1], [0, 0, 1, 1], [], []>} : vector<4x8xbf16>, vector<8x256xbf16>, vector<4x256xf32> -> vector<4x256xf32>
    %154 = arith.addf %145, %153 : vector<4x256xf32>
    %c0_92 = arith.constant 0 : index
    %c144 = arith.constant 144 : index
    %155 = vector.load %arg22[%c0_92, %c144] : memref<8x512xf32, #tpu.memory_space<vmem>>, vector<8x256xf32>
    %c7 = arith.constant 7 : index
    %c0_93 = arith.constant 0 : index
    %c0_94 = arith.constant 0 : index
    %156 = vector.load %arg12[%c7, %c0_93, %c0_94] : memref<9x4x8xbf16, #tpu.memory_space<vmem>>, vector<1x4x8xbf16>
    %157 = vector.shape_cast %156 : vector<1x4x8xbf16> to vector<4x8xbf16>
    %158 = arith.truncf %155 : vector<8x256xf32> to vector<8x256xbf16>
    %cst_95 = arith.constant dense<0.000000e+00> : vector<4x256xf32>
    %159 = tpu.matmul %157, %158, %cst_95 {dimension_numbers = #tpu.dot_dimension_numbers<[1], [0], [0], [1], [0, 0, 1, 1], [], []>} : vector<4x8xbf16>, vector<8x256xbf16>, vector<4x256xf32> -> vector<4x256xf32>
    %160 = arith.addf %154, %159 : vector<4x256xf32>
    %c0_96 = arith.constant 0 : index
    %c145 = arith.constant 145 : index
    %161 = vector.load %arg22[%c0_96, %c145] : memref<8x512xf32, #tpu.memory_space<vmem>>, vector<8x256xf32>
    %c0_97 = arith.constant 0 : index
    %c0_98 = arith.constant 0 : index
    %162 = vector.load %arg5[%c0_97, %c0_98] : memref<1x256xf32, #tpu.memory_space<vmem>>, vector<1x256xf32>
    %163 = vector.broadcast %162 : vector<1x256xf32> to vector<8x256xf32>
    %164 = arith.mulf %161, %163 : vector<8x256xf32>
    %c8 = arith.constant 8 : index
    %c0_99 = arith.constant 0 : index
    %c0_100 = arith.constant 0 : index
    %165 = vector.load %arg12[%c8, %c0_99, %c0_100] : memref<9x4x8xbf16, #tpu.memory_space<vmem>>, vector<1x4x8xbf16>
    %166 = vector.shape_cast %165 : vector<1x4x8xbf16> to vector<4x8xbf16>
    %167 = arith.truncf %164 : vector<8x256xf32> to vector<8x256xbf16>
    %cst_101 = arith.constant dense<0.000000e+00> : vector<4x256xf32>
    %168 = tpu.matmul %166, %167, %cst_101 {dimension_numbers = #tpu.dot_dimension_numbers<[1], [0], [0], [1], [0, 0, 1, 1], [], []>} : vector<4x8xbf16>, vector<8x256xbf16>, vector<4x256xf32> -> vector<4x256xf32>
    %169 = arith.addf %160, %168 : vector<4x256xf32>
    %c0_102 = arith.constant 0 : index
    %c0_103 = arith.constant 0 : index
    %170 = vector.load %arg13[%c0_102, %c0_103] : memref<4x1xf32, #tpu.memory_space<vmem>>, vector<4x1xf32>
    %171 = vector.broadcast %170 : vector<4x1xf32> to vector<4x256xf32>
    %172 = arith.addf %169, %171 : vector<4x256xf32>
    %cst_104 = arith.constant dense<0.000000e+00> : vector<4xf32>
    %173 = vector.multi_reduction <add>, %172, %cst_104 [1] : vector<4x256xf32> to vector<4xf32>
    %174 = vector.shape_cast %173 : vector<4xf32> to vector<4x1xf32>
    %175 = arith.mulf %172, %172 : vector<4x256xf32>
    %cst_105 = arith.constant dense<0.000000e+00> : vector<4xf32>
    %176 = vector.multi_reduction <add>, %175, %cst_105 [1] : vector<4x256xf32> to vector<4xf32>
    %177 = vector.shape_cast %176 : vector<4xf32> to vector<4x1xf32>
    %cst_106 = arith.constant 0.000000e+00 : f32
    %178 = vector.broadcast %cst_106 : f32 to vector<4x1xf32>
    %cst_107 = arith.constant 0.000000e+00 : f32
    %179 = vector.broadcast %cst_107 : f32 to vector<4x1xf32>
    %c0_108 = arith.constant 0 : index
    %c0_109 = arith.constant 0 : index
    %c0_110 = arith.constant 0 : index
    %180 = vector.load %arg20[%c0_108, %c0_109, %c0_110] : memref<2x4x1xf32, #tpu.memory_space<vmem>>, vector<1x4x1xf32>
    %181 = vector.shape_cast %180 : vector<1x4x1xf32> to vector<4x1xf32>
    %182 = arith.mulf %181, %174 : vector<4x1xf32>
    %cst_111 = arith.constant dense<0.000000e+00> : vector<4xf32>
    %183 = vector.multi_reduction <add>, %182, %cst_111 [1] : vector<4x1xf32> to vector<4xf32>
    %184 = vector.shape_cast %183 : vector<4xf32> to vector<4x1xf32>
    %cst_112 = arith.constant dense<0.000000e+00> : vector<1xf32>
    %185 = vector.multi_reduction <add>, %184, %cst_112 [0] : vector<4x1xf32> to vector<1xf32>
    %186 = vector.shape_cast %185 : vector<1xf32> to vector<1x1xf32>
    %cst_113 = arith.constant 0.001953125 : f32
    %187 = vector.broadcast %cst_113 : f32 to vector<1x1xf32>
    %188 = arith.mulf %186, %187 : vector<1x1xf32>
    %189 = arith.mulf %181, %177 : vector<4x1xf32>
    %cst_114 = arith.constant dense<0.000000e+00> : vector<4xf32>
    %190 = vector.multi_reduction <add>, %189, %cst_114 [1] : vector<4x1xf32> to vector<4xf32>
    %191 = vector.shape_cast %190 : vector<4xf32> to vector<4x1xf32>
    %cst_115 = arith.constant dense<0.000000e+00> : vector<1xf32>
    %192 = vector.multi_reduction <add>, %191, %cst_115 [0] : vector<4x1xf32> to vector<1xf32>
    %193 = vector.shape_cast %192 : vector<1xf32> to vector<1x1xf32>
    %cst_116 = arith.constant 0.001953125 : f32
    %194 = vector.broadcast %cst_116 : f32 to vector<1x1xf32>
    %195 = arith.mulf %193, %194 : vector<1x1xf32>
    %196 = arith.mulf %188, %188 : vector<1x1xf32>
    %197 = arith.subf %195, %196 : vector<1x1xf32>
    %198 = vector.broadcast %188 : vector<1x1xf32> to vector<4x1xf32>
    %199 = arith.mulf %181, %198 : vector<4x1xf32>
    %200 = arith.addf %178, %199 : vector<4x1xf32>
    %cst_117 = arith.constant 9.99999974E-6 : f32
    %201 = vector.broadcast %cst_117 : f32 to vector<1x1xf32>
    %202 = arith.addf %197, %201 : vector<1x1xf32>
    %203 = math.rsqrt %202 : vector<1x1xf32>
    %204 = vector.broadcast %203 : vector<1x1xf32> to vector<4x1xf32>
    %205 = arith.mulf %181, %204 : vector<4x1xf32>
    %206 = arith.addf %179, %205 : vector<4x1xf32>
    %c1_118 = arith.constant 1 : index
    %c0_119 = arith.constant 0 : index
    %c0_120 = arith.constant 0 : index
    %207 = vector.load %arg20[%c1_118, %c0_119, %c0_120] : memref<2x4x1xf32, #tpu.memory_space<vmem>>, vector<1x4x1xf32>
    %208 = vector.shape_cast %207 : vector<1x4x1xf32> to vector<4x1xf32>
    %209 = arith.mulf %208, %174 : vector<4x1xf32>
    %cst_121 = arith.constant dense<0.000000e+00> : vector<4xf32>
    %210 = vector.multi_reduction <add>, %209, %cst_121 [1] : vector<4x1xf32> to vector<4xf32>
    %211 = vector.shape_cast %210 : vector<4xf32> to vector<4x1xf32>
    %cst_122 = arith.constant dense<0.000000e+00> : vector<1xf32>
    %212 = vector.multi_reduction <add>, %211, %cst_122 [0] : vector<4x1xf32> to vector<1xf32>
    %213 = vector.shape_cast %212 : vector<1xf32> to vector<1x1xf32>
    %cst_123 = arith.constant 0.001953125 : f32
    %214 = vector.broadcast %cst_123 : f32 to vector<1x1xf32>
    %215 = arith.mulf %213, %214 : vector<1x1xf32>
    %216 = arith.mulf %208, %177 : vector<4x1xf32>
    %cst_124 = arith.constant dense<0.000000e+00> : vector<4xf32>
    %217 = vector.multi_reduction <add>, %216, %cst_124 [1] : vector<4x1xf32> to vector<4xf32>
    %218 = vector.shape_cast %217 : vector<4xf32> to vector<4x1xf32>
    %cst_125 = arith.constant dense<0.000000e+00> : vector<1xf32>
    %219 = vector.multi_reduction <add>, %218, %cst_125 [0] : vector<4x1xf32> to vector<1xf32>
    %220 = vector.shape_cast %219 : vector<1xf32> to vector<1x1xf32>
    %cst_126 = arith.constant 0.001953125 : f32
    %221 = vector.broadcast %cst_126 : f32 to vector<1x1xf32>
    %222 = arith.mulf %220, %221 : vector<1x1xf32>
    %223 = arith.mulf %215, %215 : vector<1x1xf32>
    %224 = arith.subf %222, %223 : vector<1x1xf32>
    %225 = vector.broadcast %215 : vector<1x1xf32> to vector<4x1xf32>
    %226 = arith.mulf %208, %225 : vector<4x1xf32>
    %227 = arith.addf %200, %226 : vector<4x1xf32>
    %cst_127 = arith.constant 9.99999974E-6 : f32
    %228 = vector.broadcast %cst_127 : f32 to vector<1x1xf32>
    %229 = arith.addf %224, %228 : vector<1x1xf32>
    %230 = math.rsqrt %229 : vector<1x1xf32>
    %231 = vector.broadcast %230 : vector<1x1xf32> to vector<4x1xf32>
    %232 = arith.mulf %208, %231 : vector<4x1xf32>
    %233 = arith.addf %206, %232 : vector<4x1xf32>
    %234 = vector.broadcast %227 : vector<4x1xf32> to vector<4x256xf32>
    %235 = arith.subf %172, %234 : vector<4x256xf32>
    %236 = vector.broadcast %233 : vector<4x1xf32> to vector<4x256xf32>
    %237 = arith.mulf %235, %236 : vector<4x256xf32>
    %c0_128 = arith.constant 0 : index
    %c0_129 = arith.constant 0 : index
    %238 = vector.load %arg14[%c0_128, %c0_129] : memref<4x1xf32, #tpu.memory_space<vmem>>, vector<4x1xf32>
    %239 = vector.broadcast %238 : vector<4x1xf32> to vector<4x256xf32>
    %240 = arith.mulf %237, %239 : vector<4x256xf32>
    %c0_130 = arith.constant 0 : index
    %c0_131 = arith.constant 0 : index
    %241 = vector.load %arg15[%c0_130, %c0_131] : memref<4x1xf32, #tpu.memory_space<vmem>>, vector<4x1xf32>
    %242 = vector.broadcast %241 : vector<4x1xf32> to vector<4x256xf32>
    %243 = arith.addf %240, %242 : vector<4x256xf32>
    %cst_132 = arith.constant 0.000000e+00 : f32
    %244 = vector.broadcast %cst_132 : f32 to vector<4x256xf32>
    %245 = arith.cmpf oge, %243, %244 : vector<4x256xf32>
    %cst_133 = arith.constant 2.000000e-01 : f32
    %246 = vector.broadcast %cst_133 : f32 to vector<4x256xf32>
    %247 = arith.mulf %246, %243 : vector<4x256xf32>
    %248 = arith.select %245, %243, %247 : vector<4x256xi1>, vector<4x256xf32>
    %c0_134 = arith.constant 0 : index
    %c128_135 = arith.constant 128 : index
    %249 = vector.load %arg22[%c0_134, %c128_135] : memref<8x512xf32, #tpu.memory_space<vmem>>, vector<4x256xf32>
    tpu.vector_store %arg22[%c0_134, %c128_135], %248 {strides = array<i32>} : memref<8x512xf32, #tpu.memory_space<vmem>>, vector<4x256xf32>,
    %c0_136 = arith.constant 0 : index
    %c111_137 = arith.constant 111 : index
    %250 = vector.load %arg22[%c0_136, %c111_137] : memref<8x512xf32, #tpu.memory_space<vmem>>, vector<4x256xf32>
    %c0_138 = arith.constant 0 : index
    %c0_139 = arith.constant 0 : index
    %251 = vector.load %arg4[%c0_138, %c0_139] : memref<1x256xf32, #tpu.memory_space<vmem>>, vector<1x256xf32>
    %252 = vector.broadcast %251 : vector<1x256xf32> to vector<4x256xf32>
    %253 = arith.mulf %250, %252 : vector<4x256xf32>
    %c0_140 = arith.constant 0 : index
    %c0_141 = arith.constant 0 : index
    %c0_142 = arith.constant 0 : index
    %254 = vector.load %arg16[%c0_140, %c0_141, %c0_142] : memref<9x4x4xbf16, #tpu.memory_space<vmem>>, vector<1x4x4xbf16>
    %255 = vector.shape_cast %254 : vector<1x4x4xbf16> to vector<4x4xbf16>
    %256 = arith.truncf %253 : vector<4x256xf32> to vector<4x256xbf16>
    %cst_143 = arith.constant dense<0.000000e+00> : vector<4x256xf32>
    %257 = tpu.matmul %255, %256, %cst_143 {dimension_numbers = #tpu.dot_dimension_numbers<[1], [0], [0], [1], [0, 0, 1, 1], [], []>} : vector<4x4xbf16>, vector<4x256xbf16>, vector<4x256xf32> -> vector<4x256xf32>
    %c0_144 = arith.constant 0 : index
    %c112_145 = arith.constant 112 : index
    %258 = vector.load %arg22[%c0_144, %c112_145] : memref<8x512xf32, #tpu.memory_space<vmem>>, vector<4x256xf32>
    %c1_146 = arith.constant 1 : index
    %c0_147 = arith.constant 0 : index
    %c0_148 = arith.constant 0 : index
    %259 = vector.load %arg16[%c1_146, %c0_147, %c0_148] : memref<9x4x4xbf16, #tpu.memory_space<vmem>>, vector<1x4x4xbf16>
    %260 = vector.shape_cast %259 : vector<1x4x4xbf16> to vector<4x4xbf16>
    %261 = arith.truncf %258 : vector<4x256xf32> to vector<4x256xbf16>
    %cst_149 = arith.constant dense<0.000000e+00> : vector<4x256xf32>
    %262 = tpu.matmul %260, %261, %cst_149 {dimension_numbers = #tpu.dot_dimension_numbers<[1], [0], [0], [1], [0, 0, 1, 1], [], []>} : vector<4x4xbf16>, vector<4x256xbf16>, vector<4x256xf32> -> vector<4x256xf32>
    %263 = arith.addf %257, %262 : vector<4x256xf32>
    %c0_150 = arith.constant 0 : index
    %c113_151 = arith.constant 113 : index
    %264 = vector.load %arg22[%c0_150, %c113_151] : memref<8x512xf32, #tpu.memory_space<vmem>>, vector<4x256xf32>
    %c0_152 = arith.constant 0 : index
    %c0_153 = arith.constant 0 : index
    %265 = vector.load %arg5[%c0_152, %c0_153] : memref<1x256xf32, #tpu.memory_space<vmem>>, vector<1x256xf32>
    %266 = vector.broadcast %265 : vector<1x256xf32> to vector<4x256xf32>
    %267 = arith.mulf %264, %266 : vector<4x256xf32>
    %c2_154 = arith.constant 2 : index
    %c0_155 = arith.constant 0 : index
    %c0_156 = arith.constant 0 : index
    %268 = vector.load %arg16[%c2_154, %c0_155, %c0_156] : memref<9x4x4xbf16, #tpu.memory_space<vmem>>, vector<1x4x4xbf16>
    %269 = vector.shape_cast %268 : vector<1x4x4xbf16> to vector<4x4xbf16>
    %270 = arith.truncf %267 : vector<4x256xf32> to vector<4x256xbf16>
    %cst_157 = arith.constant dense<0.000000e+00> : vector<4x256xf32>
    %271 = tpu.matmul %269, %270, %cst_157 {dimension_numbers = #tpu.dot_dimension_numbers<[1], [0], [0], [1], [0, 0, 1, 1], [], []>} : vector<4x4xbf16>, vector<4x256xbf16>, vector<4x256xf32> -> vector<4x256xf32>
    %272 = arith.addf %263, %271 : vector<4x256xf32>
    %c0_158 = arith.constant 0 : index
    %c127_159 = arith.constant 127 : index
    %273 = vector.load %arg22[%c0_158, %c127_159] : memref<8x512xf32, #tpu.memory_space<vmem>>, vector<4x256xf32>
    %c0_160 = arith.constant 0 : index
    %c0_161 = arith.constant 0 : index
    %274 = vector.load %arg4[%c0_160, %c0_161] : memref<1x256xf32, #tpu.memory_space<vmem>>, vector<1x256xf32>
    %275 = vector.broadcast %274 : vector<1x256xf32> to vector<4x256xf32>
    %276 = arith.mulf %273, %275 : vector<4x256xf32>
    %c3_162 = arith.constant 3 : index
    %c0_163 = arith.constant 0 : index
    %c0_164 = arith.constant 0 : index
    %277 = vector.load %arg16[%c3_162, %c0_163, %c0_164] : memref<9x4x4xbf16, #tpu.memory_space<vmem>>, vector<1x4x4xbf16>
    %278 = vector.shape_cast %277 : vector<1x4x4xbf16> to vector<4x4xbf16>
    %279 = arith.truncf %276 : vector<4x256xf32> to vector<4x256xbf16>
    %cst_165 = arith.constant dense<0.000000e+00> : vector<4x256xf32>
    %280 = tpu.matmul %278, %279, %cst_165 {dimension_numbers = #tpu.dot_dimension_numbers<[1], [0], [0], [1], [0, 0, 1, 1], [], []>} : vector<4x4xbf16>, vector<4x256xbf16>, vector<4x256xf32> -> vector<4x256xf32>
    %281 = arith.addf %272, %280 : vector<4x256xf32>
    %c0_166 = arith.constant 0 : index
    %c128_167 = arith.constant 128 : index
    %282 = vector.load %arg22[%c0_166, %c128_167] : memref<8x512xf32, #tpu.memory_space<vmem>>, vector<4x256xf32>
    %c4_168 = arith.constant 4 : index
    %c0_169 = arith.constant 0 : index
    %c0_170 = arith.constant 0 : index
    %283 = vector.load %arg16[%c4_168, %c0_169, %c0_170] : memref<9x4x4xbf16, #tpu.memory_space<vmem>>, vector<1x4x4xbf16>
    %284 = vector.shape_cast %283 : vector<1x4x4xbf16> to vector<4x4xbf16>
    %285 = arith.truncf %282 : vector<4x256xf32> to vector<4x256xbf16>
    %cst_171 = arith.constant dense<0.000000e+00> : vector<4x256xf32>
    %286 = tpu.matmul %284, %285, %cst_171 {dimension_numbers = #tpu.dot_dimension_numbers<[1], [0], [0], [1], [0, 0, 1, 1], [], []>} : vector<4x4xbf16>, vector<4x256xbf16>, vector<4x256xf32> -> vector<4x256xf32>
    %287 = arith.addf %281, %286 : vector<4x256xf32>
    %c0_172 = arith.constant 0 : index
    %c129_173 = arith.constant 129 : index
    %288 = vector.load %arg22[%c0_172, %c129_173] : memref<8x512xf32, #tpu.memory_space<vmem>>, vector<4x256xf32>
    %c0_174 = arith.constant 0 : index
    %c0_175 = arith.constant 0 : index
    %289 = vector.load %arg5[%c0_174, %c0_175] : memref<1x256xf32, #tpu.memory_space<vmem>>, vector<1x256xf32>
    %290 = vector.broadcast %289 : vector<1x256xf32> to vector<4x256xf32>
    %291 = arith.mulf %288, %290 : vector<4x256xf32>
    %c5_176 = arith.constant 5 : index
    %c0_177 = arith.constant 0 : index
    %c0_178 = arith.constant 0 : index
    %292 = vector.load %arg16[%c5_176, %c0_177, %c0_178] : memref<9x4x4xbf16, #tpu.memory_space<vmem>>, vector<1x4x4xbf16>
    %293 = vector.shape_cast %292 : vector<1x4x4xbf16> to vector<4x4xbf16>
    %294 = arith.truncf %291 : vector<4x256xf32> to vector<4x256xbf16>
    %cst_179 = arith.constant dense<0.000000e+00> : vector<4x256xf32>
    %295 = tpu.matmul %293, %294, %cst_179 {dimension_numbers = #tpu.dot_dimension_numbers<[1], [0], [0], [1], [0, 0, 1, 1], [], []>} : vector<4x4xbf16>, vector<4x256xbf16>, vector<4x256xf32> -> vector<4x256xf32>
    %296 = arith.addf %287, %295 : vector<4x256xf32>
    %c0_180 = arith.constant 0 : index
    %c143_181 = arith.constant 143 : index
    %297 = vector.load %arg22[%c0_180, %c143_181] : memref<8x512xf32, #tpu.memory_space<vmem>>, vector<4x256xf32>
    %c0_182 = arith.constant 0 : index
    %c0_183 = arith.constant 0 : index
    %298 = vector.load %arg4[%c0_182, %c0_183] : memref<1x256xf32, #tpu.memory_space<vmem>>, vector<1x256xf32>
    %299 = vector.broadcast %298 : vector<1x256xf32> to vector<4x256xf32>
    %300 = arith.mulf %297, %299 : vector<4x256xf32>
    %c6_184 = arith.constant 6 : index
    %c0_185 = arith.constant 0 : index
    %c0_186 = arith.constant 0 : index
    %301 = vector.load %arg16[%c6_184, %c0_185, %c0_186] : memref<9x4x4xbf16, #tpu.memory_space<vmem>>, vector<1x4x4xbf16>
    %302 = vector.shape_cast %301 : vector<1x4x4xbf16> to vector<4x4xbf16>
    %303 = arith.truncf %300 : vector<4x256xf32> to vector<4x256xbf16>
    %cst_187 = arith.constant dense<0.000000e+00> : vector<4x256xf32>
    %304 = tpu.matmul %302, %303, %cst_187 {dimension_numbers = #tpu.dot_dimension_numbers<[1], [0], [0], [1], [0, 0, 1, 1], [], []>} : vector<4x4xbf16>, vector<4x256xbf16>, vector<4x256xf32> -> vector<4x256xf32>
    %305 = arith.addf %296, %304 : vector<4x256xf32>
    %c0_188 = arith.constant 0 : index
    %c144_189 = arith.constant 144 : index
    %306 = vector.load %arg22[%c0_188, %c144_189] : memref<8x512xf32, #tpu.memory_space<vmem>>, vector<4x256xf32>
    %c7_190 = arith.constant 7 : index
    %c0_191 = arith.constant 0 : index
    %c0_192 = arith.constant 0 : index
    %307 = vector.load %arg16[%c7_190, %c0_191, %c0_192] : memref<9x4x4xbf16, #tpu.memory_space<vmem>>, vector<1x4x4xbf16>
    %308 = vector.shape_cast %307 : vector<1x4x4xbf16> to vector<4x4xbf16>
    %309 = arith.truncf %306 : vector<4x256xf32> to vector<4x256xbf16>
    %cst_193 = arith.constant dense<0.000000e+00> : vector<4x256xf32>
    %310 = tpu.matmul %308, %309, %cst_193 {dimension_numbers = #tpu.dot_dimension_numbers<[1], [0], [0], [1], [0, 0, 1, 1], [], []>} : vector<4x4xbf16>, vector<4x256xbf16>, vector<4x256xf32> -> vector<4x256xf32>
    %311 = arith.addf %305, %310 : vector<4x256xf32>
    %c0_194 = arith.constant 0 : index
    %c145_195 = arith.constant 145 : index
    %312 = vector.load %arg22[%c0_194, %c145_195] : memref<8x512xf32, #tpu.memory_space<vmem>>, vector<4x256xf32>
    %c0_196 = arith.constant 0 : index
    %c0_197 = arith.constant 0 : index
    %313 = vector.load %arg5[%c0_196, %c0_197] : memref<1x256xf32, #tpu.memory_space<vmem>>, vector<1x256xf32>
    %314 = vector.broadcast %313 : vector<1x256xf32> to vector<4x256xf32>
    %315 = arith.mulf %312, %314 : vector<4x256xf32>
    %c8_198 = arith.constant 8 : index
    %c0_199 = arith.constant 0 : index
    %c0_200 = arith.constant 0 : index
    %316 = vector.load %arg16[%c8_198, %c0_199, %c0_200] : memref<9x4x4xbf16, #tpu.memory_space<vmem>>, vector<1x4x4xbf16>
    %317 = vector.shape_cast %316 : vector<1x4x4xbf16> to vector<4x4xbf16>
    %318 = arith.truncf %315 : vector<4x256xf32> to vector<4x256xbf16>
    %cst_201 = arith.constant dense<0.000000e+00> : vector<4x256xf32>
    %319 = tpu.matmul %317, %318, %cst_201 {dimension_numbers = #tpu.dot_dimension_numbers<[1], [0], [0], [1], [0, 0, 1, 1], [], []>} : vector<4x4xbf16>, vector<4x256xbf16>, vector<4x256xf32> -> vector<4x256xf32>
    %320 = arith.addf %311, %319 : vector<4x256xf32>
    %c0_202 = arith.constant 0 : index
    %c0_203 = arith.constant 0 : index
    %321 = vector.load %arg17[%c0_202, %c0_203] : memref<4x1xf32, #tpu.memory_space<vmem>>, vector<4x1xf32>
    %322 = vector.broadcast %321 : vector<4x1xf32> to vector<4x256xf32>
    %323 = arith.addf %320, %322 : vector<4x256xf32>
    %cst_204 = arith.constant dense<0.000000e+00> : vector<4xf32>
    %324 = vector.multi_reduction <add>, %323, %cst_204 [1] : vector<4x256xf32> to vector<4xf32>
    %325 = vector.shape_cast %324 : vector<4xf32> to vector<4x1xf32>
    %326 = arith.mulf %323, %323 : vector<4x256xf32>
    %cst_205 = arith.constant dense<0.000000e+00> : vector<4xf32>
    %327 = vector.multi_reduction <add>, %326, %cst_205 [1] : vector<4x256xf32> to vector<4xf32>
    %328 = vector.shape_cast %327 : vector<4xf32> to vector<4x1xf32>
    %cst_206 = arith.constant 0.000000e+00 : f32
    %329 = vector.broadcast %cst_206 : f32 to vector<4x1xf32>
    %cst_207 = arith.constant 0.000000e+00 : f32
    %330 = vector.broadcast %cst_207 : f32 to vector<4x1xf32>
    %c0_208 = arith.constant 0 : index
    %c0_209 = arith.constant 0 : index
    %c0_210 = arith.constant 0 : index
    %331 = vector.load %arg20[%c0_208, %c0_209, %c0_210] : memref<2x4x1xf32, #tpu.memory_space<vmem>>, vector<1x4x1xf32>
    %332 = vector.shape_cast %331 : vector<1x4x1xf32> to vector<4x1xf32>
    %333 = arith.mulf %332, %325 : vector<4x1xf32>
    %cst_211 = arith.constant dense<0.000000e+00> : vector<4xf32>
    %334 = vector.multi_reduction <add>, %333, %cst_211 [1] : vector<4x1xf32> to vector<4xf32>
    %335 = vector.shape_cast %334 : vector<4xf32> to vector<4x1xf32>
    %cst_212 = arith.constant dense<0.000000e+00> : vector<1xf32>
    %336 = vector.multi_reduction <add>, %335, %cst_212 [0] : vector<4x1xf32> to vector<1xf32>
    %337 = vector.shape_cast %336 : vector<1xf32> to vector<1x1xf32>
    %cst_213 = arith.constant 0.001953125 : f32
    %338 = vector.broadcast %cst_213 : f32 to vector<1x1xf32>
    %339 = arith.mulf %337, %338 : vector<1x1xf32>
    %340 = arith.mulf %332, %328 : vector<4x1xf32>
    %cst_214 = arith.constant dense<0.000000e+00> : vector<4xf32>
    %341 = vector.multi_reduction <add>, %340, %cst_214 [1] : vector<4x1xf32> to vector<4xf32>
    %342 = vector.shape_cast %341 : vector<4xf32> to vector<4x1xf32>
    %cst_215 = arith.constant dense<0.000000e+00> : vector<1xf32>
    %343 = vector.multi_reduction <add>, %342, %cst_215 [0] : vector<4x1xf32> to vector<1xf32>
    %344 = vector.shape_cast %343 : vector<1xf32> to vector<1x1xf32>
    %cst_216 = arith.constant 0.001953125 : f32
    %345 = vector.broadcast %cst_216 : f32 to vector<1x1xf32>
    %346 = arith.mulf %344, %345 : vector<1x1xf32>
    %347 = arith.mulf %339, %339 : vector<1x1xf32>
    %348 = arith.subf %346, %347 : vector<1x1xf32>
    %349 = vector.broadcast %339 : vector<1x1xf32> to vector<4x1xf32>
    %350 = arith.mulf %332, %349 : vector<4x1xf32>
    %351 = arith.addf %329, %350 : vector<4x1xf32>
    %cst_217 = arith.constant 9.99999974E-6 : f32
    %352 = vector.broadcast %cst_217 : f32 to vector<1x1xf32>
    %353 = arith.addf %348, %352 : vector<1x1xf32>
    %354 = math.rsqrt %353 : vector<1x1xf32>
    %355 = vector.broadcast %354 : vector<1x1xf32> to vector<4x1xf32>
    %356 = arith.mulf %332, %355 : vector<4x1xf32>
    %357 = arith.addf %330, %356 : vector<4x1xf32>
    %c1_218 = arith.constant 1 : index
    %c0_219 = arith.constant 0 : index
    %c0_220 = arith.constant 0 : index
    %358 = vector.load %arg20[%c1_218, %c0_219, %c0_220] : memref<2x4x1xf32, #tpu.memory_space<vmem>>, vector<1x4x1xf32>
    %359 = vector.shape_cast %358 : vector<1x4x1xf32> to vector<4x1xf32>
    %360 = arith.mulf %359, %325 : vector<4x1xf32>
    %cst_221 = arith.constant dense<0.000000e+00> : vector<4xf32>
    %361 = vector.multi_reduction <add>, %360, %cst_221 [1] : vector<4x1xf32> to vector<4xf32>
    %362 = vector.shape_cast %361 : vector<4xf32> to vector<4x1xf32>
    %cst_222 = arith.constant dense<0.000000e+00> : vector<1xf32>
    %363 = vector.multi_reduction <add>, %362, %cst_222 [0] : vector<4x1xf32> to vector<1xf32>
    %364 = vector.shape_cast %363 : vector<1xf32> to vector<1x1xf32>
    %cst_223 = arith.constant 0.001953125 : f32
    %365 = vector.broadcast %cst_223 : f32 to vector<1x1xf32>
    %366 = arith.mulf %364, %365 : vector<1x1xf32>
    %367 = arith.mulf %359, %328 : vector<4x1xf32>
    %cst_224 = arith.constant dense<0.000000e+00> : vector<4xf32>
    %368 = vector.multi_reduction <add>, %367, %cst_224 [1] : vector<4x1xf32> to vector<4xf32>
    %369 = vector.shape_cast %368 : vector<4xf32> to vector<4x1xf32>
    %cst_225 = arith.constant dense<0.000000e+00> : vector<1xf32>
    %370 = vector.multi_reduction <add>, %369, %cst_225 [0] : vector<4x1xf32> to vector<1xf32>
    %371 = vector.shape_cast %370 : vector<1xf32> to vector<1x1xf32>
    %cst_226 = arith.constant 0.001953125 : f32
    %372 = vector.broadcast %cst_226 : f32 to vector<1x1xf32>
    %373 = arith.mulf %371, %372 : vector<1x1xf32>
    %374 = arith.mulf %366, %366 : vector<1x1xf32>
    %375 = arith.subf %373, %374 : vector<1x1xf32>
    %376 = vector.broadcast %366 : vector<1x1xf32> to vector<4x1xf32>
    %377 = arith.mulf %359, %376 : vector<4x1xf32>
    %378 = arith.addf %351, %377 : vector<4x1xf32>
    %cst_227 = arith.constant 9.99999974E-6 : f32
    %379 = vector.broadcast %cst_227 : f32 to vector<1x1xf32>
    %380 = arith.addf %375, %379 : vector<1x1xf32>
    %381 = math.rsqrt %380 : vector<1x1xf32>
    %382 = vector.broadcast %381 : vector<1x1xf32> to vector<4x1xf32>
    %383 = arith.mulf %359, %382 : vector<4x1xf32>
    %384 = arith.addf %357, %383 : vector<4x1xf32>
    %385 = vector.broadcast %378 : vector<4x1xf32> to vector<4x256xf32>
    %386 = arith.subf %323, %385 : vector<4x256xf32>
    %387 = vector.broadcast %384 : vector<4x1xf32> to vector<4x256xf32>
    %388 = arith.mulf %386, %387 : vector<4x256xf32>
    %c0_228 = arith.constant 0 : index
    %c0_229 = arith.constant 0 : index
    %389 = vector.load %arg18[%c0_228, %c0_229] : memref<4x1xf32, #tpu.memory_space<vmem>>, vector<4x1xf32>
    %390 = vector.broadcast %389 : vector<4x1xf32> to vector<4x256xf32>
    %391 = arith.mulf %388, %390 : vector<4x256xf32>
    %c0_230 = arith.constant 0 : index
    %c0_231 = arith.constant 0 : index
    %392 = vector.load %arg19[%c0_230, %c0_231] : memref<4x1xf32, #tpu.memory_space<vmem>>, vector<4x1xf32>
    %393 = vector.broadcast %392 : vector<4x1xf32> to vector<4x256xf32>
    %394 = arith.addf %391, %393 : vector<4x256xf32>
    %cst_232 = arith.constant 0.000000e+00 : f32
    %395 = vector.broadcast %cst_232 : f32 to vector<4x256xf32>
    %396 = arith.cmpf oge, %394, %395 : vector<4x256xf32>
    %cst_233 = arith.constant 2.000000e-01 : f32
    %397 = vector.broadcast %cst_233 : f32 to vector<4x256xf32>
    %398 = arith.mulf %397, %394 : vector<4x256xf32>
    %399 = arith.select %396, %394, %398 : vector<4x256xi1>, vector<4x256xf32>
    %c0_234 = arith.constant 0 : index
    %c0_235 = arith.constant 0 : index
    %c0_236 = arith.constant 0 : index
    %400 = vector.load %arg21[%c0_234, %c0_235, %c0_236] : memref<1x4x256xf32, #tpu.memory_space<vmem>>, vector<1x4x256xf32>
    %401 = vector.shape_cast %400 : vector<1x4x256xf32> to vector<4x256xf32>
    %402 = vector.shape_cast %399 : vector<4x256xf32> to vector<1x4x256xf32>
    tpu.vector_store %arg21[%c0_234, %c0_235, %c0_236], %402 {strides = array<i32>} : memref<1x4x256xf32, #tpu.memory_space<vmem>>, vector<1x4x256xf32>,
    return
  }
  func.func @transform_0(%arg0: i32) -> (i32, i32, i32) {
    %c0_i32 = arith.constant 0 : i32
    %c0_i32_0 = arith.constant 0 : i32
    %c0_i32_1 = arith.constant 0 : i32
    return %arg0, %c0_i32, %c0_i32_0 : i32, i32, i32
  }
  func.func @transform_1(%arg0: i32) -> (i32, i32, i32) {
    %c0_i32 = arith.constant 0 : i32
    %c0_i32_0 = arith.constant 0 : i32
    %c0_i32_1 = arith.constant 0 : i32
    return %arg0, %c0_i32, %c0_i32_0 : i32, i32, i32
  }
  func.func @transform_2(%arg0: i32) -> (i32, i32) {
    %c0_i32 = arith.constant 0 : i32
    %c0_i32_0 = arith.constant 0 : i32
    %c0_i32_1 = arith.constant 0 : i32
    return %c0_i32, %c0_i32_0 : i32, i32
  }
  func.func @transform_3(%arg0: i32) -> (i32, i32) {
    %c0_i32 = arith.constant 0 : i32
    %c0_i32_0 = arith.constant 0 : i32
    %c0_i32_1 = arith.constant 0 : i32
    return %c0_i32, %c0_i32_0 : i32, i32
  }
  func.func @transform_4(%arg0: i32) -> (i32, i32) {
    %c0_i32 = arith.constant 0 : i32
    %c0_i32_0 = arith.constant 0 : i32
    %c0_i32_1 = arith.constant 0 : i32
    return %c0_i32, %c0_i32_0 : i32, i32
  }
  func.func @transform_5(%arg0: i32) -> (i32, i32) {
    %c0_i32 = arith.constant 0 : i32
    %c0_i32_0 = arith.constant 0 : i32
    %c0_i32_1 = arith.constant 0 : i32
    return %c0_i32, %c0_i32_0 : i32, i32
  }
  func.func @transform_6(%arg0: i32) -> (i32, i32) {
    %c0_i32 = arith.constant 0 : i32
    %c0_i32_0 = arith.constant 0 : i32
    %c0_i32_1 = arith.constant 0 : i32
    return %c0_i32, %c0_i32_0 : i32, i32
  }
  func.func @transform_7(%arg0: i32) -> (i32, i32) {
    %c0_i32 = arith.constant 0 : i32
    %c0_i32_0 = arith.constant 0 : i32
    %c0_i32_1 = arith.constant 0 : i32
    return %c0_i32, %c0_i32_0 : i32, i32
  }
  func.func @transform_8(%arg0: i32) -> (i32, i32) {
    %c0_i32 = arith.constant 0 : i32
    %c0_i32_0 = arith.constant 0 : i32
    %c0_i32_1 = arith.constant 0 : i32
    return %c0_i32, %c0_i32_0 : i32, i32
  }
  func.func @transform_9(%arg0: i32) -> (i32, i32) {
    %c0_i32 = arith.constant 0 : i32
    %c0_i32_0 = arith.constant 0 : i32
    %c0_i32_1 = arith.constant 0 : i32
    return %c0_i32, %c0_i32_0 : i32, i32
  }
  func.func @transform_10(%arg0: i32) -> (i32, i32) {
    %c0_i32 = arith.constant 0 : i32
    %c0_i32_0 = arith.constant 0 : i32
    %c0_i32_1 = arith.constant 0 : i32
    return %c0_i32, %c0_i32_0 : i32, i32
  }
  func.func @transform_11(%arg0: i32) -> (i32, i32, i32) {
    %c0_i32 = arith.constant 0 : i32
    %c0_i32_0 = arith.constant 0 : i32
    %c0_i32_1 = arith.constant 0 : i32
    %c0_i32_2 = arith.constant 0 : i32
    return %c0_i32, %c0_i32_0, %c0_i32_1 : i32, i32, i32
  }
  func.func @transform_12(%arg0: i32) -> (i32, i32) {
    %c0_i32 = arith.constant 0 : i32
    %c0_i32_0 = arith.constant 0 : i32
    %c0_i32_1 = arith.constant 0 : i32
    return %c0_i32, %c0_i32_0 : i32, i32
  }
  func.func @transform_13(%arg0: i32) -> (i32, i32) {
    %c0_i32 = arith.constant 0 : i32
    %c0_i32_0 = arith.constant 0 : i32
    %c0_i32_1 = arith.constant 0 : i32
    return %c0_i32, %c0_i32_0 : i32, i32
  }
  func.func @transform_14(%arg0: i32) -> (i32, i32) {
    %c0_i32 = arith.constant 0 : i32
    %c0_i32_0 = arith.constant 0 : i32
    %c0_i32_1 = arith.constant 0 : i32
    return %c0_i32, %c0_i32_0 : i32, i32
  }
  func.func @transform_15(%arg0: i32) -> (i32, i32, i32) {
    %c0_i32 = arith.constant 0 : i32
    %c0_i32_0 = arith.constant 0 : i32
    %c0_i32_1 = arith.constant 0 : i32
    %c0_i32_2 = arith.constant 0 : i32
    return %c0_i32, %c0_i32_0, %c0_i32_1 : i32, i32, i32
  }
  func.func @transform_16(%arg0: i32) -> (i32, i32) {
    %c0_i32 = arith.constant 0 : i32
    %c0_i32_0 = arith.constant 0 : i32
    %c0_i32_1 = arith.constant 0 : i32
    return %c0_i32, %c0_i32_0 : i32, i32
  }
  func.func @transform_17(%arg0: i32) -> (i32, i32) {
    %c0_i32 = arith.constant 0 : i32
    %c0_i32_0 = arith.constant 0 : i32
    %c0_i32_1 = arith.constant 0 : i32
    return %c0_i32, %c0_i32_0 : i32, i32
  }
  func.func @transform_18(%arg0: i32) -> (i32, i32) {
    %c0_i32 = arith.constant 0 : i32
    %c0_i32_0 = arith.constant 0 : i32
    %c0_i32_1 = arith.constant 0 : i32
    return %c0_i32, %c0_i32_0 : i32, i32
  }
  func.func @transform_19(%arg0: i32) -> (i32, i32, i32) {
    %c0_i32 = arith.constant 0 : i32
    %c0_i32_0 = arith.constant 0 : i32
    %c0_i32_1 = arith.constant 0 : i32
    %c0_i32_2 = arith.constant 0 : i32
    return %c0_i32, %c0_i32_0, %c0_i32_1 : i32, i32, i32
  }
  func.func @transform_20(%arg0: i32) -> (i32, i32, i32) {
    %c0_i32 = arith.constant 0 : i32
    %c0_i32_0 = arith.constant 0 : i32
    %c0_i32_1 = arith.constant 0 : i32
    return %arg0, %c0_i32, %c0_i32_0 : i32, i32, i32
  }
}

</mosaic_0001>

<llo_original>
// kernel: tpu_custom_call.1
$region0: #{tpu_custom_call.1}
  #allocation0 [shape = 'u32[]', space=smem, size = 0x4, offset = 0x4, fixed_abs, tag = 'smem constant byte address 0x4 - core index']
  #allocation1 [shape = 'u32[144,128]{1,0:T(1,128)}', space=vmem, size = 0x12000, scoped, tag = 'internal scratch']
  #allocation2 [shape = 'f32[8,512]{1,0:T(8,128)}', space=vmem, size = 0x4000, scoped, tag = 'scratch operand']
  %s0 = inlined_call_operand.vmem [shape: bf16[2,4,64], index: 0, kind: input, shape index: {}]
  %s1 = inlined_call_operand.vmem [shape: bf16[2,4,256], index: 1, kind: input, shape index: {}]
  %s2 = inlined_call_operand.vmem [shape: bf16[64,256], index: 2, kind: input, shape index: {}]
  %s3 = inlined_call_operand.vmem [shape: f32[1,256], index: 3, kind: input, shape index: {}]
  %s4 = inlined_call_operand.vmem [shape: f32[1,256], index: 4, kind: input, shape index: {}]
  %s5 = inlined_call_operand.vmem [shape: bf16[4,4], index: 5, kind: input, shape index: {}]
  %s6 = inlined_call_operand.vmem [shape: f32[4,1], index: 6, kind: input, shape index: {}]
  %s7 = inlined_call_operand.vmem [shape: f32[4,1], index: 7, kind: input, shape index: {}]
  %s8 = inlined_call_operand.vmem [shape: f32[4,1], index: 8, kind: input, shape index: {}]
  %s9 = inlined_call_operand.vmem [shape: f32[8,1], index: 9, kind: input, shape index: {}]
  %s10 = inlined_call_operand.vmem [shape: f32[8,1], index: 10, kind: input, shape index: {}]
  %s11 = inlined_call_operand.vmem [shape: bf16[9,4,8], index: 11, kind: input, shape index: {}]
  %s12 = inlined_call_operand.vmem [shape: f32[4,1], index: 12, kind: input, shape index: {}]
  %s13 = inlined_call_operand.vmem [shape: f32[4,1], index: 13, kind: input, shape index: {}]
  %s14 = inlined_call_operand.vmem [shape: f32[4,1], index: 14, kind: input, shape index: {}]
  %s15 = inlined_call_operand.vmem [shape: bf16[9,4,4], index: 15, kind: input, shape index: {}]
  %s16 = inlined_call_operand.vmem [shape: f32[4,1], index: 16, kind: input, shape index: {}]
  %s17 = inlined_call_operand.vmem [shape: f32[4,1], index: 17, kind: input, shape index: {}]
  %s18 = inlined_call_operand.vmem [shape: f32[4,1], index: 18, kind: input, shape index: {}]
  %s19 = inlined_call_operand.vmem [shape: f32[2,4,1], index: 19, kind: input, shape index: {}]
  %s20 = inlined_call_operand.hbm [shape: f32[2,4,256], index: 20, kind: output, shape index: {}]
  %s21 = sld [smem:[#allocation0]]
  $region113: #{tpu_custom_call.1} parent=0
    _
  %s23 = ssub.s32 1, %s21
  %s24 = scalar_select 0, %s23, %s21
  $region1: #{tpu_custom_call.1} parent=0
    #allocation3 [shape = 'u8[8192]{0}', space=vmem, size = 0x2000, scoped, tag = 'output window, operand 0']
    #allocation4 [shape = 's32[2]{0}', space=sflag, size = 0x8, scoped, tag = 'scoped memory for tpu_custom_call.1']
    %25 = vsyncpa [#allocation4], 0
    %s26 = scalar_lea.sflag [#allocation4], 1
    %27 = vsyncpa %s26, 0
    loop: start=0, step=1, limit=4
    $region2: #{tpu_custom_call.1} parent=1 // loop_pre_header
      _
    $region3: #{tpu_custom_call.1} parent=1 // loop_header
      %s29 = sphi 0, %s33
      %p30 = scmp.ge.s32.totalorder %s29, 4
      %s39 = sphi 0, %s41
      %s42 = sphi 0, %s39
      %s43 = sphi 0, %s42
      %s59 = sphi 0, %s43
      %s65 = sphi 0, %s67
      %s68 = sphi 0, %s65
      %s69 = sphi 0, %s68
      %s85 = sphi 0, %s69
      %s89 = sphi 0, %s89
      %s91 = sphi 0, %s89
      %s92 = sphi 0, %s91
      %s106 = sphi 0, %s92
      %s110 = sphi 0, %s110
      %s112 = sphi 0, %s110
      %s113 = sphi 0, %s112
      %s127 = sphi 0, %s113
      %s131 = sphi 0, %s131
      %s133 = sphi 0, %s131
      %s134 = sphi 0, %s133
      %s148 = sphi 0, %s134
      %s152 = sphi 0, %s152
      %s154 = sphi 0, %s152
      %s155 = sphi 0, %s154
      %s169 = sphi 0, %s155
      %s173 = sphi 0, %s173
      %s175 = sphi 0, %s173
      %s176 = sphi 0, %s175
      %s190 = sphi 0, %s176
      %s194 = sphi 0, %s194
      %s196 = sphi 0, %s194
      %s197 = sphi 0, %s196
      %s211 = sphi 0, %s197
      %s215 = sphi 0, %s215
      %s217 = sphi 0, %s215
      %s218 = sphi 0, %s217
      %s232 = sphi 0, %s218
      %s236 = sphi 0, %s236
      %s238 = sphi 0, %s236
      %s239 = sphi 0, %s238
      %s253 = sphi 0, %s239
      %s257 = sphi 0, %s257
      %s259 = sphi 0, %s257
      %s260 = sphi 0, %s259
      %s274 = sphi 0, %s260
      %s278 = sphi 0, %s278
      %s280 = sphi 0, %s278
      %s281 = sphi 0, %s280
      %s295 = sphi 0, %s281
      %s299 = sphi 0, %s299
      %s301 = sphi 0, %s299
      %s302 = sphi 0, %s301
      %s316 = sphi 0, %s302
      %s320 = sphi 0, %s320
      %s322 = sphi 0, %s320
      %s323 = sphi 0, %s322
      %s337 = sphi 0, %s323
      %s341 = sphi 0, %s341
      %s343 = sphi 0, %s341
      %s344 = sphi 0, %s343
      %s358 = sphi 0, %s344
      %s362 = sphi 0, %s362
      %s364 = sphi 0, %s362
      %s365 = sphi 0, %s364
      %s379 = sphi 0, %s365
      %s383 = sphi 0, %s383
      %s385 = sphi 0, %s383
      %s386 = sphi 0, %s385
      %s400 = sphi 0, %s386
      %s404 = sphi 0, %s404
      %s406 = sphi 0, %s404
      %s407 = sphi 0, %s406
      %s421 = sphi 0, %s407
      %s425 = sphi 0, %s425
      %s427 = sphi 0, %s425
      %s428 = sphi 0, %s427
      %s442 = sphi 0, %s428
      %s446 = sphi 0, %s446
      %s448 = sphi 0, %s446
      %s449 = sphi 0, %s448
      %s463 = sphi 0, %s449
      %s469 = sphi 0, %s471
      %s472 = sphi 0, %s469
      %s473 = sphi 0, %s472
      %s489 = sphi 0, %s473
    $region4: #{tpu_custom_call.1} parent=1 // loop_header_branch
      %32 = sbr.rel (%p30) target = $region8
    $region5: #{tpu_custom_call.1} parent=1 // loop_body
      %s34 = ssub.s32 %s29, 1
      %s35 = ssub.s32 %s29, 2
      %s36 = sadd.s32 %s29, 1
      %s37 = ssub.s32 %s29, %s36
      %p38 = scmp.eq.s32.totalorder %s37, 0
      %s40 = sadd.s32 %s39, 1
      %s41 = scalar_select %p38, %s39, %s40
      %p44 = pneg %p38
      %p45 = scmp.eq.s32.totalorder %s29, 1
      %p46 = por %p44, %p45
      %p47 = scmp.ne.s32.totalorder %s39, %s42
      %p48 = scmp.eq.s32.totalorder %s29, 0
      %p49 = por %p47, %p48
      %p50 = scmp.ne.s32.totalorder %s39, %s42
      %p51 = scmp.eq.s32.totalorder %s34, 1
      %p52 = por %p50, %p51
      %p53 = scmp.ne.s32.totalorder %s42, %s43
      %p54 = scmp.eq.s32.totalorder %s34, 0
      %p55 = por %p53, %p54
      %p56 = scmp.ne.s32.totalorder %s42, %s43
      %p57 = scmp.eq.s32.totalorder %s35, 1
      %p58 = por %p56, %p57
      %p60 = scmp.ne.s32.totalorder %s43, %s59
      %p61 = scmp.eq.s32.totalorder %s35, 0
      %p62 = por %p60, %p61
      %s63 = ssub.s32 %s29, %s36
      %p64 = scmp.eq.s32.totalorder %s63, 0
      %s66 = sadd.s32 %s65, 1
      %s67 = scalar_select %p64, %s65, %s66
      %p70 = pneg %p64
      %p71 = scmp.eq.s32.totalorder %s29, 1
      %p72 = por %p70, %p71
      %p73 = scmp.ne.s32.totalorder %s65, %s68
      %p74 = scmp.eq.s32.totalorder %s29, 0
      %p75 = por %p73, %p74
      %p76 = scmp.ne.s32.totalorder %s65, %s68
      %p77 = scmp.eq.s32.totalorder %s34, 1
      %p78 = por %p76, %p77
      %p79 = scmp.ne.s32.totalorder %s68, %s69
      %p80 = scmp.eq.s32.totalorder %s34, 0
      %p81 = por %p79, %p80
      %p82 = scmp.ne.s32.totalorder %s68, %s69
      %p83 = scmp.eq.s32.totalorder %s35, 1
      %p84 = por %p82, %p83
      %p86 = scmp.ne.s32.totalorder %s69, %s85
      %p87 = scmp.eq.s32.totalorder %s35, 0
      %p88 = por %p86, %p87
      %s90 = sadd.s32 %s89, 1
      %p93 = scmp.eq.s32.totalorder %s29, 1
      %p94 = scmp.ne.s32.totalorder %s89, %s91
      %p95 = scmp.eq.s32.totalorder %s29, 0
      %p96 = por %p94, %p95
      %p97 = scmp.ne.s32.totalorder %s89, %s91
      %p98 = scmp.eq.s32.totalorder %s34, 1
      %p99 = por %p97, %p98
      %p100 = scmp.ne.s32.totalorder %s91, %s92
      %p101 = scmp.eq.s32.totalorder %s34, 0
      %p102 = por %p100, %p101
      %p103 = scmp.ne.s32.totalorder %s91, %s92
      %p104 = scmp.eq.s32.totalorder %s35, 1
      %p105 = por %p103, %p104
      %p107 = scmp.ne.s32.totalorder %s92, %s106
      %p108 = scmp.eq.s32.totalorder %s35, 0
      %p109 = por %p107, %p108
      %s111 = sadd.s32 %s110, 1
      %p114 = scmp.eq.s32.totalorder %s29, 1
      %p115 = scmp.ne.s32.totalorder %s110, %s112
      %p116 = scmp.eq.s32.totalorder %s29, 0
      %p117 = por %p115, %p116
      %p118 = scmp.ne.s32.totalorder %s110, %s112
      %p119 = scmp.eq.s32.totalorder %s34, 1
      %p120 = por %p118, %p119
      %p121 = scmp.ne.s32.totalorder %s112, %s113
      %p122 = scmp.eq.s32.totalorder %s34, 0
      %p123 = por %p121, %p122
      %p124 = scmp.ne.s32.totalorder %s112, %s113
      %p125 = scmp.eq.s32.totalorder %s35, 1
      %p126 = por %p124, %p125
      %p128 = scmp.ne.s32.totalorder %s113, %s127
      %p129 = scmp.eq.s32.totalorder %s35, 0
      %p130 = por %p128, %p129
      %s132 = sadd.s32 %s131, 1
      %p135 = scmp.eq.s32.totalorder %s29, 1
      %p136 = scmp.ne.s32.totalorder %s131, %s133
      %p137 = scmp.eq.s32.totalorder %s29, 0
      %p138 = por %p136, %p137
      %p139 = scmp.ne.s32.totalorder %s131, %s133
      %p140 = scmp.eq.s32.totalorder %s34, 1
      %p141 = por %p139, %p140
      %p142 = scmp.ne.s32.totalorder %s133, %s134
      %p143 = scmp.eq.s32.totalorder %s34, 0
      %p144 = por %p142, %p143
      %p145 = scmp.ne.s32.totalorder %s133, %s134
      %p146 = scmp.eq.s32.totalorder %s35, 1
      %p147 = por %p145, %p146
      %p149 = scmp.ne.s32.totalorder %s134, %s148
      %p150 = scmp.eq.s32.totalorder %s35, 0
      %p151 = por %p149, %p150
      %s153 = sadd.s32 %s152, 1
      %p156 = scmp.eq.s32.totalorder %s29, 1
      %p157 = scmp.ne.s32.totalorder %s152, %s154
      %p158 = scmp.eq.s32.totalorder %s29, 0
      %p159 = por %p157, %p158
      %p160 = scmp.ne.s32.totalorder %s152, %s154
      %p161 = scmp.eq.s32.totalorder %s34, 1
      %p162 = por %p160, %p161
      %p163 = scmp.ne.s32.totalorder %s154, %s155
      %p164 = scmp.eq.s32.totalorder %s34, 0
      %p165 = por %p163, %p164
      %p166 = scmp.ne.s32.totalorder %s154, %s155
      %p167 = scmp.eq.s32.totalorder %s35, 1
      %p168 = por %p166, %p167
      %p170 = scmp.ne.s32.totalorder %s155, %s169
      %p171 = scmp.eq.s32.totalorder %s35, 0
      %p172 = por %p170, %p171
      %s174 = sadd.s32 %s173, 1
      %p177 = scmp.eq.s32.totalorder %s29, 1
      %p178 = scmp.ne.s32.totalorder %s173, %s175
      %p179 = scmp.eq.s32.totalorder %s29, 0
      %p180 = por %p178, %p179
      %p181 = scmp.ne.s32.totalorder %s173, %s175
      %p182 = scmp.eq.s32.totalorder %s34, 1
      %p183 = por %p181, %p182
      %p184 = scmp.ne.s32.totalorder %s175, %s176
      %p185 = scmp.eq.s32.totalorder %s34, 0
      %p186 = por %p184, %p185
      %p187 = scmp.ne.s32.totalorder %s175, %s176
      %p188 = scmp.eq.s32.totalorder %s35, 1
      %p189 = por %p187, %p188
      %p191 = scmp.ne.s32.totalorder %s176, %s190
      %p192 = scmp.eq.s32.totalorder %s35, 0
      %p193 = por %p191, %p192
      %s195 = sadd.s32 %s194, 1
      %p198 = scmp.eq.s32.totalorder %s29, 1
      %p199 = scmp.ne.s32.totalorder %s194, %s196
      %p200 = scmp.eq.s32.totalorder %s29, 0
      %p201 = por %p199, %p200
      %p202 = scmp.ne.s32.totalorder %s194, %s196
      %p203 = scmp.eq.s32.totalorder %s34, 1
      %p204 = por %p202, %p203
      %p205 = scmp.ne.s32.totalorder %s196, %s197
      %p206 = scmp.eq.s32.totalorder %s34, 0
      %p207 = por %p205, %p206
      %p208 = scmp.ne.s32.totalorder %s196, %s197
      %p209 = scmp.eq.s32.totalorder %s35, 1
      %p210 = por %p208, %p209
      %p212 = scmp.ne.s32.totalorder %s197, %s211
      %p213 = scmp.eq.s32.totalorder %s35, 0
      %p214 = por %p212, %p213
      %s216 = sadd.s32 %s215, 1
      %p219 = scmp.eq.s32.totalorder %s29, 1
      %p220 = scmp.ne.s32.totalorder %s215, %s217
      %p221 = scmp.eq.s32.totalorder %s29, 0
      %p222 = por %p220, %p221
      %p223 = scmp.ne.s32.totalorder %s215, %s217
      %p224 = scmp.eq.s32.totalorder %s34, 1
      %p225 = por %p223, %p224
      %p226 = scmp.ne.s32.totalorder %s217, %s218
      %p227 = scmp.eq.s32.totalorder %s34, 0
      %p228 = por %p226, %p227
      %p229 = scmp.ne.s32.totalorder %s217, %s218
      %p230 = scmp.eq.s32.totalorder %s35, 1
      %p231 = por %p229, %p230
      %p233 = scmp.ne.s32.totalorder %s218, %s232
      %p234 = scmp.eq.s32.totalorder %s35, 0
      %p235 = por %p233, %p234
      %s237 = sadd.s32 %s236, 1
      %p240 = scmp.eq.s32.totalorder %s29, 1
      %p241 = scmp.ne.s32.totalorder %s236, %s238
      %p242 = scmp.eq.s32.totalorder %s29, 0
      %p243 = por %p241, %p242
      %p244 = scmp.ne.s32.totalorder %s236, %s238
      %p245 = scmp.eq.s32.totalorder %s34, 1
      %p246 = por %p244, %p245
      %p247 = scmp.ne.s32.totalorder %s238, %s239
      %p248 = scmp.eq.s32.totalorder %s34, 0
      %p249 = por %p247, %p248
      %p250 = scmp.ne.s32.totalorder %s238, %s239
      %p251 = scmp.eq.s32.totalorder %s35, 1
      %p252 = por %p250, %p251
      %p254 = scmp.ne.s32.totalorder %s239, %s253
      %p255 = scmp.eq.s32.totalorder %s35, 0
      %p256 = por %p254, %p255
      %s258 = sadd.s32 %s257, 1
      %p261 = scmp.eq.s32.totalorder %s29, 1
      %p262 = scmp.ne.s32.totalorder %s257, %s259
      %p263 = scmp.eq.s32.totalorder %s29, 0
      %p264 = por %p262, %p263
      %p265 = scmp.ne.s32.totalorder %s257, %s259
      %p266 = scmp.eq.s32.totalorder %s34, 1
      %p267 = por %p265, %p266
      %p268 = scmp.ne.s32.totalorder %s259, %s260
      %p269 = scmp.eq.s32.totalorder %s34, 0
      %p270 = por %p268, %p269
      %p271 = scmp.ne.s32.totalorder %s259, %s260
      %p272 = scmp.eq.s32.totalorder %s35, 1
      %p273 = por %p271, %p272
      %p275 = scmp.ne.s32.totalorder %s260, %s274
      %p276 = scmp.eq.s32.totalorder %s35, 0
      %p277 = por %p275, %p276
      %s279 = sadd.s32 %s278, 1
      %p282 = scmp.eq.s32.totalorder %s29, 1
      %p283 = scmp.ne.s32.totalorder %s278, %s280
      %p284 = scmp.eq.s32.totalorder %s29, 0
      %p285 = por %p283, %p284
      %p286 = scmp.ne.s32.totalorder %s278, %s280
      %p287 = scmp.eq.s32.totalorder %s34, 1
      %p288 = por %p286, %p287
      %p289 = scmp.ne.s32.totalorder %s280, %s281
      %p290 = scmp.eq.s32.totalorder %s34, 0
      %p291 = por %p289, %p290
      %p292 = scmp.ne.s32.totalorder %s280, %s281
      %p293 = scmp.eq.s32.totalorder %s35, 1
      %p294 = por %p292, %p293
      %p296 = scmp.ne.s32.totalorder %s281, %s295
      %p297 = scmp.eq.s32.totalorder %s35, 0
      %p298 = por %p296, %p297
      %s300 = sadd.s32 %s299, 1
      %p303 = scmp.eq.s32.totalorder %s29, 1
      %p304 = scmp.ne.s32.totalorder %s299, %s301
      %p305 = scmp.eq.s32.totalorder %s29, 0
      %p306 = por %p304, %p305
      %p307 = scmp.ne.s32.totalorder %s299, %s301
      %p308 = scmp.eq.s32.totalorder %s34, 1
      %p309 = por %p307, %p308
      %p310 = scmp.ne.s32.totalorder %s301, %s302
      %p311 = scmp.eq.s32.totalorder %s34, 0
      %p312 = por %p310, %p311
      %p313 = scmp.ne.s32.totalorder %s301, %s302
      %p314 = scmp.eq.s32.totalorder %s35, 1
      %p315 = por %p313, %p314
      %p317 = scmp.ne.s32.totalorder %s302, %s316
      %p318 = scmp.eq.s32.totalorder %s35, 0
      %p319 = por %p317, %p318
      %s321 = sadd.s32 %s320, 1
      %p324 = scmp.eq.s32.totalorder %s29, 1
      %p325 = scmp.ne.s32.totalorder %s320, %s322
      %p326 = scmp.eq.s32.totalorder %s29, 0
      %p327 = por %p325, %p326
      %p328 = scmp.ne.s32.totalorder %s320, %s322
      %p329 = scmp.eq.s32.totalorder %s34, 1
      %p330 = por %p328, %p329
      %p331 = scmp.ne.s32.totalorder %s322, %s323
      %p332 = scmp.eq.s32.totalorder %s34, 0
      %p333 = por %p331, %p332
      %p334 = scmp.ne.s32.totalorder %s322, %s323
      %p335 = scmp.eq.s32.totalorder %s35, 1
      %p336 = por %p334, %p335
      %p338 = scmp.ne.s32.totalorder %s323, %s337
      %p339 = scmp.eq.s32.totalorder %s35, 0
      %p340 = por %p338, %p339
      %s342 = sadd.s32 %s341, 1
      %p345 = scmp.eq.s32.totalorder %s29, 1
      %p346 = scmp.ne.s32.totalorder %s341, %s343
      %p347 = scmp.eq.s32.totalorder %s29, 0
      %p348 = por %p346, %p347
      %p349 = scmp.ne.s32.totalorder %s341, %s343
      %p350 = scmp.eq.s32.totalorder %s34, 1
      %p351 = por %p349, %p350
      %p352 = scmp.ne.s32.totalorder %s343, %s344
      %p353 = scmp.eq.s32.totalorder %s34, 0
      %p354 = por %p352, %p353
      %p355 = scmp.ne.s32.totalorder %s343, %s344
      %p356 = scmp.eq.s32.totalorder %s35, 1
      %p357 = por %p355, %p356
      %p359 = scmp.ne.s32.totalorder %s344, %s358
      %p360 = scmp.eq.s32.totalorder %s35, 0
      %p361 = por %p359, %p360
      %s363 = sadd.s32 %s362, 1
      %p366 = scmp.eq.s32.totalorder %s29, 1
      %p367 = scmp.ne.s32.totalorder %s362, %s364
      %p368 = scmp.eq.s32.totalorder %s29, 0
      %p369 = por %p367, %p368
      %p370 = scmp.ne.s32.totalorder %s362, %s364
      %p371 = scmp.eq.s32.totalorder %s34, 1
      %p372 = por %p370, %p371
      %p373 = scmp.ne.s32.totalorder %s364, %s365
      %p374 = scmp.eq.s32.totalorder %s34, 0
      %p375 = por %p373, %p374
      %p376 = scmp.ne.s32.totalorder %s364, %s365
      %p377 = scmp.eq.s32.totalorder %s35, 1
      %p378 = por %p376, %p377
      %p380 = scmp.ne.s32.totalorder %s365, %s379
      %p381 = scmp.eq.s32.totalorder %s35, 0
      %p382 = por %p380, %p381
      %s384 = sadd.s32 %s383, 1
      %p387 = scmp.eq.s32.totalorder %s29, 1
      %p388 = scmp.ne.s32.totalorder %s383, %s385
      %p389 = scmp.eq.s32.totalorder %s29, 0
      %p390 = por %p388, %p389
      %p391 = scmp.ne.s32.totalorder %s383, %s385
      %p392 = scmp.eq.s32.totalorder %s34, 1
      %p393 = por %p391, %p392
      %p394 = scmp.ne.s32.totalorder %s385, %s386
      %p395 = scmp.eq.s32.totalorder %s34, 0
      %p396 = por %p394, %p395
      %p397 = scmp.ne.s32.totalorder %s385, %s386
      %p398 = scmp.eq.s32.totalorder %s35, 1
      %p399 = por %p397, %p398
      %p401 = scmp.ne.s32.totalorder %s386, %s400
      %p402 = scmp.eq.s32.totalorder %s35, 0
      %p403 = por %p401, %p402
      %s405 = sadd.s32 %s404, 1
      %p408 = scmp.eq.s32.totalorder %s29, 1
      %p409 = scmp.ne.s32.totalorder %s404, %s406
      %p410 = scmp.eq.s32.totalorder %s29, 0
      %p411 = por %p409, %p410
      %p412 = scmp.ne.s32.totalorder %s404, %s406
      %p413 = scmp.eq.s32.totalorder %s34, 1
      %p414 = por %p412, %p413
      %p415 = scmp.ne.s32.totalorder %s406, %s407
      %p416 = scmp.eq.s32.totalorder %s34, 0
      %p417 = por %p415, %p416
      %p418 = scmp.ne.s32.totalorder %s406, %s407
      %p419 = scmp.eq.s32.totalorder %s35, 1
      %p420 = por %p418, %p419
      %p422 = scmp.ne.s32.totalorder %s407, %s421
      %p423 = scmp.eq.s32.totalorder %s35, 0
      %p424 = por %p422, %p423
      %s426 = sadd.s32 %s425, 1
      %p429 = scmp.eq.s32.totalorder %s29, 1
      %p430 = scmp.ne.s32.totalorder %s425, %s427
      %p431 = scmp.eq.s32.totalorder %s29, 0
      %p432 = por %p430, %p431
      %p433 = scmp.ne.s32.totalorder %s425, %s427
      %p434 = scmp.eq.s32.totalorder %s34, 1
      %p435 = por %p433, %p434
      %p436 = scmp.ne.s32.totalorder %s427, %s428
      %p437 = scmp.eq.s32.totalorder %s34, 0
      %p438 = por %p436, %p437
      %p439 = scmp.ne.s32.totalorder %s427, %s428
      %p440 = scmp.eq.s32.totalorder %s35, 1
      %p441 = por %p439, %p440
      %p443 = scmp.ne.s32.totalorder %s428, %s442
      %p444 = scmp.eq.s32.totalorder %s35, 0
      %p445 = por %p443, %p444
      %s447 = sadd.s32 %s446, 1
      %p450 = scmp.eq.s32.totalorder %s29, 1
      %p451 = scmp.ne.s32.totalorder %s446, %s448
      %p452 = scmp.eq.s32.totalorder %s29, 0
      %p453 = por %p451, %p452
      %p454 = scmp.ne.s32.totalorder %s446, %s448
      %p455 = scmp.eq.s32.totalorder %s34, 1
      %p456 = por %p454, %p455
      %p457 = scmp.ne.s32.totalorder %s448, %s449
      %p458 = scmp.eq.s32.totalorder %s34, 0
      %p459 = por %p457, %p458
      %p460 = scmp.ne.s32.totalorder %s448, %s449
      %p461 = scmp.eq.s32.totalorder %s35, 1
      %p462 = por %p460, %p461
      %p464 = scmp.ne.s32.totalorder %s449, %s463
      %p465 = scmp.eq.s32.totalorder %s35, 0
      %p466 = por %p464, %p465
      %s467 = ssub.s32 %s29, %s36
      %p468 = scmp.eq.s32.totalorder %s467, 0
      %s470 = sadd.s32 %s469, 1
      %s471 = scalar_select %p468, %s469, %s470
      %p474 = pneg %p468
      %p475 = scmp.eq.s32.totalorder %s29, 1
      %p476 = por %p474, %p475
      %p477 = scmp.ne.s32.totalorder %s469, %s472
      %p478 = scmp.eq.s32.totalorder %s29, 0
      %p479 = por %p477, %p478
      %p480 = scmp.ne.s32.totalorder %s469, %s472
      %p481 = scmp.eq.s32.totalorder %s34, 1
      %p482 = por %p480, %p481
      %p483 = scmp.ne.s32.totalorder %s472, %s473
      %p484 = scmp.eq.s32.totalorder %s34, 0
      %p485 = por %p483, %p484
      %p486 = scmp.ne.s32.totalorder %s472, %s473
      %p487 = scmp.eq.s32.totalorder %s35, 1
      %p488 = por %p486, %p487
      %p490 = scmp.ne.s32.totalorder %s473, %s489
      %p491 = scmp.eq.s32.totalorder %s35, 0
      %p492 = por %p490, %p491
      %p493 = scmp.le.s32.totalorder 1, %s29
      %p494 = scmp.lt.s32.totalorder %s29, 3
      %p495 = pnand %p493, %p494
      %p496 = pneg %p495
      // Predicated region
      $region9: #{tpu_custom_call.1} parent=5 // pred_check
        _
      $region10: #{tpu_custom_call.1} parent=5 // pred_check_branch
        %498 = sbr.rel (%p495) target = $region12
      $region11: #{tpu_custom_call.1} parent=5 // pred_region
        %s499 = ssub.s32 %s29, 1
        // Predicated region
        $region13: #{tpu_custom_call.1} parent=11 // pred_check
          %p500 = pneg %p102
        $region14: #{tpu_custom_call.1} parent=11 // pred_check_branch
          %502 = sbr.rel (%p500) target = $region16
        $region15: #{tpu_custom_call.1} parent=11 // pred_region
          _
        $region16: #{tpu_custom_call.1} parent=11 // pred_fallthru
          _
        // Predicated region
        $region17: #{tpu_custom_call.1} parent=11 // pred_check
          %p503 = pneg %p123
        $region18: #{tpu_custom_call.1} parent=11 // pred_check_branch
          %505 = sbr.rel (%p503) target = $region20
        $region19: #{tpu_custom_call.1} parent=11 // pred_region
          _
        $region20: #{tpu_custom_call.1} parent=11 // pred_fallthru
          _
        // Predicated region
        $region21: #{tpu_custom_call.1} parent=11 // pred_check
          %p506 = pneg %p144
        $region22: #{tpu_custom_call.1} parent=11 // pred_check_branch
          %508 = sbr.rel (%p506) target = $region24
        $region23: #{tpu_custom_call.1} parent=11 // pred_region
          _
        $region24: #{tpu_custom_call.1} parent=11 // pred_fallthru
          _
        // Predicated region
        $region25: #{tpu_custom_call.1} parent=11 // pred_check
          %p509 = pneg %p165
        $region26: #{tpu_custom_call.1} parent=11 // pred_check_branch
          %511 = sbr.rel (%p509) target = $region28
        $region27: #{tpu_custom_call.1} parent=11 // pred_region
          _
        $region28: #{tpu_custom_call.1} parent=11 // pred_fallthru
          _
        // Predicated region
        $region29: #{tpu_custom_call.1} parent=11 // pred_check
          %p512 = pneg %p186
        $region30: #{tpu_custom_call.1} parent=11 // pred_check_branch
          %514 = sbr.rel (%p512) target = $region32
        $region31: #{tpu_custom_call.1} parent=11 // pred_region
          _
        $region32: #{tpu_custom_call.1} parent=11 // pred_fallthru
          _
        // Predicated region
        $region33: #{tpu_custom_call.1} parent=11 // pred_check
          %p515 = pneg %p207
        $region34: #{tpu_custom_call.1} parent=11 // pred_check_branch
          %517 = sbr.rel (%p515) target = $region36
        $region35: #{tpu_custom_call.1} parent=11 // pred_region
          _
        $region36: #{tpu_custom_call.1} parent=11 // pred_fallthru
          _
        // Predicated region
        $region37: #{tpu_custom_call.1} parent=11 // pred_check
          %p518 = pneg %p228
        $region38: #{tpu_custom_call.1} parent=11 // pred_check_branch
          %520 = sbr.rel (%p518) target = $region40
        $region39: #{tpu_custom_call.1} parent=11 // pred_region
          _
        $region40: #{tpu_custom_call.1} parent=11 // pred_fallthru
          _
        // Predicated region
        $region41: #{tpu_custom_call.1} parent=11 // pred_check
          %p521 = pneg %p249
        $region42: #{tpu_custom_call.1} parent=11 // pred_check_branch
          %523 = sbr.rel (%p521) target = $region44
        $region43: #{tpu_custom_call.1} parent=11 // pred_region
          _
        $region44: #{tpu_custom_call.1} parent=11 // pred_fallthru
          _
        // Predicated region
        $region45: #{tpu_custom_call.1} parent=11 // pred_check
          %p524 = pneg %p270
        $region46: #{tpu_custom_call.1} parent=11 // pred_check_branch
          %526 = sbr.rel (%p524) target = $region48
        $region47: #{tpu_custom_call.1} parent=11 // pred_region
          _
        $region48: #{tpu_custom_call.1} parent=11 // pred_fallthru
          _
        // Predicated region
        $region49: #{tpu_custom_call.1} parent=11 // pred_check
          %p527 = pneg %p291
        $region50: #{tpu_custom_call.1} parent=11 // pred_check_branch
          %529 = sbr.rel (%p527) target = $region52
        $region51: #{tpu_custom_call.1} parent=11 // pred_region
          _
        $region52: #{tpu_custom_call.1} parent=11 // pred_fallthru
          _
        // Predicated region
        $region53: #{tpu_custom_call.1} parent=11 // pred_check
          %p530 = pneg %p312
        $region54: #{tpu_custom_call.1} parent=11 // pred_check_branch
          %532 = sbr.rel (%p530) target = $region56
        $region55: #{tpu_custom_call.1} parent=11 // pred_region
          _
        $region56: #{tpu_custom_call.1} parent=11 // pred_fallthru
          _
        // Predicated region
        $region57: #{tpu_custom_call.1} parent=11 // pred_check
          %p533 = pneg %p333
        $region58: #{tpu_custom_call.1} parent=11 // pred_check_branch
          %535 = sbr.rel (%p533) target = $region60
        $region59: #{tpu_custom_call.1} parent=11 // pred_region
          _
        $region60: #{tpu_custom_call.1} parent=11 // pred_fallthru
          _
        // Predicated region
        $region61: #{tpu_custom_call.1} parent=11 // pred_check
          %p536 = pneg %p354
        $region62: #{tpu_custom_call.1} parent=11 // pred_check_branch
          %538 = sbr.rel (%p536) target = $region64
        $region63: #{tpu_custom_call.1} parent=11 // pred_region
          _
        $region64: #{tpu_custom_call.1} parent=11 // pred_fallthru
          _
        // Predicated region
        $region65: #{tpu_custom_call.1} parent=11 // pred_check
          %p539 = pneg %p375
        $region66: #{tpu_custom_call.1} parent=11 // pred_check_branch
          %541 = sbr.rel (%p539) target = $region68
        $region67: #{tpu_custom_call.1} parent=11 // pred_region
          _
        $region68: #{tpu_custom_call.1} parent=11 // pred_fallthru
          _
        // Predicated region
        $region69: #{tpu_custom_call.1} parent=11 // pred_check
          %p542 = pneg %p396
        $region70: #{tpu_custom_call.1} parent=11 // pred_check_branch
          %544 = sbr.rel (%p542) target = $region72
        $region71: #{tpu_custom_call.1} parent=11 // pred_region
          _
        $region72: #{tpu_custom_call.1} parent=11 // pred_fallthru
          _
        // Predicated region
        $region73: #{tpu_custom_call.1} parent=11 // pred_check
          %p545 = pneg %p417
        $region74: #{tpu_custom_call.1} parent=11 // pred_check_branch
          %547 = sbr.rel (%p545) target = $region76
        $region75: #{tpu_custom_call.1} parent=11 // pred_region
          _
        $region76: #{tpu_custom_call.1} parent=11 // pred_fallthru
          _
        // Predicated region
        $region77: #{tpu_custom_call.1} parent=11 // pred_check
          %p548 = pneg %p438
        $region78: #{tpu_custom_call.1} parent=11 // pred_check_branch
          %550 = sbr.rel (%p548) target = $region80
        $region79: #{tpu_custom_call.1} parent=11 // pred_region
          _
        $region80: #{tpu_custom_call.1} parent=11 // pred_fallthru
          _
        // Predicated region
        $region81: #{tpu_custom_call.1} parent=11 // pred_check
          %p551 = pneg %p459
        $region82: #{tpu_custom_call.1} parent=11 // pred_check_branch
          %553 = sbr.rel (%p551) target = $region84
        $region83: #{tpu_custom_call.1} parent=11 // pred_region
          _
        $region84: #{tpu_custom_call.1} parent=11 // pred_fallthru
          _
      $region12: #{tpu_custom_call.1} parent=5 // pred_fallthru
        _
      %p554 = scmp.lt.s32.totalorder %s29, 2
      // Predicated region
      $region85: #{tpu_custom_call.1} parent=5 // pred_check
        %p555 = pneg %p554
      $region86: #{tpu_custom_call.1} parent=5 // pred_check_branch
        %557 = sbr.rel (%p555) target = $region88
      $region87: #{tpu_custom_call.1} parent=5 // pred_region
        // Predicated region
        $region89: #{tpu_custom_call.1} parent=87 // pred_check
          %p558 = pneg %p49
        $region90: #{tpu_custom_call.1} parent=87 // pred_check_branch
          %560 = sbr.rel (%p558) target = $region92
        $region91: #{tpu_custom_call.1} parent=87 // pred_region
          %p561 = scmp.lt.s32.totalorder %s29, 1
          %s562 = scalar_select %p561, %s29, 1
          %s563 = smul.addr %s562, 2
          %s564 = scalar_lea.vmem %s0, %s563
        $region92: #{tpu_custom_call.1} parent=87 // pred_fallthru
          _
        // Predicated region
        $region93: #{tpu_custom_call.1} parent=87 // pred_check
          %p565 = pneg %p75
        $region94: #{tpu_custom_call.1} parent=87 // pred_check_branch
          %567 = sbr.rel (%p565) target = $region96
        $region95: #{tpu_custom_call.1} parent=87 // pred_region
          %p568 = scmp.lt.s32.totalorder %s29, 1
          %s569 = scalar_select %p568, %s29, 1
          %s570 = smul.addr %s569, 2
          %s571 = smul.addr %s570, 2
          %s572 = scalar_lea.vmem %s1, %s571
        $region96: #{tpu_custom_call.1} parent=87 // pred_fallthru
          _
      $region88: #{tpu_custom_call.1} parent=5 // pred_fallthru
        _
      %p573 = scmp.le.s32.totalorder 1, %s29
      %p574 = scmp.lt.s32.totalorder %s29, 3
      %p575 = pnand %p573, %p574
      %p576 = pneg %p575
      // Predicated region
      $region97: #{tpu_custom_call.1} parent=5 // pred_check
        _
      $region98: #{tpu_custom_call.1} parent=5 // pred_check_branch
        %578 = sbr.rel (%p575) target = $region100
      $region99: #{tpu_custom_call.1} parent=5 // pred_region
        %s579 = ssub.s32 %s29, 1
        %p580 = scmp.lt.s32.totalorder %s34, 1
        %s581 = scalar_select %p580, %s34, 1
        %s582 = smul.addr %s581, 2
        %s583 = scalar_lea.vmem %s0, %s582
        %p584 = pneg %p55
        %p585 = pneg %p52
        %p586 = scmp.lt.s32.totalorder %s34, 1
        %s587 = scalar_select %p586, %s34, 1
        %s588 = smul.addr %s587, 2
        %s589 = smul.addr %s588, 2
        %s590 = scalar_lea.vmem %s1, %s589
        %p591 = pneg %p81
        %p592 = pneg %p78
        %p593 = pneg %p102
        %p594 = pneg %p99
        %p595 = pneg %p123
        %p596 = pneg %p120
        %p597 = pneg %p144
        %p598 = pneg %p141
        %p599 = pneg %p165
        %p600 = pneg %p162
        %p601 = pneg %p186
        %p602 = pneg %p183
        %p603 = pneg %p207
        %p604 = pneg %p204
        %p605 = pneg %p228
        %p606 = pneg %p225
        %p607 = pneg %p249
        %p608 = pneg %p246
        %p609 = pneg %p270
        %p610 = pneg %p267
        %p611 = pneg %p291
        %p612 = pneg %p288
        %p613 = pneg %p312
        %p614 = pneg %p309
        %p615 = pneg %p333
        %p616 = pneg %p330
        %p617 = pneg %p354
        %p618 = pneg %p351
        %p619 = pneg %p375
        %p620 = pneg %p372
        %p621 = pneg %p396
        %p622 = pneg %p393
        %p623 = pneg %p417
        %p624 = pneg %p414
        %p625 = pneg %p438
        %p626 = pneg %p435
        %p627 = pneg %p459
        %p628 = pneg %p456
        %p629 = pneg %p485
        %p630 = pneg %p482
        %s631 = sand.u32 %s472, 1
        %s632 = scalar_lea.sflag [#allocation4], %s631
        %s633 = sand.u32 %s472, 1
        %s634 = smul.addr %s633, 8
        %s635 = scalar_lea.vmem [#allocation3], %s634
        %p636 = scmp.lt.s32.totalorder %s34, 1
        %s637 = scalar_select %p636, %s34, 1
        %s638 = smul.addr %s637, 2
        %s639 = scalar_lea.vmem %s0, %s638
        %p640 = scmp.lt.s32.totalorder %s34, 1
        %s641 = scalar_select %p640, %s34, 1
        %s642 = smul.addr %s641, 2
        %s643 = smul.addr %s642, 2
        %s644 = scalar_lea.vmem %s1, %s643
        %646 = vst [vmem:[#allocation2] sm:$0xff] 0.0
        %647 = vst [vmem:[#allocation2 + $0x18] sm:$0xff] 0.0
        %v648 = vld [vmem:[%s639] sm:$0x3]
        %v649 = vld [vmem:[%s2] sm:$0xff]
        %v650 = vld [vmem:[%s2 + $0x8] sm:$0xff]
        %v651 = vld [vmem:[%s2 + $0x10] sm:$0xff]
        %v652 = vld [vmem:[%s2 + $0x18] sm:$0xff]
        %v653 = vld [vmem:[%s2 + $0x20] sm:$0xff]
        %v654 = vld [vmem:[%s2 + $0x28] sm:$0xff]
        %v655 = vld [vmem:[%s2 + $0x30] sm:$0xff]
        %v656 = vld [vmem:[%s2 + $0x38] sm:$0xff]
        %v665 = vunpack.c.l.b16 %v649
        %v666 = vunpack.c.h.b16 %v649
        %v667 = vunpack.c.l.b16 %v650
        %v668 = vunpack.c.h.b16 %v650
        %v669 = vunpack.c.l.b16 %v651
        %v670 = vunpack.c.h.b16 %v651
        %v671 = vunpack.c.l.b16 %v652
        %v672 = vunpack.c.h.b16 %v652
        %v673 = vunpack.c.l.b16 %v653
        %v674 = vunpack.c.h.b16 %v653
        %v675 = vunpack.c.l.b16 %v654
        %v676 = vunpack.c.h.b16 %v654
        %v677 = vunpack.c.l.b16 %v655
        %v678 = vunpack.c.h.b16 %v655
        %v679 = vunpack.c.l.b16 %v656
        %v680 = vunpack.c.h.b16 %v656
        %v681 = vpack.c.b16 %v667, %v665
        %v682 = vpack.c.b16 %v668, %v666
        %v683 = vpack.c.b16 %v671, %v669
        %v684 = vpack.c.b16 %v672, %v670
        %v685 = vpack.c.b16 %v675, %v673
        %v686 = vpack.c.b16 %v676, %v674
        %v687 = vpack.c.b16 %v679, %v677
        %v688 = vpack.c.b16 %v680, %v678
        %vm697 = vcmask 523264
        %v699 = vsel %vm697, %v648, 0
        %701 = vmatprep.subr.bf16.mxu0 0
        %702 = vmatpush1.bf16.msra.mxu0 0
        %703 = vmatprep.subr.bf16.mxu0 0
        %704 = vmatpush1.bf16.msra.mxu0 0
        %705 = vmatprep.subr.bf16.mxu0 0
        %706 = vmatpush1.bf16.msra.mxu0 0
        %707 = vmatprep.subr.bf16.mxu0 0
        %708 = vmatpush1.bf16.msra.mxu0 0
        %709 = vmatprep.subr.bf16.mxu0 %v688
        %710 = vmatpush1.bf16.msra.mxu0 %v687
        %711 = vmatprep.subr.bf16.mxu0 %v686
        %712 = vmatpush1.bf16.msra.mxu0 %v685
        %713 = vmatprep.subr.bf16.mxu0 %v684
        %714 = vmatpush1.bf16.msra.mxu0 %v683
        %715 = vmatprep.subr.bf16.mxu0 %v682
        %716 = vmatpush1.bf16.msra.mxu0 %v681
        %717 = vmatprep.subr.bf16.mxu0 0
        %718 = vmatpush2.bf16.msra.mxu0 0
        %719 = vmatprep.subr.bf16.mxu0 0
        %720 = vmatpush2.bf16.msra.mxu0 0
        %721 = vmatprep.subr.bf16.mxu0 0
        %722 = vmatpush2.bf16.msra.mxu0 0
        %723 = vmatprep.subr.bf16.mxu0 0
        %724 = vmatpush2.bf16.msra.mxu0 0
        %725 = vmatprep.subr.bf16.mxu0 0
        %726 = vmatpush2.bf16.msra.mxu0 0
        %727 = vmatprep.subr.bf16.mxu0 0
        %728 = vmatpush2.bf16.msra.mxu0 0
        %729 = vmatprep.subr.bf16.mxu0 0
        %730 = vmatpush2.bf16.msra.mxu0 0
        %731 = vmatprep.subr.bf16.mxu0 0
        %732 = vmatpush2.bf16.msra.mxu0 0
        %733 = vmatprep.mubr.bf16.mxu0 0
        %734 = vmatmul.mubr.bf16.gmra.mxu0 %v699
        %v735 = vpop.f32.mrf.mxu0
        %v736 = vadd.f32 0.0, %v735
        %v737 = vpop.f32.mrf.mxu0
        %v738 = vadd.f32 0.0, %v737
        %v739 = vpop.f32.mrf.mxu0
        %v740 = vpop.f32.mrf.mxu0
        %741 = vdwg.mxu0
        %v742 = vld [vmem:[%s5] sm:$0x3]
        %v743 = vld [vmem:[%s644] sm:$0xf]
        %v744 = vld [vmem:[%s6] sm:$0xf]
        %746 = vset.pattern.permute.xlu0 0
        %747 = vperm.xlu0 %746, %v744
        %v748 = vpop.permute.xlu0 %747
        %v752 = vunpack.c.l.s4 1983009808
        %v753 = vunpack.c.0.s8 %v752
        %v754 = vlaneseq
        %v755 = vshrl.u32 %v754, 7
        %v756 = vsub.s32 %v753, %v755
        %v757 = vrot.slane %v743, %v756
        %v758 = vcombine.high %v757, %v757
        %vm759 = vcmask 31744
        %v761 = vsel %vm759, %v742, 0
        %vm763 = vcmask 1041408
        %v765 = vsel %vm763, %v757, 0
        %v768 = vsel %vm763, %v758, 0
        %770 = vmatprep.subr.bf16.mxu0 0
        %771 = vmatpush1.bf16.msra.mxu0 0
        %772 = vmatprep.subr.bf16.mxu0 0
        %773 = vmatpush1.bf16.msra.mxu0 0
        %774 = vmatprep.subr.bf16.mxu0 0
        %775 = vmatpush1.bf16.msra.mxu0 0
        %776 = vmatprep.subr.bf16.mxu0 0
        %777 = vmatpush1.bf16.msra.mxu0 0
        %778 = vmatprep.subr.bf16.mxu0 0
        %779 = vmatpush1.bf16.msra.mxu0 0
        %780 = vmatprep.subr.bf16.mxu0 0
        %781 = vmatpush1.bf16.msra.mxu0 0
        %782 = vmatprep.subr.bf16.mxu0 0
        %783 = vmatpush1.bf16.msra.mxu0 0
        %784 = vmatprep.subr.bf16.mxu0 %v768
        %785 = vmatpush1.bf16.msra.mxu0 %v765
        %786 = vmatprep.subr.bf16.mxu0 0
        %787 = vmatpush2.bf16.msra.mxu0 0
        %788 = vmatprep.subr.bf16.mxu0 0
        %789 = vmatpush2.bf16.msra.mxu0 0
        %790 = vmatprep.subr.bf16.mxu0 0
        %791 = vmatpush2.bf16.msra.mxu0 0
        %792 = vmatprep.subr.bf16.mxu0 0
        %793 = vmatpush2.bf16.msra.mxu0 0
        %794 = vmatprep.subr.bf16.mxu0 0
        %795 = vmatpush2.bf16.msra.mxu0 0
        %796 = vmatprep.subr.bf16.mxu0 0
        %797 = vmatpush2.bf16.msra.mxu0 0
        %798 = vmatprep.subr.bf16.mxu0 0
        %799 = vmatpush2.bf16.msra.mxu0 0
        %800 = vmatprep.subr.bf16.mxu0 0
        %801 = vmatpush2.bf16.msra.mxu0 0
        %802 = vmatprep.mubr.bf16.mxu0 0
        %803 = vmatmul.mubr.bf16.gmra.mxu0 %v761
        %v804 = vpop.f32.mrf.mxu0
        %v805 = vadd.f32 %v748, %v804
        %v806 = vpop.f32.mrf.mxu0
        %v807 = vadd.f32 %v748, %v806
        %v808 = vpop.f32.mrf.mxu0
        %v809 = vpop.f32.mrf.mxu0
        %810 = vdwg.mxu0
        %vm811 = vcmask 1043456
        %v812 = vsel %vm811, %v805, 0.0
        %v813 = vsel %vm811, %v807, 0.0
        %v814 = vadd.f32 %v812, %v813
        %815 = vadd.xlane.f32.xlu0 %v814
        %v816 = vpop.xlane.xlu0 %815
        %v817 = vsel %vm811, %v816, 0.0
        %v818 = vrot.slane %v817, 4
        %v819 = vadd.f32 %v817, %v818
        %v820 = vrot.slane %v819, 2
        %v821 = vadd.f32 %v819, %v820
        %v822 = vrot.slane %v821, 1
        %v823 = vadd.f32 %v821, %v822
        %v824 = vmul.f32 %v823, 0.0009765625
        %v825 = vmul.f32 %v805, %v805
        %v826 = vmul.f32 %v807, %v807
        %v827 = vsel %vm811, %v825, 0.0
        %v828 = vsel %vm811, %v826, 0.0
        %v829 = vadd.f32 %v827, %v828
        %830 = vadd.xlane.f32.xlu0 %v829
        %v831 = vpop.xlane.xlu0 %830
        %v832 = vsel %vm811, %v831, 0.0
        %v833 = vrot.slane %v832, 4
        %v834 = vadd.f32 %v832, %v833
        %v835 = vrot.slane %v834, 2
        %v836 = vadd.f32 %v834, %v835
        %v837 = vrot.slane %v836, 1
        %v838 = vadd.f32 %v836, %v837
        %v839 = vmul.f32 %v838, 0.0009765625
        %v840 = vmul.f32 %v824, %v824
        %v841 = vsub.f32 %v839, %v840
        %v842 = vadd.f32 %v841, 1e-05
        %v843 = vrsqrt.pop %v842
        %v844 = vsub.f32 %v805, %v824
        %v845 = vsub.f32 %v807, %v824
        %v846 = vmul.f32 %v844, %v843
        %v847 = vmul.f32 %v845, %v843
        %v848 = vld [vmem:[%s7] sm:$0xf]
        %850 = vset.pattern.permute.xlu0 0
        %851 = vperm.xlu0 %850, %v848
        %v852 = vpop.permute.xlu0 %851
        %v854 = vmul.f32 %v846, %v852
        %v855 = vmul.f32 %v847, %v852
        %v856 = vld [vmem:[%s8] sm:$0xf]
        %858 = vset.pattern.permute.xlu0 0
        %859 = vperm.xlu0 %858, %v856
        %v860 = vpop.permute.xlu0 %859
        %v862 = vadd.f32 %v854, %v860
        %v863 = vadd.f32 %v855, %v860
        %vm864 = vcmp.ge.f32.partialorder %v862, 0.0
        %vm865 = vcmp.ge.f32.partialorder %v863, 0.0
        %v866 = vmul.f32 %v862, 0.2
        %v867 = vmul.f32 %v863, 0.2
        %v868 = vsel %vm864, %v862, %v866
        %v869 = vsel %vm865, %v863, %v867
        %v870 = vsel %vm811, %v736, 0.0
        %v871 = vsel %vm811, %v738, 0.0
        %v872 = vadd.f32 %v870, %v871
        %873 = vadd.xlane.f32.xlu0 %v872
        %v874 = vpop.xlane.xlu0 %873
        %v875 = vsel %vm811, %v874, 0.0
        %v876 = vrot.slane %v875, 4
        %v877 = vadd.f32 %v875, %v876
        %v878 = vrot.slane %v877, 2
        %v879 = vadd.f32 %v877, %v878
        %v880 = vrot.slane %v879, 1
        %v881 = vadd.f32 %v879, %v880
        %v882 = vsel %vm811, %v868, 0.0
        %v883 = vsel %vm811, %v869, 0.0
        %v884 = vadd.f32 %v882, %v883
        %885 = vadd.xlane.f32.xlu0 %v884
        %v886 = vpop.xlane.xlu0 %885
        %v887 = vsel %vm811, %v886, 0.0
        %v888 = vrot.slane %v887, 4
        %v889 = vadd.f32 %v887, %v888
        %v890 = vrot.slane %v889, 2
        %v891 = vadd.f32 %v889, %v890
        %v892 = vrot.slane %v891, 1
        %v893 = vadd.f32 %v891, %v892
        %v894 = vadd.f32 %v881, %v893
        %v895 = vmul.f32 %v894, 0.00048828125
        %v896 = vmul.f32 %v736, %v736
        %v897 = vmul.f32 %v738, %v738
        %v898 = vsel %vm811, %v896, 0.0
        %v899 = vsel %vm811, %v897, 0.0
        %v900 = vadd.f32 %v898, %v899
        %901 = vadd.xlane.f32.xlu0 %v900
        %v902 = vpop.xlane.xlu0 %901
        %v903 = vsel %vm811, %v902, 0.0
        %v904 = vrot.slane %v903, 4
        %v905 = vadd.f32 %v903, %v904
        %v906 = vrot.slane %v905, 2
        %v907 = vadd.f32 %v905, %v906
        %v908 = vrot.slane %v907, 1
        %v909 = vadd.f32 %v907, %v908
        %v910 = vmul.f32 %v868, %v868
        %v911 = vmul.f32 %v869, %v869
        %v912 = vsel %vm811, %v910, 0.0
        %v913 = vsel %vm811, %v911, 0.0
        %v914 = vadd.f32 %v912, %v913
        %915 = vadd.xlane.f32.xlu0 %v914
        %v916 = vpop.xlane.xlu0 %915
        %v917 = vsel %vm811, %v916, 0.0
        %v918 = vrot.slane %v917, 4
        %v919 = vadd.f32 %v917, %v918
        %v920 = vrot.slane %v919, 2
        %v921 = vadd.f32 %v919, %v920
        %v922 = vrot.slane %v921, 1
        %v923 = vadd.f32 %v921, %v922
        %v924 = vadd.f32 %v909, %v923
        %v925 = vmul.f32 %v924, 0.00048828125
        %v926 = vmul.f32 %v895, %v895
        %v927 = vsub.f32 %v925, %v926
        %v928 = vadd.f32 %v927, 1e-05
        %v929 = vrsqrt.pop %v928
        %v930 = vsub.f32 %v736, %v895
        %v931 = vsub.f32 %v738, %v895
        %v932 = vmul.f32 %v930, %v929
        %v933 = vmul.f32 %v931, %v929
        %v934 = vld [vmem:[%s9] sm:$0xf]
        %936 = vset.pattern.permute.xlu0 0
        %937 = vperm.xlu0 %936, %v934
        %v938 = vpop.permute.xlu0 %937
        %v940 = vmul.f32 %v932, %v938
        %v941 = vmul.f32 %v933, %v938
        %v942 = vld [vmem:[%s10] sm:$0xf]
        %944 = vset.pattern.permute.xlu0 0
        %945 = vperm.xlu0 %944, %v942
        %v946 = vpop.permute.xlu0 %945
        %v948 = vadd.f32 %v940, %v946
        %v949 = vadd.f32 %v941, %v946
        %950 = vst [vmem:[#allocation2 + $0x8] sm:$0xf] %v948
        %951 = vst [vmem:[#allocation2 + $0x10] sm:$0xf] %v949
        %v952 = vsub.f32 %v868, %v895
        %v953 = vsub.f32 %v869, %v895
        %v954 = vmul.f32 %v952, %v929
        %v955 = vmul.f32 %v953, %v929
        %v956 = vld [vmem:[%s9 + $0x4] sm:$0xf]
        %958 = vset.pattern.permute.xlu0 0
        %959 = vperm.xlu0 %958, %v956
        %v960 = vpop.permute.xlu0 %959
        %v962 = vmul.f32 %v954, %v960
        %v963 = vmul.f32 %v955, %v960
        %v964 = vld [vmem:[%s10 + $0x4] sm:$0xf]
        %966 = vset.pattern.permute.xlu0 0
        %967 = vperm.xlu0 %966, %v964
        %v968 = vpop.permute.xlu0 %967
        %v970 = vadd.f32 %v962, %v968
        %v971 = vadd.f32 %v963, %v968
        %v974 = vrot.slane %v970, 4
        %v975 = vrot.slane %v971, 4
        %978 = vst [vmem:[#allocation2 + $0x8] sm:$0xf0] %v974
        %979 = vst [vmem:[#allocation2 + $0x10] sm:$0xf0] %v975
        %v980 = vld [vmem:[#allocation2] sm:$0xff]
        %v981 = vld [vmem:[#allocation2 + $0x8] sm:$0xff]
        %v982 = vld [vmem:[#allocation2 + $0x10] sm:$0xff]
        %v983 = vld [vmem:[%s3] sm:$0x3]
        %v985 = vlaneseq
        %v986 = vshrl.u32 %v985, 7
        %v987 = vsub.s32 0, %v986
        %v988 = vrot.slane %v983, %v987
        %v989 = vlaneseq
        %v990 = vshrl.u32 %v989, 7
        %v991 = vsub.s32 1, %v990
        %v992 = vrot.slane %v983, %v991
        %993 = vrot.lane.b32.xlu0 %v988, 111
        %v994 = vpop.permute.xlu0 %993
        %995 = vrot.lane.b32.xlu0 %v992, 111
        %v996 = vpop.permute.xlu0 %995
        %vm997 = vcmask 908288
        %v998 = vsel %vm997, %v994, %v996
        %v1002 = vmul.f32 %v980, %v994
        %v1003 = vmul.f32 %v981, %v998
        %v1004 = vmul.f32 %v982, %v996
        %v1005 = vld [vmem:[%s11] sm:$0x3]
        %v1006 = vpack.c.bf16 %v1002, %v1002
        %v1007 = vpack.c.bf16 %v1003, %v1003
        %v1008 = vpack.c.bf16 %v1004, %v1004
        %s1009 = scalar_lea.vmem %s11, 2
        %v1010 = vld [vmem:[%s1009] sm:$0x3]
        %v1011 = vpack.c.bf16 %v980, %v980
        %v1012 = vpack.c.bf16 %v981, %v981
        %v1013 = vpack.c.bf16 %v982, %v982
        %1017 = vrot.lane.b32.xlu0 %v1011, 16
        %v1018 = vpop.permute.xlu0 %1017
        %1019 = vrot.lane.b32.xlu0 %v1012, 16
        %v1020 = vpop.permute.xlu0 %1019
        %1021 = vrot.lane.b32.xlu0 %v1013, 16
        %v1022 = vpop.permute.xlu0 %1021
        %vm1023 = vcmask 130048
        %v1024 = vsel %vm1023, %v1018, %v1020
        %v1025 = vsel %vm1023, %v1020, %v1022
        %vm1026 = vcmask 64512
        %v1028 = vsel %vm1026, %v1010, 0
        %v1031 = vsel %vm811, %v1024, 0
        %v1034 = vsel %vm811, %v1025, 0
        %1036 = vmatprep.subr.bf16.mxu0 0
        %1037 = vmatpush1.bf16.msra.mxu0 0
        %1038 = vmatprep.subr.bf16.mxu0 0
        %1039 = vmatpush1.bf16.msra.mxu0 0
        %1040 = vmatprep.subr.bf16.mxu0 0
        %1041 = vmatpush1.bf16.msra.mxu0 0
        %1042 = vmatprep.subr.bf16.mxu0 0
        %1043 = vmatpush1.bf16.msra.mxu0 0
        %1044 = vmatprep.subr.bf16.mxu0 0
        %1045 = vmatpush1.bf16.msra.mxu0 0
        %1046 = vmatprep.subr.bf16.mxu0 0
        %1047 = vmatpush1.bf16.msra.mxu0 0
        %1048 = vmatprep.subr.bf16.mxu0 0
        %1049 = vmatpush1.bf16.msra.mxu0 0
        %1050 = vmatprep.subr.bf16.mxu0 %v1034
        %1051 = vmatpush1.bf16.msra.mxu0 %v1031
        %1052 = vmatprep.subr.bf16.mxu0 0
        %1053 = vmatpush2.bf16.msra.mxu0 0
        %1054 = vmatprep.subr.bf16.mxu0 0
        %1055 = vmatpush2.bf16.msra.mxu0 0
        %1056 = vmatprep.subr.bf16.mxu0 0
        %1057 = vmatpush2.bf16.msra.mxu0 0
        %1058 = vmatprep.subr.bf16.mxu0 0
        %1059 = vmatpush2.bf16.msra.mxu0 0
        %1060 = vmatprep.subr.bf16.mxu0 0
        %1061 = vmatpush2.bf16.msra.mxu0 0
        %1062 = vmatprep.subr.bf16.mxu0 0
        %1063 = vmatpush2.bf16.msra.mxu0 0
        %1064 = vmatprep.subr.bf16.mxu0 0
        %1065 = vmatpush2.bf16.msra.mxu0 0
        %1066 = vmatprep.subr.bf16.mxu0 0
        %1067 = vmatpush2.bf16.msra.mxu0 0
        %1068 = vmatprep.mubr.bf16.mxu0 0
        %1069 = vmatmul.mubr.bf16.gmra.mxu0 %v1028
        %v1070 = vpop.f32.mrf.mxu0
        %v1071 = vadd.f32 0.0, %v1070
        %v1072 = vpop.f32.mrf.mxu0
        %v1073 = vadd.f32 0.0, %v1072
        %v1074 = vpop.f32.mrf.mxu0
        %v1075 = vpop.f32.mrf.mxu0
        %1076 = vdwg.mxu0
        %1080 = vrot.lane.b32.xlu0 %v1006, 17
        %v1081 = vpop.permute.xlu0 %1080
        %1082 = vrot.lane.b32.xlu0 %v1007, 17
        %v1083 = vpop.permute.xlu0 %1082
        %1084 = vrot.lane.b32.xlu0 %v1008, 17
        %v1085 = vpop.permute.xlu0 %1084
        %vm1086 = vcmask 138240
        %v1087 = vsel %vm1086, %v1081, %v1083
        %v1088 = vsel %vm1086, %v1083, %v1085
        %v1090 = vsel %vm1026, %v1005, 0
        %v1093 = vsel %vm811, %v1087, 0
        %v1096 = vsel %vm811, %v1088, 0
        %1098 = vmatprep.subr.bf16.mxu0 0
        %1099 = vmatpush1.bf16.msra.mxu0 0
        %1100 = vmatprep.subr.bf16.mxu0 0
        %1101 = vmatpush1.bf16.msra.mxu0 0
        %1102 = vmatprep.subr.bf16.mxu0 0
        %1103 = vmatpush1.bf16.msra.mxu0 0
        %1104 = vmatprep.subr.bf16.mxu0 0
        %1105 = vmatpush1.bf16.msra.mxu0 0
        %1106 = vmatprep.subr.bf16.mxu0 0
        %1107 = vmatpush1.bf16.msra.mxu0 0
        %1108 = vmatprep.subr.bf16.mxu0 0
        %1109 = vmatpush1.bf16.msra.mxu0 0
        %1110 = vmatprep.subr.bf16.mxu0 0
        %1111 = vmatpush1.bf16.msra.mxu0 0
        %1112 = vmatprep.subr.bf16.mxu0 %v1096
        %1113 = vmatpush1.bf16.msra.mxu0 %v1093
        %1114 = vmatprep.subr.bf16.mxu0 0
        %1115 = vmatpush2.bf16.msra.mxu0 0
        %1116 = vmatprep.subr.bf16.mxu0 0
        %1117 = vmatpush2.bf16.msra.mxu0 0
        %1118 = vmatprep.subr.bf16.mxu0 0
        %1119 = vmatpush2.bf16.msra.mxu0 0
        %1120 = vmatprep.subr.bf16.mxu0 0
        %1121 = vmatpush2.bf16.msra.mxu0 0
        %1122 = vmatprep.subr.bf16.mxu0 0
        %1123 = vmatpush2.bf16.msra.mxu0 0
        %1124 = vmatprep.subr.bf16.mxu0 0
        %1125 = vmatpush2.bf16.msra.mxu0 0
        %1126 = vmatprep.subr.bf16.mxu0 0
        %1127 = vmatpush2.bf16.msra.mxu0 0
        %1128 = vmatprep.subr.bf16.mxu0 0
        %1129 = vmatpush2.bf16.msra.mxu0 0
        %1130 = vmatprep.mubr.bf16.mxu0 0
        %1131 = vmatmul.mubr.bf16.gmra.mxu0 %v1090
        %v1132 = vpop.f32.mrf.mxu0
        %v1133 = vadd.f32 %v1071, %v1132
        %v1134 = vpop.f32.mrf.mxu0
        %v1135 = vadd.f32 %v1073, %v1134
        %v1136 = vpop.f32.mrf.mxu0
        %v1137 = vpop.f32.mrf.mxu0
        %1138 = vdwg.mxu0
        %v1139 = vld [vmem:[%s4] sm:$0x3]
        %v1141 = vlaneseq
        %v1142 = vshrl.u32 %v1141, 7
        %v1143 = vsub.s32 0, %v1142
        %v1144 = vrot.slane %v1139, %v1143
        %v1145 = vlaneseq
        %v1146 = vshrl.u32 %v1145, 7
        %v1147 = vsub.s32 1, %v1146
        %v1148 = vrot.slane %v1139, %v1147
        %1149 = vrot.lane.b32.xlu0 %v1144, 113
        %v1150 = vpop.permute.xlu0 %1149
        %1151 = vrot.lane.b32.xlu0 %v1148, 113
        %v1152 = vpop.permute.xlu0 %1151
        %vm1153 = vcmask 924672
        %v1154 = vsel %vm1153, %v1150, %v1152
        %v1158 = vmul.f32 %v980, %v1150
        %v1159 = vmul.f32 %v981, %v1154
        %v1160 = vmul.f32 %v982, %v1152
        %s1161 = scalar_lea.vmem %s11, 4
        %v1162 = vld [vmem:[%s1161] sm:$0x3]
        %v1163 = vpack.c.bf16 %v1158, %v1158
        %v1164 = vpack.c.bf16 %v1159, %v1159
        %v1165 = vpack.c.bf16 %v1160, %v1160
        %1169 = vrot.lane.b32.xlu0 %v1163, 15
        %v1170 = vpop.permute.xlu0 %1169
        %1171 = vrot.lane.b32.xlu0 %v1164, 15
        %v1172 = vpop.permute.xlu0 %1171
        %1173 = vrot.lane.b32.xlu0 %v1165, 15
        %v1174 = vpop.permute.xlu0 %1173
        %vm1175 = vcmask 121856
        %v1176 = vsel %vm1175, %v1170, %v1172
        %v1177 = vsel %vm1175, %v1172, %v1174
        %v1179 = vsel %vm1026, %v1162, 0
        %v1182 = vsel %vm811, %v1176, 0
        %v1185 = vsel %vm811, %v1177, 0
        %1187 = vmatprep.subr.bf16.mxu0 0
        %1188 = vmatpush1.bf16.msra.mxu0 0
        %1189 = vmatprep.subr.bf16.mxu0 0
        %1190 = vmatpush1.bf16.msra.mxu0 0
        %1191 = vmatprep.subr.bf16.mxu0 0
        %1192 = vmatpush1.bf16.msra.mxu0 0
        %1193 = vmatprep.subr.bf16.mxu0 0
        %1194 = vmatpush1.bf16.msra.mxu0 0
        %1195 = vmatprep.subr.bf16.mxu0 0
        %1196 = vmatpush1.bf16.msra.mxu0 0
        %1197 = vmatprep.subr.bf16.mxu0 0
        %1198 = vmatpush1.bf16.msra.mxu0 0
        %1199 = vmatprep.subr.bf16.mxu0 0
        %1200 = vmatpush1.bf16.msra.mxu0 0
        %1201 = vmatprep.subr.bf16.mxu0 %v1185
        %1202 = vmatpush1.bf16.msra.mxu0 %v1182
        %1203 = vmatprep.subr.bf16.mxu0 0
        %1204 = vmatpush2.bf16.msra.mxu0 0
        %1205 = vmatprep.subr.bf16.mxu0 0
        %1206 = vmatpush2.bf16.msra.mxu0 0
        %1207 = vmatprep.subr.bf16.mxu0 0
        %1208 = vmatpush2.bf16.msra.mxu0 0
        %1209 = vmatprep.subr.bf16.mxu0 0
        %1210 = vmatpush2.bf16.msra.mxu0 0
        %1211 = vmatprep.subr.bf16.mxu0 0
        %1212 = vmatpush2.bf16.msra.mxu0 0
        %1213 = vmatprep.subr.bf16.mxu0 0
        %1214 = vmatpush2.bf16.msra.mxu0 0
        %1215 = vmatprep.subr.bf16.mxu0 0
        %1216 = vmatpush2.bf16.msra.mxu0 0
        %1217 = vmatprep.subr.bf16.mxu0 0
        %1218 = vmatpush2.bf16.msra.mxu0 0
        %1219 = vmatprep.mubr.bf16.mxu0 0
        %1220 = vmatmul.mubr.bf16.gmra.mxu0 %v1179
        %v1221 = vpop.f32.mrf.mxu0
        %v1222 = vadd.f32 0.0, %v1221
        %v1223 = vpop.f32.mrf.mxu0
        %v1224 = vadd.f32 0.0, %v1223
        %v1225 = vpop.f32.mrf.mxu0
        %v1226 = vpop.f32.mrf.mxu0
        %1227 = vdwg.mxu0
        %v1228 = vadd.f32 %v1133, %v1222
        %v1229 = vadd.f32 %v1135, %v1224
        %1230 = vrot.lane.b32.xlu0 %v988, 127
        %v1231 = vpop.permute.xlu0 %1230
        %1232 = vrot.lane.b32.xlu0 %v992, 127
        %v1233 = vpop.permute.xlu0 %1232
        %vm1234 = vcmask 1039360
        %v1235 = vsel %vm1234, %v1231, %v1233
        %v1239 = vmul.f32 %v980, %v1231
        %v1240 = vmul.f32 %v981, %v1235
        %v1241 = vmul.f32 %v982, %v1233
        %s1242 = scalar_lea.vmem %s11, 6
        %v1243 = vld [vmem:[%s1242] sm:$0x3]
        %v1244 = vpack.c.bf16 %v1239, %v1239
        %v1245 = vpack.c.bf16 %v1240, %v1240
        %v1246 = vpack.c.bf16 %v1241, %v1241
        %1250 = vrot.lane.b32.xlu0 %v1244, 1
        %v1251 = vpop.permute.xlu0 %1250
        %1252 = vrot.lane.b32.xlu0 %v1245, 1
        %v1253 = vpop.permute.xlu0 %1252
        %1254 = vrot.lane.b32.xlu0 %v1246, 1
        %v1255 = vpop.permute.xlu0 %1254
        %vm1256 = vcmask 7168
        %v1257 = vsel %vm1256, %v1251, %v1253
        %v1258 = vsel %vm1256, %v1253, %v1255
        %v1260 = vsel %vm1026, %v1243, 0
        %v1263 = vsel %vm811, %v1257, 0
        %v1266 = vsel %vm811, %v1258, 0
        %1268 = vmatprep.subr.bf16.mxu0 0
        %1269 = vmatpush1.bf16.msra.mxu0 0
        %1270 = vmatprep.subr.bf16.mxu0 0
        %1271 = vmatpush1.bf16.msra.mxu0 0
        %1272 = vmatprep.subr.bf16.mxu0 0
        %1273 = vmatpush1.bf16.msra.mxu0 0
        %1274 = vmatprep.subr.bf16.mxu0 0
        %1275 = vmatpush1.bf16.msra.mxu0 0
        %1276 = vmatprep.subr.bf16.mxu0 0
        %1277 = vmatpush1.bf16.msra.mxu0 0
        %1278 = vmatprep.subr.bf16.mxu0 0
        %1279 = vmatpush1.bf16.msra.mxu0 0
        %1280 = vmatprep.subr.bf16.mxu0 0
        %1281 = vmatpush1.bf16.msra.mxu0 0
        %1282 = vmatprep.subr.bf16.mxu0 %v1266
        %1283 = vmatpush1.bf16.msra.mxu0 %v1263
        %1284 = vmatprep.subr.bf16.mxu0 0
        %1285 = vmatpush2.bf16.msra.mxu0 0
        %1286 = vmatprep.subr.bf16.mxu0 0
        %1287 = vmatpush2.bf16.msra.mxu0 0
        %1288 = vmatprep.subr.bf16.mxu0 0
        %1289 = vmatpush2.bf16.msra.mxu0 0
        %1290 = vmatprep.subr.bf16.mxu0 0
        %1291 = vmatpush2.bf16.msra.mxu0 0
        %1292 = vmatprep.subr.bf16.mxu0 0
        %1293 = vmatpush2.bf16.msra.mxu0 0
        %1294 = vmatprep.subr.bf16.mxu0 0
        %1295 = vmatpush2.bf16.msra.mxu0 0
        %1296 = vmatprep.subr.bf16.mxu0 0
        %1297 = vmatpush2.bf16.msra.mxu0 0
        %1298 = vmatprep.subr.bf16.mxu0 0
        %1299 = vmatpush2.bf16.msra.mxu0 0
        %1300 = vmatprep.mubr.bf16.mxu0 0
        %1301 = vmatmul.mubr.bf16.gmra.mxu0 %v1260
        %v1302 = vpop.f32.mrf.mxu0
        %v1303 = vadd.f32 0.0, %v1302
        %v1304 = vpop.f32.mrf.mxu0
        %v1305 = vadd.f32 0.0, %v1304
        %v1306 = vpop.f32.mrf.mxu0
        %v1307 = vpop.f32.mrf.mxu0
        %1308 = vdwg.mxu0
        %v1309 = vadd.f32 %v1228, %v1303
        %v1310 = vadd.f32 %v1229, %v1305
        %s1311 = scalar_lea.vmem %s11, 8
        %v1312 = vld [vmem:[%s1311] sm:$0x3]
        %v1314 = vsel %vm1026, %v1312, 0
        %v1317 = vsel %vm811, %v1012, 0
        %v1320 = vsel %vm811, %v1013, 0
        %1322 = vmatprep.subr.bf16.mxu0 0
        %1323 = vmatpush1.bf16.msra.mxu0 0
        %1324 = vmatprep.subr.bf16.mxu0 0
        %1325 = vmatpush1.bf16.msra.mxu0 0
        %1326 = vmatprep.subr.bf16.mxu0 0
        %1327 = vmatpush1.bf16.msra.mxu0 0
        %1328 = vmatprep.subr.bf16.mxu0 0
        %1329 = vmatpush1.bf16.msra.mxu0 0
        %1330 = vmatprep.subr.bf16.mxu0 0
        %1331 = vmatpush1.bf16.msra.mxu0 0
        %1332 = vmatprep.subr.bf16.mxu0 0
        %1333 = vmatpush1.bf16.msra.mxu0 0
        %1334 = vmatprep.subr.bf16.mxu0 0
        %1335 = vmatpush1.bf16.msra.mxu0 0
        %1336 = vmatprep.subr.bf16.mxu0 %v1320
        %1337 = vmatpush1.bf16.msra.mxu0 %v1317
        %1338 = vmatprep.subr.bf16.mxu0 0
        %1339 = vmatpush2.bf16.msra.mxu0 0
        %1340 = vmatprep.subr.bf16.mxu0 0
        %1341 = vmatpush2.bf16.msra.mxu0 0
        %1342 = vmatprep.subr.bf16.mxu0 0
        %1343 = vmatpush2.bf16.msra.mxu0 0
        %1344 = vmatprep.subr.bf16.mxu0 0
        %1345 = vmatpush2.bf16.msra.mxu0 0
        %1346 = vmatprep.subr.bf16.mxu0 0
        %1347 = vmatpush2.bf16.msra.mxu0 0
        %1348 = vmatprep.subr.bf16.mxu0 0
        %1349 = vmatpush2.bf16.msra.mxu0 0
        %1350 = vmatprep.subr.bf16.mxu0 0
        %1351 = vmatpush2.bf16.msra.mxu0 0
        %1352 = vmatprep.subr.bf16.mxu0 0
        %1353 = vmatpush2.bf16.msra.mxu0 0
        %1354 = vmatprep.mubr.bf16.mxu0 0
        %1355 = vmatmul.mubr.bf16.gmra.mxu0 %v1314
        %v1356 = vpop.f32.mrf.mxu0
        %v1357 = vadd.f32 0.0, %v1356
        %v1358 = vpop.f32.mrf.mxu0
        %v1359 = vadd.f32 0.0, %v1358
        %v1360 = vpop.f32.mrf.mxu0
        %v1361 = vpop.f32.mrf.mxu0
        %1362 = vdwg.mxu0
        %v1363 = vadd.f32 %v1309, %v1357
        %v1364 = vadd.f32 %v1310, %v1359
        %v1365 = vld [vmem:[#allocation2 + $0x8] sm:$0xff]
        %v1366 = vld [vmem:[#allocation2 + $0x10] sm:$0xff]
        %v1367 = vld [vmem:[#allocation2 + $0x18] sm:$0xff]
        %1368 = vrot.lane.b32.xlu0 %v1144, 1
        %v1369 = vpop.permute.xlu0 %1368
        %1370 = vrot.lane.b32.xlu0 %v1148, 1
        %v1371 = vpop.permute.xlu0 %1370
        %vm1372 = vcmask 7168
        %v1373 = vsel %vm1372, %v1369, %v1371
        %v1377 = vmul.f32 %v1365, %v1369
        %v1378 = vmul.f32 %v1366, %v1373
        %v1379 = vmul.f32 %v1367, %v1371
        %s1380 = scalar_lea.vmem %s11, 10
        %v1381 = vld [vmem:[%s1380] sm:$0x3]
        %v1382 = vpack.c.bf16 %v1377, %v1377
        %v1383 = vpack.c.bf16 %v1378, %v1378
        %v1384 = vpack.c.bf16 %v1379, %v1379
        %1388 = vrot.lane.b32.xlu0 %v1382, 127
        %v1389 = vpop.permute.xlu0 %1388
        %1390 = vrot.lane.b32.xlu0 %v1383, 127
        %v1391 = vpop.permute.xlu0 %1390
        %1392 = vrot.lane.b32.xlu0 %v1384, 127
        %v1393 = vpop.permute.xlu0 %1392
        %vm1394 = vcmask 1039360
        %v1395 = vsel %vm1394, %v1389, %v1391
        %v1396 = vsel %vm1394, %v1391, %v1393
        %v1398 = vsel %vm1026, %v1381, 0
        %v1401 = vsel %vm811, %v1395, 0
        %v1404 = vsel %vm811, %v1396, 0
        %1406 = vmatprep.subr.bf16.mxu0 0
        %1407 = vmatpush1.bf16.msra.mxu0 0
        %1408 = vmatprep.subr.bf16.mxu0 0
        %1409 = vmatpush1.bf16.msra.mxu0 0
        %1410 = vmatprep.subr.bf16.mxu0 0
        %1411 = vmatpush1.bf16.msra.mxu0 0
        %1412 = vmatprep.subr.bf16.mxu0 0
        %1413 = vmatpush1.bf16.msra.mxu0 0
        %1414 = vmatprep.subr.bf16.mxu0 0
        %1415 = vmatpush1.bf16.msra.mxu0 0
        %1416 = vmatprep.subr.bf16.mxu0 0
        %1417 = vmatpush1.bf16.msra.mxu0 0
        %1418 = vmatprep.subr.bf16.mxu0 0
        %1419 = vmatpush1.bf16.msra.mxu0 0
        %1420 = vmatprep.subr.bf16.mxu0 %v1404
        %1421 = vmatpush1.bf16.msra.mxu0 %v1401
        %1422 = vmatprep.subr.bf16.mxu0 0
        %1423 = vmatpush2.bf16.msra.mxu0 0
        %1424 = vmatprep.subr.bf16.mxu0 0
        %1425 = vmatpush2.bf16.msra.mxu0 0
        %1426 = vmatprep.subr.bf16.mxu0 0
        %1427 = vmatpush2.bf16.msra.mxu0 0
        %1428 = vmatprep.subr.bf16.mxu0 0
        %1429 = vmatpush2.bf16.msra.mxu0 0
        %1430 = vmatprep.subr.bf16.mxu0 0
        %1431 = vmatpush2.bf16.msra.mxu0 0
        %1432 = vmatprep.subr.bf16.mxu0 0
        %1433 = vmatpush2.bf16.msra.mxu0 0
        %1434 = vmatprep.subr.bf16.mxu0 0
        %1435 = vmatpush2.bf16.msra.mxu0 0
        %1436 = vmatprep.subr.bf16.mxu0 0
        %1437 = vmatpush2.bf16.msra.mxu0 0
        %1438 = vmatprep.mubr.bf16.mxu0 0
        %1439 = vmatmul.mubr.bf16.gmra.mxu0 %v1398
        %v1440 = vpop.f32.mrf.mxu0
        %v1441 = vadd.f32 0.0, %v1440
        %v1442 = vpop.f32.mrf.mxu0
        %v1443 = vadd.f32 0.0, %v1442
        %v1444 = vpop.f32.mrf.mxu0
        %v1445 = vpop.f32.mrf.mxu0
        %1446 = vdwg.mxu0
        %v1447 = vadd.f32 %v1363, %v1441
        %v1448 = vadd.f32 %v1364, %v1443
        %1449 = vrot.lane.b32.xlu0 %v988, 15
        %v1450 = vpop.permute.xlu0 %1449
        %1451 = vrot.lane.b32.xlu0 %v992, 15
        %v1452 = vpop.permute.xlu0 %1451
        %vm1453 = vcmask 121856
        %v1454 = vsel %vm1453, %v1450, %v1452
        %v1458 = vmul.f32 %v1365, %v1450
        %v1459 = vmul.f32 %v1366, %v1454
        %v1460 = vmul.f32 %v1367, %v1452
        %s1461 = scalar_lea.vmem %s11, 12
        %v1462 = vld [vmem:[%s1461] sm:$0x3]
        %v1463 = vpack.c.bf16 %v1458, %v1458
        %v1464 = vpack.c.bf16 %v1459, %v1459
        %v1465 = vpack.c.bf16 %v1460, %v1460
        %1469 = vrot.lane.b32.xlu0 %v1463, 113
        %v1470 = vpop.permute.xlu0 %1469
        %1471 = vrot.lane.b32.xlu0 %v1464, 113
        %v1472 = vpop.permute.xlu0 %1471
        %1473 = vrot.lane.b32.xlu0 %v1465, 113
        %v1474 = vpop.permute.xlu0 %1473
        %vm1475 = vcmask 924672
        %v1476 = vsel %vm1475, %v1470, %v1472
        %v1477 = vsel %vm1475, %v1472, %v1474
        %v1479 = vsel %vm1026, %v1462, 0
        %v1482 = vsel %vm811, %v1476, 0
        %v1485 = vsel %vm811, %v1477, 0
        %1487 = vmatprep.subr.bf16.mxu0 0
        %1488 = vmatpush1.bf16.msra.mxu0 0
        %1489 = vmatprep.subr.bf16.mxu0 0
        %1490 = vmatpush1.bf16.msra.mxu0 0
        %1491 = vmatprep.subr.bf16.mxu0 0
        %1492 = vmatpush1.bf16.msra.mxu0 0
        %1493 = vmatprep.subr.bf16.mxu0 0
        %1494 = vmatpush1.bf16.msra.mxu0 0
        %1495 = vmatprep.subr.bf16.mxu0 0
        %1496 = vmatpush1.bf16.msra.mxu0 0
        %1497 = vmatprep.subr.bf16.mxu0 0
        %1498 = vmatpush1.bf16.msra.mxu0 0
        %1499 = vmatprep.subr.bf16.mxu0 0
        %1500 = vmatpush1.bf16.msra.mxu0 0
        %1501 = vmatprep.subr.bf16.mxu0 %v1485
        %1502 = vmatpush1.bf16.msra.mxu0 %v1482
        %1503 = vmatprep.subr.bf16.mxu0 0
        %1504 = vmatpush2.bf16.msra.mxu0 0
        %1505 = vmatprep.subr.bf16.mxu0 0
        %1506 = vmatpush2.bf16.msra.mxu0 0
        %1507 = vmatprep.subr.bf16.mxu0 0
        %1508 = vmatpush2.bf16.msra.mxu0 0
        %1509 = vmatprep.subr.bf16.mxu0 0
        %1510 = vmatpush2.bf16.msra.mxu0 0
        %1511 = vmatprep.subr.bf16.mxu0 0
        %1512 = vmatpush2.bf16.msra.mxu0 0
        %1513 = vmatprep.subr.bf16.mxu0 0
        %1514 = vmatpush2.bf16.msra.mxu0 0
        %1515 = vmatprep.subr.bf16.mxu0 0
        %1516 = vmatpush2.bf16.msra.mxu0 0
        %1517 = vmatprep.subr.bf16.mxu0 0
        %1518 = vmatpush2.bf16.msra.mxu0 0
        %1519 = vmatprep.mubr.bf16.mxu0 0
        %1520 = vmatmul.mubr.bf16.gmra.mxu0 %v1479
        %v1521 = vpop.f32.mrf.mxu0
        %v1522 = vadd.f32 0.0, %v1521
        %v1523 = vpop.f32.mrf.mxu0
        %v1524 = vadd.f32 0.0, %v1523
        %v1525 = vpop.f32.mrf.mxu0
        %v1526 = vpop.f32.mrf.mxu0
        %1527 = vdwg.mxu0
        %v1528 = vadd.f32 %v1447, %v1522
        %v1529 = vadd.f32 %v1448, %v1524
        %s1530 = scalar_lea.vmem %s11, 14
        %v1531 = vld [vmem:[%s1530] sm:$0x3]
        %v1532 = vpack.c.bf16 %v1365, %v1365
        %v1533 = vpack.c.bf16 %v1366, %v1366
        %v1534 = vpack.c.bf16 %v1367, %v1367
        %1538 = vrot.lane.b32.xlu0 %v1532, 112
        %v1539 = vpop.permute.xlu0 %1538
        %1540 = vrot.lane.b32.xlu0 %v1533, 112
        %v1541 = vpop.permute.xlu0 %1540
        %1542 = vrot.lane.b32.xlu0 %v1534, 112
        %v1543 = vpop.permute.xlu0 %1542
        %vm1544 = vcmask 916480
        %v1545 = vsel %vm1544, %v1539, %v1541
        %v1546 = vsel %vm1544, %v1541, %v1543
        %v1548 = vsel %vm1026, %v1531, 0
        %v1551 = vsel %vm811, %v1545, 0
        %v1554 = vsel %vm811, %v1546, 0
        %1556 = vmatprep.subr.bf16.mxu0 0
        %1557 = vmatpush1.bf16.msra.mxu0 0
        %1558 = vmatprep.subr.bf16.mxu0 0
        %1559 = vmatpush1.bf16.msra.mxu0 0
        %1560 = vmatprep.subr.bf16.mxu0 0
        %1561 = vmatpush1.bf16.msra.mxu0 0
        %1562 = vmatprep.subr.bf16.mxu0 0
        %1563 = vmatpush1.bf16.msra.mxu0 0
        %1564 = vmatprep.subr.bf16.mxu0 0
        %1565 = vmatpush1.bf16.msra.mxu0 0
        %1566 = vmatprep.subr.bf16.mxu0 0
        %1567 = vmatpush1.bf16.msra.mxu0 0
        %1568 = vmatprep.subr.bf16.mxu0 0
        %1569 = vmatpush1.bf16.msra.mxu0 0
        %1570 = vmatprep.subr.bf16.mxu0 %v1554
        %1571 = vmatpush1.bf16.msra.mxu0 %v1551
        %1572 = vmatprep.subr.bf16.mxu0 0
        %1573 = vmatpush2.bf16.msra.mxu0 0
        %1574 = vmatprep.subr.bf16.mxu0 0
        %1575 = vmatpush2.bf16.msra.mxu0 0
        %1576 = vmatprep.subr.bf16.mxu0 0
        %1577 = vmatpush2.bf16.msra.mxu0 0
        %1578 = vmatprep.subr.bf16.mxu0 0
        %1579 = vmatpush2.bf16.msra.mxu0 0
        %1580 = vmatprep.subr.bf16.mxu0 0
        %1581 = vmatpush2.bf16.msra.mxu0 0
        %1582 = vmatprep.subr.bf16.mxu0 0
        %1583 = vmatpush2.bf16.msra.mxu0 0
        %1584 = vmatprep.subr.bf16.mxu0 0
        %1585 = vmatpush2.bf16.msra.mxu0 0
        %1586 = vmatprep.subr.bf16.mxu0 0
        %1587 = vmatpush2.bf16.msra.mxu0 0
        %1588 = vmatprep.mubr.bf16.mxu0 0
        %1589 = vmatmul.mubr.bf16.gmra.mxu0 %v1548
        %v1590 = vpop.f32.mrf.mxu0
        %v1591 = vadd.f32 0.0, %v1590
        %v1592 = vpop.f32.mrf.mxu0
        %v1593 = vadd.f32 0.0, %v1592
        %v1594 = vpop.f32.mrf.mxu0
        %v1595 = vpop.f32.mrf.mxu0
        %1596 = vdwg.mxu0
        %v1597 = vadd.f32 %v1528, %v1591
        %v1598 = vadd.f32 %v1529, %v1593
        %1599 = vrot.lane.b32.xlu0 %v1144, 17
        %v1600 = vpop.permute.xlu0 %1599
        %1601 = vrot.lane.b32.xlu0 %v1148, 17
        %v1602 = vpop.permute.xlu0 %1601
        %vm1603 = vcmask 138240
        %v1604 = vsel %vm1603, %v1600, %v1602
        %v1608 = vmul.f32 %v1365, %v1600
        %v1609 = vmul.f32 %v1366, %v1604
        %v1610 = vmul.f32 %v1367, %v1602
        %s1611 = scalar_lea.vmem %s11, 16
        %v1612 = vld [vmem:[%s1611] sm:$0x3]
        %v1613 = vpack.c.bf16 %v1608, %v1608
        %v1614 = vpack.c.bf16 %v1609, %v1609
        %v1615 = vpack.c.bf16 %v1610, %v1610
        %1619 = vrot.lane.b32.xlu0 %v1613, 111
        %v1620 = vpop.permute.xlu0 %1619
        %1621 = vrot.lane.b32.xlu0 %v1614, 111
        %v1622 = vpop.permute.xlu0 %1621
        %1623 = vrot.lane.b32.xlu0 %v1615, 111
        %v1624 = vpop.permute.xlu0 %1623
        %vm1625 = vcmask 908288
        %v1626 = vsel %vm1625, %v1620, %v1622
        %v1627 = vsel %vm1625, %v1622, %v1624
        %v1629 = vsel %vm1026, %v1612, 0
        %v1632 = vsel %vm811, %v1626, 0
        %v1635 = vsel %vm811, %v1627, 0
        %1637 = vmatprep.subr.bf16.mxu0 0
        %1638 = vmatpush1.bf16.msra.mxu0 0
        %1639 = vmatprep.subr.bf16.mxu0 0
        %1640 = vmatpush1.bf16.msra.mxu0 0
        %1641 = vmatprep.subr.bf16.mxu0 0
        %1642 = vmatpush1.bf16.msra.mxu0 0
        %1643 = vmatprep.subr.bf16.mxu0 0
        %1644 = vmatpush1.bf16.msra.mxu0 0
        %1645 = vmatprep.subr.bf16.mxu0 0
        %1646 = vmatpush1.bf16.msra.mxu0 0
        %1647 = vmatprep.subr.bf16.mxu0 0
        %1648 = vmatpush1.bf16.msra.mxu0 0
        %1649 = vmatprep.subr.bf16.mxu0 0
        %1650 = vmatpush1.bf16.msra.mxu0 0
        %1651 = vmatprep.subr.bf16.mxu0 %v1635
        %1652 = vmatpush1.bf16.msra.mxu0 %v1632
        %1653 = vmatprep.subr.bf16.mxu0 0
        %1654 = vmatpush2.bf16.msra.mxu0 0
        %1655 = vmatprep.subr.bf16.mxu0 0
        %1656 = vmatpush2.bf16.msra.mxu0 0
        %1657 = vmatprep.subr.bf16.mxu0 0
        %1658 = vmatpush2.bf16.msra.mxu0 0
        %1659 = vmatprep.subr.bf16.mxu0 0
        %1660 = vmatpush2.bf16.msra.mxu0 0
        %1661 = vmatprep.subr.bf16.mxu0 0
        %1662 = vmatpush2.bf16.msra.mxu0 0
        %1663 = vmatprep.subr.bf16.mxu0 0
        %1664 = vmatpush2.bf16.msra.mxu0 0
        %1665 = vmatprep.subr.bf16.mxu0 0
        %1666 = vmatpush2.bf16.msra.mxu0 0
        %1667 = vmatprep.subr.bf16.mxu0 0
        %1668 = vmatpush2.bf16.msra.mxu0 0
        %1669 = vmatprep.mubr.bf16.mxu0 0
        %1670 = vmatmul.mubr.bf16.gmra.mxu0 %v1629
        %v1671 = vpop.f32.mrf.mxu0
        %v1672 = vadd.f32 0.0, %v1671
        %v1673 = vpop.f32.mrf.mxu0
        %v1674 = vadd.f32 0.0, %v1673
        %v1675 = vpop.f32.mrf.mxu0
        %v1676 = vpop.f32.mrf.mxu0
        %1677 = vdwg.mxu0
        %v1678 = vadd.f32 %v1597, %v1672
        %v1679 = vadd.f32 %v1598, %v1674
        %v1680 = vld [vmem:[%s12] sm:$0xf]
        %1682 = vset.pattern.permute.xlu0 0
        %1683 = vperm.xlu0 %1682, %v1680
        %v1684 = vpop.permute.xlu0 %1683
        %v1686 = vadd.f32 %v1678, %v1684
        %v1687 = vadd.f32 %v1679, %v1684
        %v1688 = vsel %vm811, %v1686, 0.0
        %v1689 = vsel %vm811, %v1687, 0.0
        %v1690 = vadd.f32 %v1688, %v1689
        %1691 = vadd.xlane.f32.xlu0 %v1690
        %v1692 = vpop.xlane.xlu0 %1691
        %v1693 = vmul.f32 %v1686, %v1686
        %v1694 = vmul.f32 %v1687, %v1687
        %v1695 = vsel %vm811, %v1693, 0.0
        %v1696 = vsel %vm811, %v1694, 0.0
        %v1697 = vadd.f32 %v1695, %v1696
        %1698 = vadd.xlane.f32.xlu0 %v1697
        %v1699 = vpop.xlane.xlu0 %1698
        %v1700 = vld [vmem:[%s19] sm:$0xf]
        %v1701 = vmul.f32 %v1700, %v1692
        %v1702 = vadd.f32 %v1701, 0.0
        %vm1703 = vcmask 3072
        %v1704 = vsel %vm1703, %v1702, 0.0
        %v1705 = vrot.slane %v1704, 4
        %v1706 = vadd.f32 %v1704, %v1705
        %v1707 = vrot.slane %v1706, 2
        %v1708 = vadd.f32 %v1706, %v1707
        %v1709 = vrot.slane %v1708, 1
        %v1710 = vadd.f32 %v1708, %v1709
        %v1711 = vmul.f32 %v1710, 0.001953125
        %v1712 = vmul.f32 %v1700, %v1699
        %v1713 = vadd.f32 %v1712, 0.0
        %v1714 = vsel %vm1703, %v1713, 0.0
        %v1715 = vrot.slane %v1714, 4
        %v1716 = vadd.f32 %v1714, %v1715
        %v1717 = vrot.slane %v1716, 2
        %v1718 = vadd.f32 %v1716, %v1717
        %v1719 = vrot.slane %v1718, 1
        %v1720 = vadd.f32 %v1718, %v1719
        %v1721 = vmul.f32 %v1720, 0.001953125
        %v1722 = vmul.f32 %v1711, %v1711
        %v1723 = vsub.f32 %v1721, %v1722
        %v1724 = vmul.f32 %v1700, %v1711
        %v1725 = vadd.f32 %v1724, 0.0
        %v1726 = vadd.f32 %v1723, 1e-05
        %v1727 = vrsqrt.pop %v1726
        %v1728 = vmul.f32 %v1700, %v1727
        %v1729 = vadd.f32 %v1728, 0.0
        %s1730 = scalar_lea.vmem %s19, 4
        %v1731 = vld [vmem:[%s1730] sm:$0xf]
        %v1732 = vmul.f32 %v1731, %v1692
        %v1733 = vadd.f32 %v1732, 0.0
        %v1734 = vsel %vm1703, %v1733, 0.0
        %v1735 = vrot.slane %v1734, 4
        %v1736 = vadd.f32 %v1734, %v1735
        %v1737 = vrot.slane %v1736, 2
        %v1738 = vadd.f32 %v1736, %v1737
        %v1739 = vrot.slane %v1738, 1
        %v1740 = vadd.f32 %v1738, %v1739
        %v1741 = vmul.f32 %v1740, 0.001953125
        %v1742 = vmul.f32 %v1731, %v1699
        %v1743 = vadd.f32 %v1742, 0.0
        %v1744 = vsel %vm1703, %v1743, 0.0
        %v1745 = vrot.slane %v1744, 4
        %v1746 = vadd.f32 %v1744, %v1745
        %v1747 = vrot.slane %v1746, 2
        %v1748 = vadd.f32 %v1746, %v1747
        %v1749 = vrot.slane %v1748, 1
        %v1750 = vadd.f32 %v1748, %v1749
        %v1751 = vmul.f32 %v1750, 0.001953125
        %v1752 = vmul.f32 %v1741, %v1741
        %v1753 = vsub.f32 %v1751, %v1752
        %v1754 = vmul.f32 %v1731, %v1741
        %v1755 = vadd.f32 %v1725, %v1754
        %v1756 = vadd.f32 %v1753, 1e-05
        %v1757 = vrsqrt.pop %v1756
        %v1758 = vmul.f32 %v1731, %v1757
        %v1759 = vadd.f32 %v1729, %v1758
        %1761 = vset.pattern.permute.xlu0 0
        %1762 = vperm.xlu0 %1761, %v1755
        %v1763 = vpop.permute.xlu0 %1762
        %v1765 = vsub.f32 %v1686, %v1763
        %v1766 = vsub.f32 %v1687, %v1763
        %1768 = vset.pattern.permute.xlu0 0
        %1769 = vperm.xlu0 %1768, %v1759
        %v1770 = vpop.permute.xlu0 %1769
        %v1772 = vmul.f32 %v1765, %v1770
        %v1773 = vmul.f32 %v1766, %v1770
        %v1774 = vld [vmem:[%s13] sm:$0xf]
        %1776 = vset.pattern.permute.xlu0 0
        %1777 = vperm.xlu0 %1776, %v1774
        %v1778 = vpop.permute.xlu0 %1777
        %v1780 = vmul.f32 %v1772, %v1778
        %v1781 = vmul.f32 %v1773, %v1778
        %v1782 = vld [vmem:[%s14] sm:$0xf]
        %1784 = vset.pattern.permute.xlu0 0
        %1785 = vperm.xlu0 %1784, %v1782
        %v1786 = vpop.permute.xlu0 %1785
        %v1788 = vadd.f32 %v1780, %v1786
        %v1789 = vadd.f32 %v1781, %v1786
        %vm1790 = vcmp.ge.f32.partialorder %v1788, 0.0
        %vm1791 = vcmp.ge.f32.partialorder %v1789, 0.0
        %v1792 = vmul.f32 %v1788, 0.2
        %v1793 = vmul.f32 %v1789, 0.2
        %v1794 = vsel %vm1790, %v1788, %v1792
        %v1795 = vsel %vm1791, %v1789, %v1793
        %1796 = vst [vmem:[#allocation2 + $0x8] sm:$0xf] %v1794
        %1797 = vst [vmem:[#allocation2 + $0x10] sm:$0xf] %v1795
        %v1798 = vld [vmem:[#allocation2] sm:$0xf]
        %v1799 = vld [vmem:[#allocation2 + $0x8] sm:$0xf]
        %v1800 = vld [vmem:[#allocation2 + $0x10] sm:$0xf]
        %v1801 = vld [vmem:[%s3] sm:$0x3]
        %v1803 = vlaneseq
        %v1804 = vshrl.u32 %v1803, 7
        %v1805 = vsub.s32 0, %v1804
        %v1806 = vrot.slane %v1801, %v1805
        %v1807 = vlaneseq
        %v1808 = vshrl.u32 %v1807, 7
        %v1809 = vsub.s32 1, %v1808
        %v1810 = vrot.slane %v1801, %v1809
        %1811 = vrot.lane.b32.xlu0 %v1806, 111
        %v1812 = vpop.permute.xlu0 %1811
        %1813 = vrot.lane.b32.xlu0 %v1810, 111
        %v1814 = vpop.permute.xlu0 %1813
        %v1815 = vsel %vm997, %v1812, %v1814
        %v1819 = vmul.f32 %v1798, %v1812
        %v1820 = vmul.f32 %v1799, %v1815
        %v1821 = vmul.f32 %v1800, %v1814
        %v1822 = vld [vmem:[%s15] sm:$0x3]
        %v1823 = vpack.c.bf16 %v1819, %v1819
        %v1824 = vpack.c.bf16 %v1820, %v1820
        %v1825 = vpack.c.bf16 %v1821, %v1821
        %s1826 = scalar_lea.vmem %s15, 2
        %v1827 = vld [vmem:[%s1826] sm:$0x3]
        %v1828 = vpack.c.bf16 %v1798, %v1798
        %v1829 = vpack.c.bf16 %v1799, %v1799
        %v1830 = vpack.c.bf16 %v1800, %v1800
        %1834 = vrot.lane.b32.xlu0 %v1828, 16
        %v1835 = vpop.permute.xlu0 %1834
        %1836 = vrot.lane.b32.xlu0 %v1829, 16
        %v1837 = vpop.permute.xlu0 %1836
        %1838 = vrot.lane.b32.xlu0 %v1830, 16
        %v1839 = vpop.permute.xlu0 %1838
        %v1840 = vsel %vm1023, %v1835, %v1837
        %v1841 = vsel %vm1023, %v1837, %v1839
        %v1843 = vsel %vm759, %v1827, 0
        %v1846 = vsel %vm763, %v1840, 0
        %v1849 = vsel %vm763, %v1841, 0
        %1851 = vmatprep.subr.bf16.mxu0 0
        %1852 = vmatpush1.bf16.msra.mxu0 0
        %1853 = vmatprep.subr.bf16.mxu0 0
        %1854 = vmatpush1.bf16.msra.mxu0 0
        %1855 = vmatprep.subr.bf16.mxu0 0
        %1856 = vmatpush1.bf16.msra.mxu0 0
        %1857 = vmatprep.subr.bf16.mxu0 0
        %1858 = vmatpush1.bf16.msra.mxu0 0
        %1859 = vmatprep.subr.bf16.mxu0 0
        %1860 = vmatpush1.bf16.msra.mxu0 0
        %1861 = vmatprep.subr.bf16.mxu0 0
        %1862 = vmatpush1.bf16.msra.mxu0 0
        %1863 = vmatprep.subr.bf16.mxu0 0
        %1864 = vmatpush1.bf16.msra.mxu0 0
        %1865 = vmatprep.subr.bf16.mxu0 %v1849
        %1866 = vmatpush1.bf16.msra.mxu0 %v1846
        %1867 = vmatprep.subr.bf16.mxu0 0
        %1868 = vmatpush2.bf16.msra.mxu0 0
        %1869 = vmatprep.subr.bf16.mxu0 0
        %1870 = vmatpush2.bf16.msra.mxu0 0
        %1871 = vmatprep.subr.bf16.mxu0 0
        %1872 = vmatpush2.bf16.msra.mxu0 0
        %1873 = vmatprep.subr.bf16.mxu0 0
        %1874 = vmatpush2.bf16.msra.mxu0 0
        %1875 = vmatprep.subr.bf16.mxu0 0
        %1876 = vmatpush2.bf16.msra.mxu0 0
        %1877 = vmatprep.subr.bf16.mxu0 0
        %1878 = vmatpush2.bf16.msra.mxu0 0
        %1879 = vmatprep.subr.bf16.mxu0 0
        %1880 = vmatpush2.bf16.msra.mxu0 0
        %1881 = vmatprep.subr.bf16.mxu0 0
        %1882 = vmatpush2.bf16.msra.mxu0 0
        %1883 = vmatprep.mubr.bf16.mxu0 0
        %1884 = vmatmul.mubr.bf16.gmra.mxu0 %v1843
        %v1885 = vpop.f32.mrf.mxu0
        %v1886 = vadd.f32 0.0, %v1885
        %v1887 = vpop.f32.mrf.mxu0
        %v1888 = vadd.f32 0.0, %v1887
        %v1889 = vpop.f32.mrf.mxu0
        %v1890 = vpop.f32.mrf.mxu0
        %1891 = vdwg.mxu0
        %1895 = vrot.lane.b32.xlu0 %v1823, 17
        %v1896 = vpop.permute.xlu0 %1895
        %1897 = vrot.lane.b32.xlu0 %v1824, 17
        %v1898 = vpop.permute.xlu0 %1897
        %1899 = vrot.lane.b32.xlu0 %v1825, 17
        %v1900 = vpop.permute.xlu0 %1899
        %v1901 = vsel %vm1086, %v1896, %v1898
        %v1902 = vsel %vm1086, %v1898, %v1900
        %v1904 = vsel %vm759, %v1822, 0
        %v1907 = vsel %vm763, %v1901, 0
        %v1910 = vsel %vm763, %v1902, 0
        %1912 = vmatprep.subr.bf16.mxu0 0
        %1913 = vmatpush1.bf16.msra.mxu0 0
        %1914 = vmatprep.subr.bf16.mxu0 0
        %1915 = vmatpush1.bf16.msra.mxu0 0
        %1916 = vmatprep.subr.bf16.mxu0 0
        %1917 = vmatpush1.bf16.msra.mxu0 0
        %1918 = vmatprep.subr.bf16.mxu0 0
        %1919 = vmatpush1.bf16.msra.mxu0 0
        %1920 = vmatprep.subr.bf16.mxu0 0
        %1921 = vmatpush1.bf16.msra.mxu0 0
        %1922 = vmatprep.subr.bf16.mxu0 0
        %1923 = vmatpush1.bf16.msra.mxu0 0
        %1924 = vmatprep.subr.bf16.mxu0 0
        %1925 = vmatpush1.bf16.msra.mxu0 0
        %1926 = vmatprep.subr.bf16.mxu0 %v1910
        %1927 = vmatpush1.bf16.msra.mxu0 %v1907
        %1928 = vmatprep.subr.bf16.mxu0 0
        %1929 = vmatpush2.bf16.msra.mxu0 0
        %1930 = vmatprep.subr.bf16.mxu0 0
        %1931 = vmatpush2.bf16.msra.mxu0 0
        %1932 = vmatprep.subr.bf16.mxu0 0
        %1933 = vmatpush2.bf16.msra.mxu0 0
        %1934 = vmatprep.subr.bf16.mxu0 0
        %1935 = vmatpush2.bf16.msra.mxu0 0
        %1936 = vmatprep.subr.bf16.mxu0 0
        %1937 = vmatpush2.bf16.msra.mxu0 0
        %1938 = vmatprep.subr.bf16.mxu0 0
        %1939 = vmatpush2.bf16.msra.mxu0 0
        %1940 = vmatprep.subr.bf16.mxu0 0
        %1941 = vmatpush2.bf16.msra.mxu0 0
        %1942 = vmatprep.subr.bf16.mxu0 0
        %1943 = vmatpush2.bf16.msra.mxu0 0
        %1944 = vmatprep.mubr.bf16.mxu0 0
        %1945 = vmatmul.mubr.bf16.gmra.mxu0 %v1904
        %v1946 = vpop.f32.mrf.mxu0
        %v1947 = vadd.f32 %v1886, %v1946
        %v1948 = vpop.f32.mrf.mxu0
        %v1949 = vadd.f32 %v1888, %v1948
        %v1950 = vpop.f32.mrf.mxu0
        %v1951 = vpop.f32.mrf.mxu0
        %1952 = vdwg.mxu0
        %v1953 = vld [vmem:[%s4] sm:$0x3]
        %v1955 = vlaneseq
        %v1956 = vshrl.u32 %v1955, 7
        %v1957 = vsub.s32 0, %v1956
        %v1958 = vrot.slane %v1953, %v1957
        %v1959 = vlaneseq
        %v1960 = vshrl.u32 %v1959, 7
        %v1961 = vsub.s32 1, %v1960
        %v1962 = vrot.slane %v1953, %v1961
        %1963 = vrot.lane.b32.xlu0 %v1958, 113
        %v1964 = vpop.permute.xlu0 %1963
        %1965 = vrot.lane.b32.xlu0 %v1962, 113
        %v1966 = vpop.permute.xlu0 %1965
        %v1967 = vsel %vm1153, %v1964, %v1966
        %v1971 = vmul.f32 %v1798, %v1964
        %v1972 = vmul.f32 %v1799, %v1967
        %v1973 = vmul.f32 %v1800, %v1966
        %s1974 = scalar_lea.vmem %s15, 4
        %v1975 = vld [vmem:[%s1974] sm:$0x3]
        %v1976 = vpack.c.bf16 %v1971, %v1971
        %v1977 = vpack.c.bf16 %v1972, %v1972
        %v1978 = vpack.c.bf16 %v1973, %v1973
        %1982 = vrot.lane.b32.xlu0 %v1976, 15
        %v1983 = vpop.permute.xlu0 %1982
        %1984 = vrot.lane.b32.xlu0 %v1977, 15
        %v1985 = vpop.permute.xlu0 %1984
        %1986 = vrot.lane.b32.xlu0 %v1978, 15
        %v1987 = vpop.permute.xlu0 %1986
        %v1988 = vsel %vm1175, %v1983, %v1985
        %v1989 = vsel %vm1175, %v1985, %v1987
        %v1991 = vsel %vm759, %v1975, 0
        %v1994 = vsel %vm763, %v1988, 0
        %v1997 = vsel %vm763, %v1989, 0
        %1999 = vmatprep.subr.bf16.mxu0 0
        %2000 = vmatpush1.bf16.msra.mxu0 0
        %2001 = vmatprep.subr.bf16.mxu0 0
        %2002 = vmatpush1.bf16.msra.mxu0 0
        %2003 = vmatprep.subr.bf16.mxu0 0
        %2004 = vmatpush1.bf16.msra.mxu0 0
        %2005 = vmatprep.subr.bf16.mxu0 0
        %2006 = vmatpush1.bf16.msra.mxu0 0
        %2007 = vmatprep.subr.bf16.mxu0 0
        %2008 = vmatpush1.bf16.msra.mxu0 0
        %2009 = vmatprep.subr.bf16.mxu0 0
        %2010 = vmatpush1.bf16.msra.mxu0 0
        %2011 = vmatprep.subr.bf16.mxu0 0
        %2012 = vmatpush1.bf16.msra.mxu0 0
        %2013 = vmatprep.subr.bf16.mxu0 %v1997
        %2014 = vmatpush1.bf16.msra.mxu0 %v1994
        %2015 = vmatprep.subr.bf16.mxu0 0
        %2016 = vmatpush2.bf16.msra.mxu0 0
        %2017 = vmatprep.subr.bf16.mxu0 0
        %2018 = vmatpush2.bf16.msra.mxu0 0
        %2019 = vmatprep.subr.bf16.mxu0 0
        %2020 = vmatpush2.bf16.msra.mxu0 0
        %2021 = vmatprep.subr.bf16.mxu0 0
        %2022 = vmatpush2.bf16.msra.mxu0 0
        %2023 = vmatprep.subr.bf16.mxu0 0
        %2024 = vmatpush2.bf16.msra.mxu0 0
        %2025 = vmatprep.subr.bf16.mxu0 0
        %2026 = vmatpush2.bf16.msra.mxu0 0
        %2027 = vmatprep.subr.bf16.mxu0 0
        %2028 = vmatpush2.bf16.msra.mxu0 0
        %2029 = vmatprep.subr.bf16.mxu0 0
        %2030 = vmatpush2.bf16.msra.mxu0 0
        %2031 = vmatprep.mubr.bf16.mxu0 0
        %2032 = vmatmul.mubr.bf16.gmra.mxu0 %v1991
        %v2033 = vpop.f32.mrf.mxu0
        %v2034 = vadd.f32 0.0, %v2033
        %v2035 = vpop.f32.mrf.mxu0
        %v2036 = vadd.f32 0.0, %v2035
        %v2037 = vpop.f32.mrf.mxu0
        %v2038 = vpop.f32.mrf.mxu0
        %2039 = vdwg.mxu0
        %v2040 = vadd.f32 %v1947, %v2034
        %v2041 = vadd.f32 %v1949, %v2036
        %2042 = vrot.lane.b32.xlu0 %v1806, 127
        %v2043 = vpop.permute.xlu0 %2042
        %2044 = vrot.lane.b32.xlu0 %v1810, 127
        %v2045 = vpop.permute.xlu0 %2044
        %v2046 = vsel %vm1234, %v2043, %v2045
        %v2050 = vmul.f32 %v1798, %v2043
        %v2051 = vmul.f32 %v1799, %v2046
        %v2052 = vmul.f32 %v1800, %v2045
        %s2053 = scalar_lea.vmem %s15, 6
        %v2054 = vld [vmem:[%s2053] sm:$0x3]
        %v2055 = vpack.c.bf16 %v2050, %v2050
        %v2056 = vpack.c.bf16 %v2051, %v2051
        %v2057 = vpack.c.bf16 %v2052, %v2052
        %2061 = vrot.lane.b32.xlu0 %v2055, 1
        %v2062 = vpop.permute.xlu0 %2061
        %2063 = vrot.lane.b32.xlu0 %v2056, 1
        %v2064 = vpop.permute.xlu0 %2063
        %2065 = vrot.lane.b32.xlu0 %v2057, 1
        %v2066 = vpop.permute.xlu0 %2065
        %v2067 = vsel %vm1256, %v2062, %v2064
        %v2068 = vsel %vm1256, %v2064, %v2066
        %v2070 = vsel %vm759, %v2054, 0
        %v2073 = vsel %vm763, %v2067, 0
        %v2076 = vsel %vm763, %v2068, 0
        %2078 = vmatprep.subr.bf16.mxu0 0
        %2079 = vmatpush1.bf16.msra.mxu0 0
        %2080 = vmatprep.subr.bf16.mxu0 0
        %2081 = vmatpush1.bf16.msra.mxu0 0
        %2082 = vmatprep.subr.bf16.mxu0 0
        %2083 = vmatpush1.bf16.msra.mxu0 0
        %2084 = vmatprep.subr.bf16.mxu0 0
        %2085 = vmatpush1.bf16.msra.mxu0 0
        %2086 = vmatprep.subr.bf16.mxu0 0
        %2087 = vmatpush1.bf16.msra.mxu0 0
        %2088 = vmatprep.subr.bf16.mxu0 0
        %2089 = vmatpush1.bf16.msra.mxu0 0
        %2090 = vmatprep.subr.bf16.mxu0 0
        %2091 = vmatpush1.bf16.msra.mxu0 0
        %2092 = vmatprep.subr.bf16.mxu0 %v2076
        %2093 = vmatpush1.bf16.msra.mxu0 %v2073
        %2094 = vmatprep.subr.bf16.mxu0 0
        %2095 = vmatpush2.bf16.msra.mxu0 0
        %2096 = vmatprep.subr.bf16.mxu0 0
        %2097 = vmatpush2.bf16.msra.mxu0 0
        %2098 = vmatprep.subr.bf16.mxu0 0
        %2099 = vmatpush2.bf16.msra.mxu0 0
        %2100 = vmatprep.subr.bf16.mxu0 0
        %2101 = vmatpush2.bf16.msra.mxu0 0
        %2102 = vmatprep.subr.bf16.mxu0 0
        %2103 = vmatpush2.bf16.msra.mxu0 0
        %2104 = vmatprep.subr.bf16.mxu0 0
        %2105 = vmatpush2.bf16.msra.mxu0 0
        %2106 = vmatprep.subr.bf16.mxu0 0
        %2107 = vmatpush2.bf16.msra.mxu0 0
        %2108 = vmatprep.subr.bf16.mxu0 0
        %2109 = vmatpush2.bf16.msra.mxu0 0
        %2110 = vmatprep.mubr.bf16.mxu0 0
        %2111 = vmatmul.mubr.bf16.gmra.mxu0 %v2070
        %v2112 = vpop.f32.mrf.mxu0
        %v2113 = vadd.f32 0.0, %v2112
        %v2114 = vpop.f32.mrf.mxu0
        %v2115 = vadd.f32 0.0, %v2114
        %v2116 = vpop.f32.mrf.mxu0
        %v2117 = vpop.f32.mrf.mxu0
        %2118 = vdwg.mxu0
        %v2119 = vadd.f32 %v2040, %v2113
        %v2120 = vadd.f32 %v2041, %v2115
        %s2121 = scalar_lea.vmem %s15, 8
        %v2122 = vld [vmem:[%s2121] sm:$0x3]
        %v2124 = vsel %vm759, %v2122, 0
        %v2127 = vsel %vm763, %v1829, 0
        %v2130 = vsel %vm763, %v1830, 0
        %2132 = vmatprep.subr.bf16.mxu0 0
        %2133 = vmatpush1.bf16.msra.mxu0 0
        %2134 = vmatprep.subr.bf16.mxu0 0
        %2135 = vmatpush1.bf16.msra.mxu0 0
        %2136 = vmatprep.subr.bf16.mxu0 0
        %2137 = vmatpush1.bf16.msra.mxu0 0
        %2138 = vmatprep.subr.bf16.mxu0 0
        %2139 = vmatpush1.bf16.msra.mxu0 0
        %2140 = vmatprep.subr.bf16.mxu0 0
        %2141 = vmatpush1.bf16.msra.mxu0 0
        %2142 = vmatprep.subr.bf16.mxu0 0
        %2143 = vmatpush1.bf16.msra.mxu0 0
        %2144 = vmatprep.subr.bf16.mxu0 0
        %2145 = vmatpush1.bf16.msra.mxu0 0
        %2146 = vmatprep.subr.bf16.mxu0 %v2130
        %2147 = vmatpush1.bf16.msra.mxu0 %v2127
        %2148 = vmatprep.subr.bf16.mxu0 0
        %2149 = vmatpush2.bf16.msra.mxu0 0
        %2150 = vmatprep.subr.bf16.mxu0 0
        %2151 = vmatpush2.bf16.msra.mxu0 0
        %2152 = vmatprep.subr.bf16.mxu0 0
        %2153 = vmatpush2.bf16.msra.mxu0 0
        %2154 = vmatprep.subr.bf16.mxu0 0
        %2155 = vmatpush2.bf16.msra.mxu0 0
        %2156 = vmatprep.subr.bf16.mxu0 0
        %2157 = vmatpush2.bf16.msra.mxu0 0
        %2158 = vmatprep.subr.bf16.mxu0 0
        %2159 = vmatpush2.bf16.msra.mxu0 0
        %2160 = vmatprep.subr.bf16.mxu0 0
        %2161 = vmatpush2.bf16.msra.mxu0 0
        %2162 = vmatprep.subr.bf16.mxu0 0
        %2163 = vmatpush2.bf16.msra.mxu0 0
        %2164 = vmatprep.mubr.bf16.mxu0 0
        %2165 = vmatmul.mubr.bf16.gmra.mxu0 %v2124
        %v2166 = vpop.f32.mrf.mxu0
        %v2167 = vadd.f32 0.0, %v2166
        %v2168 = vpop.f32.mrf.mxu0
        %v2169 = vadd.f32 0.0, %v2168
        %v2170 = vpop.f32.mrf.mxu0
        %v2171 = vpop.f32.mrf.mxu0
        %2172 = vdwg.mxu0
        %v2173 = vadd.f32 %v2119, %v2167
        %v2174 = vadd.f32 %v2120, %v2169
        %v2175 = vld [vmem:[#allocation2 + $0x8] sm:$0xf]
        %v2176 = vld [vmem:[#allocation2 + $0x10] sm:$0xf]
        %v2177 = vld [vmem:[#allocation2 + $0x18] sm:$0xf]
        %2178 = vrot.lane.b32.xlu0 %v1958, 1
        %v2179 = vpop.permute.xlu0 %2178
        %2180 = vrot.lane.b32.xlu0 %v1962, 1
        %v2181 = vpop.permute.xlu0 %2180
        %v2182 = vsel %vm1372, %v2179, %v2181
        %v2186 = vmul.f32 %v2175, %v2179
        %v2187 = vmul.f32 %v2176, %v2182
        %v2188 = vmul.f32 %v2177, %v2181
        %s2189 = scalar_lea.vmem %s15, 10
        %v2190 = vld [vmem:[%s2189] sm:$0x3]
        %v2191 = vpack.c.bf16 %v2186, %v2186
        %v2192 = vpack.c.bf16 %v2187, %v2187
        %v2193 = vpack.c.bf16 %v2188, %v2188
        %2197 = vrot.lane.b32.xlu0 %v2191, 127
        %v2198 = vpop.permute.xlu0 %2197
        %2199 = vrot.lane.b32.xlu0 %v2192, 127
        %v2200 = vpop.permute.xlu0 %2199
        %2201 = vrot.lane.b32.xlu0 %v2193, 127
        %v2202 = vpop.permute.xlu0 %2201
        %v2203 = vsel %vm1394, %v2198, %v2200
        %v2204 = vsel %vm1394, %v2200, %v2202
        %v2206 = vsel %vm759, %v2190, 0
        %v2209 = vsel %vm763, %v2203, 0
        %v2212 = vsel %vm763, %v2204, 0
        %2214 = vmatprep.subr.bf16.mxu0 0
        %2215 = vmatpush1.bf16.msra.mxu0 0
        %2216 = vmatprep.subr.bf16.mxu0 0
        %2217 = vmatpush1.bf16.msra.mxu0 0
        %2218 = vmatprep.subr.bf16.mxu0 0
        %2219 = vmatpush1.bf16.msra.mxu0 0
        %2220 = vmatprep.subr.bf16.mxu0 0
        %2221 = vmatpush1.bf16.msra.mxu0 0
        %2222 = vmatprep.subr.bf16.mxu0 0
        %2223 = vmatpush1.bf16.msra.mxu0 0
        %2224 = vmatprep.subr.bf16.mxu0 0
        %2225 = vmatpush1.bf16.msra.mxu0 0
        %2226 = vmatprep.subr.bf16.mxu0 0
        %2227 = vmatpush1.bf16.msra.mxu0 0
        %2228 = vmatprep.subr.bf16.mxu0 %v2212
        %2229 = vmatpush1.bf16.msra.mxu0 %v2209
        %2230 = vmatprep.subr.bf16.mxu0 0
        %2231 = vmatpush2.bf16.msra.mxu0 0
        %2232 = vmatprep.subr.bf16.mxu0 0
        %2233 = vmatpush2.bf16.msra.mxu0 0
        %2234 = vmatprep.subr.bf16.mxu0 0
        %2235 = vmatpush2.bf16.msra.mxu0 0
        %2236 = vmatprep.subr.bf16.mxu0 0
        %2237 = vmatpush2.bf16.msra.mxu0 0
        %2238 = vmatprep.subr.bf16.mxu0 0
        %2239 = vmatpush2.bf16.msra.mxu0 0
        %2240 = vmatprep.subr.bf16.mxu0 0
        %2241 = vmatpush2.bf16.msra.mxu0 0
        %2242 = vmatprep.subr.bf16.mxu0 0
        %2243 = vmatpush2.bf16.msra.mxu0 0
        %2244 = vmatprep.subr.bf16.mxu0 0
        %2245 = vmatpush2.bf16.msra.mxu0 0
        %2246 = vmatprep.mubr.bf16.mxu0 0
        %2247 = vmatmul.mubr.bf16.gmra.mxu0 %v2206
        %v2248 = vpop.f32.mrf.mxu0
        %v2249 = vadd.f32 0.0, %v2248
        %v2250 = vpop.f32.mrf.mxu0
        %v2251 = vadd.f32 0.0, %v2250
        %v2252 = vpop.f32.mrf.mxu0
        %v2253 = vpop.f32.mrf.mxu0
        %2254 = vdwg.mxu0
        %v2255 = vadd.f32 %v2173, %v2249
        %v2256 = vadd.f32 %v2174, %v2251
        %2257 = vrot.lane.b32.xlu0 %v1806, 15
        %v2258 = vpop.permute.xlu0 %2257
        %2259 = vrot.lane.b32.xlu0 %v1810, 15
        %v2260 = vpop.permute.xlu0 %2259
        %v2261 = vsel %vm1453, %v2258, %v2260
        %v2265 = vmul.f32 %v2175, %v2258
        %v2266 = vmul.f32 %v2176, %v2261
        %v2267 = vmul.f32 %v2177, %v2260
        %s2268 = scalar_lea.vmem %s15, 12
        %v2269 = vld [vmem:[%s2268] sm:$0x3]
        %v2270 = vpack.c.bf16 %v2265, %v2265
        %v2271 = vpack.c.bf16 %v2266, %v2266
        %v2272 = vpack.c.bf16 %v2267, %v2267
        %2276 = vrot.lane.b32.xlu0 %v2270, 113
        %v2277 = vpop.permute.xlu0 %2276
        %2278 = vrot.lane.b32.xlu0 %v2271, 113
        %v2279 = vpop.permute.xlu0 %2278
        %2280 = vrot.lane.b32.xlu0 %v2272, 113
        %v2281 = vpop.permute.xlu0 %2280
        %v2282 = vsel %vm1475, %v2277, %v2279
        %v2283 = vsel %vm1475, %v2279, %v2281
        %v2285 = vsel %vm759, %v2269, 0
        %v2288 = vsel %vm763, %v2282, 0
        %v2291 = vsel %vm763, %v2283, 0
        %2293 = vmatprep.subr.bf16.mxu0 0
        %2294 = vmatpush1.bf16.msra.mxu0 0
        %2295 = vmatprep.subr.bf16.mxu0 0
        %2296 = vmatpush1.bf16.msra.mxu0 0
        %2297 = vmatprep.subr.bf16.mxu0 0
        %2298 = vmatpush1.bf16.msra.mxu0 0
        %2299 = vmatprep.subr.bf16.mxu0 0
        %2300 = vmatpush1.bf16.msra.mxu0 0
        %2301 = vmatprep.subr.bf16.mxu0 0
        %2302 = vmatpush1.bf16.msra.mxu0 0
        %2303 = vmatprep.subr.bf16.mxu0 0
        %2304 = vmatpush1.bf16.msra.mxu0 0
        %2305 = vmatprep.subr.bf16.mxu0 0
        %2306 = vmatpush1.bf16.msra.mxu0 0
        %2307 = vmatprep.subr.bf16.mxu0 %v2291
        %2308 = vmatpush1.bf16.msra.mxu0 %v2288
        %2309 = vmatprep.subr.bf16.mxu0 0
        %2310 = vmatpush2.bf16.msra.mxu0 0
        %2311 = vmatprep.subr.bf16.mxu0 0
        %2312 = vmatpush2.bf16.msra.mxu0 0
        %2313 = vmatprep.subr.bf16.mxu0 0
        %2314 = vmatpush2.bf16.msra.mxu0 0
        %2315 = vmatprep.subr.bf16.mxu0 0
        %2316 = vmatpush2.bf16.msra.mxu0 0
        %2317 = vmatprep.subr.bf16.mxu0 0
        %2318 = vmatpush2.bf16.msra.mxu0 0
        %2319 = vmatprep.subr.bf16.mxu0 0
        %2320 = vmatpush2.bf16.msra.mxu0 0
        %2321 = vmatprep.subr.bf16.mxu0 0
        %2322 = vmatpush2.bf16.msra.mxu0 0
        %2323 = vmatprep.subr.bf16.mxu0 0
        %2324 = vmatpush2.bf16.msra.mxu0 0
        %2325 = vmatprep.mubr.bf16.mxu0 0
        %2326 = vmatmul.mubr.bf16.gmra.mxu0 %v2285
        %v2327 = vpop.f32.mrf.mxu0
        %v2328 = vadd.f32 0.0, %v2327
        %v2329 = vpop.f32.mrf.mxu0
        %v2330 = vadd.f32 0.0, %v2329
        %v2331 = vpop.f32.mrf.mxu0
        %v2332 = vpop.f32.mrf.mxu0
        %2333 = vdwg.mxu0
        %v2334 = vadd.f32 %v2255, %v2328
        %v2335 = vadd.f32 %v2256, %v2330
        %s2336 = scalar_lea.vmem %s15, 14
        %v2337 = vld [vmem:[%s2336] sm:$0x3]
        %v2338 = vpack.c.bf16 %v2175, %v2175
        %v2339 = vpack.c.bf16 %v2176, %v2176
        %v2340 = vpack.c.bf16 %v2177, %v2177
        %2344 = vrot.lane.b32.xlu0 %v2338, 112
        %v2345 = vpop.permute.xlu0 %2344
        %2346 = vrot.lane.b32.xlu0 %v2339, 112
        %v2347 = vpop.permute.xlu0 %2346
        %2348 = vrot.lane.b32.xlu0 %v2340, 112
        %v2349 = vpop.permute.xlu0 %2348
        %v2350 = vsel %vm1544, %v2345, %v2347
        %v2351 = vsel %vm1544, %v2347, %v2349
        %v2353 = vsel %vm759, %v2337, 0
        %v2356 = vsel %vm763, %v2350, 0
        %v2359 = vsel %vm763, %v2351, 0
        %2361 = vmatprep.subr.bf16.mxu0 0
        %2362 = vmatpush1.bf16.msra.mxu0 0
        %2363 = vmatprep.subr.bf16.mxu0 0
        %2364 = vmatpush1.bf16.msra.mxu0 0
        %2365 = vmatprep.subr.bf16.mxu0 0
        %2366 = vmatpush1.bf16.msra.mxu0 0
        %2367 = vmatprep.subr.bf16.mxu0 0
        %2368 = vmatpush1.bf16.msra.mxu0 0
        %2369 = vmatprep.subr.bf16.mxu0 0
        %2370 = vmatpush1.bf16.msra.mxu0 0
        %2371 = vmatprep.subr.bf16.mxu0 0
        %2372 = vmatpush1.bf16.msra.mxu0 0
        %2373 = vmatprep.subr.bf16.mxu0 0
        %2374 = vmatpush1.bf16.msra.mxu0 0
        %2375 = vmatprep.subr.bf16.mxu0 %v2359
        %2376 = vmatpush1.bf16.msra.mxu0 %v2356
        %2377 = vmatprep.subr.bf16.mxu0 0
        %2378 = vmatpush2.bf16.msra.mxu0 0
        %2379 = vmatprep.subr.bf16.mxu0 0
        %2380 = vmatpush2.bf16.msra.mxu0 0
        %2381 = vmatprep.subr.bf16.mxu0 0
        %2382 = vmatpush2.bf16.msra.mxu0 0
        %2383 = vmatprep.subr.bf16.mxu0 0
        %2384 = vmatpush2.bf16.msra.mxu0 0
        %2385 = vmatprep.subr.bf16.mxu0 0
        %2386 = vmatpush2.bf16.msra.mxu0 0
        %2387 = vmatprep.subr.bf16.mxu0 0
        %2388 = vmatpush2.bf16.msra.mxu0 0
        %2389 = vmatprep.subr.bf16.mxu0 0
        %2390 = vmatpush2.bf16.msra.mxu0 0
        %2391 = vmatprep.subr.bf16.mxu0 0
        %2392 = vmatpush2.bf16.msra.mxu0 0
        %2393 = vmatprep.mubr.bf16.mxu0 0
        %2394 = vmatmul.mubr.bf16.gmra.mxu0 %v2353
        %v2395 = vpop.f32.mrf.mxu0
        %v2396 = vadd.f32 0.0, %v2395
        %v2397 = vpop.f32.mrf.mxu0
        %v2398 = vadd.f32 0.0, %v2397
        %v2399 = vpop.f32.mrf.mxu0
        %v2400 = vpop.f32.mrf.mxu0
        %2401 = vdwg.mxu0
        %v2402 = vadd.f32 %v2334, %v2396
        %v2403 = vadd.f32 %v2335, %v2398
        %2404 = vrot.lane.b32.xlu0 %v1958, 17
        %v2405 = vpop.permute.xlu0 %2404
        %2406 = vrot.lane.b32.xlu0 %v1962, 17
        %v2407 = vpop.permute.xlu0 %2406
        %v2408 = vsel %vm1603, %v2405, %v2407
        %v2412 = vmul.f32 %v2175, %v2405
        %v2413 = vmul.f32 %v2176, %v2408
        %v2414 = vmul.f32 %v2177, %v2407
        %s2415 = scalar_lea.vmem %s15, 16
        %v2416 = vld [vmem:[%s2415] sm:$0x3]
        %v2417 = vpack.c.bf16 %v2412, %v2412
        %v2418 = vpack.c.bf16 %v2413, %v2413
        %v2419 = vpack.c.bf16 %v2414, %v2414
        %2423 = vrot.lane.b32.xlu0 %v2417, 111
        %v2424 = vpop.permute.xlu0 %2423
        %2425 = vrot.lane.b32.xlu0 %v2418, 111
        %v2426 = vpop.permute.xlu0 %2425
        %2427 = vrot.lane.b32.xlu0 %v2419, 111
        %v2428 = vpop.permute.xlu0 %2427
        %v2429 = vsel %vm1625, %v2424, %v2426
        %v2430 = vsel %vm1625, %v2426, %v2428
        %v2432 = vsel %vm759, %v2416, 0
        %v2435 = vsel %vm763, %v2429, 0
        %v2438 = vsel %vm763, %v2430, 0
        %2440 = vmatprep.subr.bf16.mxu0 0
        %2441 = vmatpush1.bf16.msra.mxu0 0
        %2442 = vmatprep.subr.bf16.mxu0 0
        %2443 = vmatpush1.bf16.msra.mxu0 0
        %2444 = vmatprep.subr.bf16.mxu0 0
        %2445 = vmatpush1.bf16.msra.mxu0 0
        %2446 = vmatprep.subr.bf16.mxu0 0
        %2447 = vmatpush1.bf16.msra.mxu0 0
        %2448 = vmatprep.subr.bf16.mxu0 0
        %2449 = vmatpush1.bf16.msra.mxu0 0
        %2450 = vmatprep.subr.bf16.mxu0 0
        %2451 = vmatpush1.bf16.msra.mxu0 0
        %2452 = vmatprep.subr.bf16.mxu0 0
        %2453 = vmatpush1.bf16.msra.mxu0 0
        %2454 = vmatprep.subr.bf16.mxu0 %v2438
        %2455 = vmatpush1.bf16.msra.mxu0 %v2435
        %2456 = vmatprep.subr.bf16.mxu0 0
        %2457 = vmatpush2.bf16.msra.mxu0 0
        %2458 = vmatprep.subr.bf16.mxu0 0
        %2459 = vmatpush2.bf16.msra.mxu0 0
        %2460 = vmatprep.subr.bf16.mxu0 0
        %2461 = vmatpush2.bf16.msra.mxu0 0
        %2462 = vmatprep.subr.bf16.mxu0 0
        %2463 = vmatpush2.bf16.msra.mxu0 0
        %2464 = vmatprep.subr.bf16.mxu0 0
        %2465 = vmatpush2.bf16.msra.mxu0 0
        %2466 = vmatprep.subr.bf16.mxu0 0
        %2467 = vmatpush2.bf16.msra.mxu0 0
        %2468 = vmatprep.subr.bf16.mxu0 0
        %2469 = vmatpush2.bf16.msra.mxu0 0
        %2470 = vmatprep.subr.bf16.mxu0 0
        %2471 = vmatpush2.bf16.msra.mxu0 0
        %2472 = vmatprep.mubr.bf16.mxu0 0
        %2473 = vmatmul.mubr.bf16.gmra.mxu0 %v2432
        %v2474 = vpop.f32.mrf.mxu0
        %v2475 = vadd.f32 0.0, %v2474
        %v2476 = vpop.f32.mrf.mxu0
        %v2477 = vadd.f32 0.0, %v2476
        %v2478 = vpop.f32.mrf.mxu0
        %v2479 = vpop.f32.mrf.mxu0
        %2480 = vdwg.mxu0
        %v2481 = vadd.f32 %v2402, %v2475
        %v2482 = vadd.f32 %v2403, %v2477
        %v2483 = vld [vmem:[%s16] sm:$0xf]
        %2485 = vset.pattern.permute.xlu0 0
        %2486 = vperm.xlu0 %2485, %v2483
        %v2487 = vpop.permute.xlu0 %2486
        %v2489 = vadd.f32 %v2481, %v2487
        %v2490 = vadd.f32 %v2482, %v2487
        %v2491 = vsel %vm811, %v2489, 0.0
        %v2492 = vsel %vm811, %v2490, 0.0
        %v2493 = vadd.f32 %v2491, %v2492
        %2494 = vadd.xlane.f32.xlu0 %v2493
        %v2495 = vpop.xlane.xlu0 %2494
        %v2496 = vmul.f32 %v2489, %v2489
        %v2497 = vmul.f32 %v2490, %v2490
        %v2498 = vsel %vm811, %v2496, 0.0
        %v2499 = vsel %vm811, %v2497, 0.0
        %v2500 = vadd.f32 %v2498, %v2499
        %2501 = vadd.xlane.f32.xlu0 %v2500
        %v2502 = vpop.xlane.xlu0 %2501
        %v2503 = vld [vmem:[%s19] sm:$0xf]
        %v2504 = vmul.f32 %v2503, %v2495
        %v2505 = vadd.f32 %v2504, 0.0
        %v2506 = vsel %vm1703, %v2505, 0.0
        %v2507 = vrot.slane %v2506, 4
        %v2508 = vadd.f32 %v2506, %v2507
        %v2509 = vrot.slane %v2508, 2
        %v2510 = vadd.f32 %v2508, %v2509
        %v2511 = vrot.slane %v2510, 1
        %v2512 = vadd.f32 %v2510, %v2511
        %v2513 = vmul.f32 %v2512, 0.001953125
        %v2514 = vmul.f32 %v2503, %v2502
        %v2515 = vadd.f32 %v2514, 0.0
        %v2516 = vsel %vm1703, %v2515, 0.0
        %v2517 = vrot.slane %v2516, 4
        %v2518 = vadd.f32 %v2516, %v2517
        %v2519 = vrot.slane %v2518, 2
        %v2520 = vadd.f32 %v2518, %v2519
        %v2521 = vrot.slane %v2520, 1
        %v2522 = vadd.f32 %v2520, %v2521
        %v2523 = vmul.f32 %v2522, 0.001953125
        %v2524 = vmul.f32 %v2513, %v2513
        %v2525 = vsub.f32 %v2523, %v2524
        %v2526 = vmul.f32 %v2503, %v2513
        %v2527 = vadd.f32 %v2526, 0.0
        %v2528 = vadd.f32 %v2525, 1e-05
        %v2529 = vrsqrt.pop %v2528
        %v2530 = vmul.f32 %v2503, %v2529
        %v2531 = vadd.f32 %v2530, 0.0
        %v2532 = vld [vmem:[%s1730] sm:$0xf]
        %v2533 = vmul.f32 %v2532, %v2495
        %v2534 = vadd.f32 %v2533, 0.0
        %v2535 = vsel %vm1703, %v2534, 0.0
        %v2536 = vrot.slane %v2535, 4
        %v2537 = vadd.f32 %v2535, %v2536
        %v2538 = vrot.slane %v2537, 2
        %v2539 = vadd.f32 %v2537, %v2538
        %v2540 = vrot.slane %v2539, 1
        %v2541 = vadd.f32 %v2539, %v2540
        %v2542 = vmul.f32 %v2541, 0.001953125
        %v2543 = vmul.f32 %v2532, %v2502
        %v2544 = vadd.f32 %v2543, 0.0
        %v2545 = vsel %vm1703, %v2544, 0.0
        %v2546 = vrot.slane %v2545, 4
        %v2547 = vadd.f32 %v2545, %v2546
        %v2548 = vrot.slane %v2547, 2
        %v2549 = vadd.f32 %v2547, %v2548
        %v2550 = vrot.slane %v2549, 1
        %v2551 = vadd.f32 %v2549, %v2550
        %v2552 = vmul.f32 %v2551, 0.001953125
        %v2553 = vmul.f32 %v2542, %v2542
        %v2554 = vsub.f32 %v2552, %v2553
        %v2555 = vmul.f32 %v2532, %v2542
        %v2556 = vadd.f32 %v2527, %v2555
        %v2557 = vadd.f32 %v2554, 1e-05
        %v2558 = vrsqrt.pop %v2557
        %v2559 = vmul.f32 %v2532, %v2558
        %v2560 = vadd.f32 %v2531, %v2559
        %2562 = vset.pattern.permute.xlu0 0
        %2563 = vperm.xlu0 %2562, %v2556
        %v2564 = vpop.permute.xlu0 %2563
        %v2566 = vsub.f32 %v2489, %v2564
        %v2567 = vsub.f32 %v2490, %v2564
        %2569 = vset.pattern.permute.xlu0 0
        %2570 = vperm.xlu0 %2569, %v2560
        %v2571 = vpop.permute.xlu0 %2570
        %v2573 = vmul.f32 %v2566, %v2571
        %v2574 = vmul.f32 %v2567, %v2571
        %v2575 = vld [vmem:[%s17] sm:$0xf]
        %2577 = vset.pattern.permute.xlu0 0
        %2578 = vperm.xlu0 %2577, %v2575
        %v2579 = vpop.permute.xlu0 %2578
        %v2581 = vmul.f32 %v2573, %v2579
        %v2582 = vmul.f32 %v2574, %v2579
        %v2583 = vld [vmem:[%s18] sm:$0xf]
        %2585 = vset.pattern.permute.xlu0 0
        %2586 = vperm.xlu0 %2585, %v2583
        %v2587 = vpop.permute.xlu0 %2586
        %v2589 = vadd.f32 %v2581, %v2587
        %v2590 = vadd.f32 %v2582, %v2587
        %vm2591 = vcmp.ge.f32.partialorder %v2589, 0.0
        %vm2592 = vcmp.ge.f32.partialorder %v2590, 0.0
        %v2593 = vmul.f32 %v2589, 0.2
        %v2594 = vmul.f32 %v2590, 0.2
        %v2595 = vsel %vm2591, %v2589, %v2593
        %v2596 = vsel %vm2592, %v2590, %v2594
        %v2599 = vcombine.low %v2595, %v2596
        %2601 = vst [vmem:[%s635] sm:$0xff] %v2599
        %s2602 = sand.u32 %s472, 1
        %s2603 = scalar_lea.sflag [#allocation4], %s2602
        %s2604 = sand.u32 %s472, 1
        %s2605 = smul.addr %s2604, 8
        %s2606 = scalar_lea.vmem [#allocation3], %s2605
        // Predicated region
        $region101: #{tpu_custom_call.1} parent=99 // pred_check
          %p2607 = pneg %p482
        $region102: #{tpu_custom_call.1} parent=99 // pred_check_branch
          %2609 = sbr.rel (%p2607) target = $region104
        $region103: #{tpu_custom_call.1} parent=99 // pred_region
          %s2611 = ssub.s32 128, 128
          %2612 = vsyncadd %s2603, %s2611
          %s2613 = smul.addr %s34, 2
          %s2614 = smul.addr %s2613, 64
          %s2615 = scalar_lea.hbm %s20, %s2614
          %s2617 = sshll.u32 %s2606, 4
          %s2618 = int_to_ptr.vmem [resolvable:$true] %s2617
          %2620 = dma.vmem_to_hbm [thread:$0]  %s2618, 128, %s2615, %s2603
        $region104: #{tpu_custom_call.1} parent=99 // pred_fallthru
          _
      $region100: #{tpu_custom_call.1} parent=5 // pred_fallthru
        _
      %p2621 = scmp.le.s32.totalorder 2, %s29
      // Predicated region
      $region105: #{tpu_custom_call.1} parent=5 // pred_check
        %p2622 = pneg %p2621
      $region106: #{tpu_custom_call.1} parent=5 // pred_check_branch
        %2624 = sbr.rel (%p2622) target = $region108
      $region107: #{tpu_custom_call.1} parent=5 // pred_region
        %s2625 = ssub.s32 %s29, 2
        // Predicated region
        $region109: #{tpu_custom_call.1} parent=107 // pred_check
          %p2626 = pneg %p488
        $region110: #{tpu_custom_call.1} parent=107 // pred_check_branch
          %2628 = sbr.rel (%p2626) target = $region112
        $region111: #{tpu_custom_call.1} parent=107 // pred_region
          %s2629 = sand.u32 %s473, 1
          %s2630 = scalar_lea.sflag [#allocation4], %s2629
          %s2631 = sand.u32 %s473, 1
          %s2632 = smul.addr %s2631, 8
          %s2633 = scalar_lea.vmem [#allocation3], %s2632
          %2634 = dma.done %s2630, 128
        $region112: #{tpu_custom_call.1} parent=107 // pred_fallthru
          _
      $region108: #{tpu_custom_call.1} parent=5 // pred_fallthru
        _
    $region6: #{tpu_custom_call.1} parent=1 // loop_footer
      %s33 = sadd.s32 1, %s29
    $region7: #{tpu_custom_call.1} parent=1 // loop_footer_branch
      %28 = sbr.rel target = $region3
    $region8: #{tpu_custom_call.1} parent=1 // loop_exit
      _
    %2635 = vsyncpa [#allocation4], 1
    %s2636 = scalar_lea.sflag [#allocation4], 1
    %2637 = vsyncpa %s2636, 1

</llo_original>
